<compile_context>
chip_gen: v7x
topology: tpu7x:2x2x1
jax: 0.10.0
libtpu: 0.0.40
codegen_flags: <defaults>
</compile_context>

<pallas_src>
import functools
import numpy as np
import jax
import jax.numpy as jnp
from jax.experimental import pallas as pl
from jax.experimental.pallas import tpu as pltpu


# -------------------- Pallas kernel --------------------

def perceiver_block_kernel(nheads,
                           latents_ref, inputs_ref,
                           wq_ref, wk_ref, wv_ref, wco_ref, bco_ref,
                           ln1_g_ref, ln1_b_ref,
                           wqs_ref, wks_ref, wvs_ref, wso_ref, bso_ref,
                           ln2_g_ref, ln2_b_ref,
                           w1_ref, b1_ref, w2_ref, b2_ref,
                           out_ref):
    f32 = jnp.float32
    bf16 = jnp.bfloat16

    lat = latents_ref[...].astype(f32)          # (BB, L, D) -- residual / LN path in f32
    BB, L, D = lat.shape
    H = nheads
    N = BB * H

    def rep_heads(x):
        # (BB, M, K) -> (BB*H, M, K): replicate along a new leading head axis.
        # Only leading (untiled) dims change -> no lane/sublane repacking.  `x` is
        # already bf16 so the H copies move half the bytes.
        return jnp.broadcast_to(x[:, None], (BB, H) + x.shape[1:]).reshape((N,) + x.shape[1:])

    def rep_batch(w_ref):
        # (H, K, E) -> (BB*H, K, E): replicate per-head weights across the batch block.
        w = w_ref[...]
        return jnp.broadcast_to(w[None], (BB,) + w.shape).reshape((N,) + w.shape[1:])

    def mha(xq_rep, xkv_rep, wq3_ref, wk3_ref, wv3_ref, wo3_ref, bo_ref):
        # Head-batched attention.  xq_rep / xkv_rep are (N, *, *) bf16, already
        # replicated per head.  1/sqrt(head_dim) is folded into wq in the wrapper.
        q = jnp.einsum('nld,nde->nle', xq_rep, rep_batch(wq3_ref),
                       preferred_element_type=f32)                  # (N, L, hd)
        k = jnp.einsum('nsd,nde->nse', xkv_rep, rep_batch(wk3_ref),
                       preferred_element_type=f32)                  # (N, S, hd)
        v = jnp.einsum('nsd,nde->nse', xkv_rep, rep_batch(wv3_ref),
                       preferred_element_type=f32)                  # (N, S, hd)

        s = jnp.einsum('nle,nse->nls', q.astype(bf16), k.astype(bf16),
                       preferred_element_type=f32)                  # (N, L, S)
        s = s - jnp.max(s, axis=-1, keepdims=True)                  # XLU lane-reduce
        e = jnp.exp(s)                                              # EUP
        p = e * pl.reciprocal(jnp.sum(e, axis=-1, keepdims=True), approx=True)

        o = jnp.einsum('nls,nse->nle', p.astype(bf16), v.astype(bf16),
                       preferred_element_type=f32)                  # (N, L, hd)
        proj = jnp.einsum('nle,nef->nlf', o.astype(bf16), rep_batch(wo3_ref),
                          preferred_element_type=f32)               # (N, L, D)

        # Summing per-head output projections over heads == concat(heads) @ W_out.
        proj4 = proj.reshape(BB, H, L, D)                           # leading split only
        mixed = proj4[:, 0]
        for h in range(1, H):                                       # static leading-dim selects
            mixed = mixed + proj4[:, h]
        return mixed + bo_ref[...].astype(f32)                      # (BB, L, D)

    def layer_norm(x, g_ref, b_ref, eps=1e-5):
        mu = jnp.mean(x, axis=-1, keepdims=True)
        var = jnp.mean(jnp.square(x - mu), axis=-1, keepdims=True)
        return (x - mu) * jax.lax.rsqrt(var + eps) * g_ref[...] + b_ref[...]

    # ---------- Cross attention + residual + LN1 ----------
    lat_b = lat.astype(bf16)
    inp_b = inputs_ref[...].astype(bf16)                            # (BB, S, Din)
    cross = mha(rep_heads(lat_b), rep_heads(inp_b),
                wq_ref, wk_ref, wv_ref, wco_ref, bco_ref)
    lat1 = layer_norm(cross + lat, ln1_g_ref, ln1_b_ref)            # dropout == identity (eval)

    # ---------- Self attention + residual + LN2 ----------
    lat1_rep = rep_heads(lat1.astype(bf16))                         # shared Q and KV operand
    self_att = mha(lat1_rep, lat1_rep,
                   wqs_ref, wks_ref, wvs_ref, wso_ref, bso_ref)
    lat2 = layer_norm(self_att + lat1, ln2_g_ref, ln2_b_ref)

    # ---------- Feedforward (two plain 2-D MXU matmuls over BB*L rows) ----------
    x2 = lat2.reshape(BB * L, D).astype(bf16)
    h1 = jnp.dot(x2, w1_ref[...], preferred_element_type=f32) + b1_ref[...]
    h1 = jnp.maximum(h1, 0.0)
    ff = jnp.dot(h1.astype(bf16), w2_ref[...], preferred_element_type=f32) + b2_ref[...]

    out_ref[...] = (lat2 + ff.reshape(BB, L, D)).astype(out_ref.dtype)


# -------------------- wrapper --------------------

def prepare_params(p, nheads, compute_dtype=jnp.bfloat16):
    """One-time weight transform: split weights per head (head-major), fold the
    1/sqrt(head_dim) attention scale into the Q projections, cast matmul weights to
    bf16.  Biases / LayerNorm params stay f32."""
    D = p['wq'].shape[0]
    Din = p['wkv'].shape[0]
    H = nheads
    hd = D // H
    scale = 1.0 / (hd ** 0.5)
    f32 = jnp.float32
    c = lambda x: x.astype(compute_dtype)

    wq3 = (p['wq'] * scale).reshape(D, H, hd).transpose(1, 0, 2)     # (H, D, hd)
    kv = p['wkv'].reshape(Din, H, 2 * hd)
    wk3 = kv[..., :hd].transpose(1, 0, 2)                            # (H, Din, hd)
    wv3 = kv[..., hd:].transpose(1, 0, 2)                            # (H, Din, hd)
    wco3 = p['wco'].reshape(H, hd, D)                                # (H, hd, D)

    qkv = p['wqkv'].reshape(D, H, 3 * hd)
    wqs3 = (qkv[..., :hd] * scale).transpose(1, 0, 2)                # (H, D, hd)
    wks3 = qkv[..., hd:2 * hd].transpose(1, 0, 2)                    # (H, D, hd)
    wvs3 = qkv[..., 2 * hd:].transpose(1, 0, 2)                      # (H, D, hd)
    wso3 = p['wso'].reshape(H, hd, D)                                # (H, hd, D)

    return {
        'wq3': c(wq3), 'wk3': c(wk3), 'wv3': c(wv3),
        'wco3': c(wco3), 'bco': p['bco'].astype(f32),
        'ln1_g': p['ln1_g'].astype(f32), 'ln1_b': p['ln1_b'].astype(f32),
        'wqs3': c(wqs3), 'wks3': c(wks3), 'wvs3': c(wvs3),
        'wso3': c(wso3), 'bso': p['bso'].astype(f32),
        'ln2_g': p['ln2_g'].astype(f32), 'ln2_b': p['ln2_b'].astype(f32),
        'w1': c(p['w1']), 'b1': p['b1'].astype(f32),
        'w2': c(p['w2']), 'b2': p['b2'].astype(f32),
    }


_WEIGHT_ORDER = ['wq3', 'wk3', 'wv3', 'wco3', 'bco', 'ln1_g', 'ln1_b',
                 'wqs3', 'wks3', 'wvs3', 'wso3', 'bso', 'ln2_g', 'ln2_b',
                 'w1', 'b1', 'w2', 'b2']


def perceiver_block(latents, inputs, prepared, nheads, batch_block=None):
    B, L, D = latents.shape
    _, S, Din = inputs.shape
    bb = B if batch_block is None else batch_block
    assert B % bb == 0
    nb = B // bb
    q = prepared

    def full_spec(a):
        nd = a.ndim
        return pl.BlockSpec(a.shape, lambda b, _nd=nd: (0,) * _nd)   # resident weights

    in_specs = ([pl.BlockSpec((bb, L, D), lambda b: (b, 0, 0)),
                 pl.BlockSpec((bb, S, Din), lambda b: (b, 0, 0))]
                + [full_spec(q[k]) for k in _WEIGHT_ORDER])

    kernel = functools.partial(perceiver_block_kernel, nheads)

    return pl.pallas_call(
        kernel,
        out_shape=jax.ShapeDtypeStruct((B, L, D), latents.dtype),
        grid_spec=pltpu.PrefetchScalarGridSpec(
            num_scalar_prefetch=0,
            grid=(nb,),
            in_specs=in_specs,
            out_specs=pl.BlockSpec((bb, L, D), lambda b: (b, 0, 0)),
        ),
        compiler_params=pltpu.CompilerParams(
            dimension_semantics=("parallel",)),
    )(latents, inputs, *[q[k] for k in _WEIGHT_ORDER])


# -------------------- pure-JAX reference (for correctness check) --------------------

def _ref_layer_norm(x, g, b, eps=1e-5):
    mean = jnp.mean(x, axis=-1, keepdims=True)
    var = jnp.mean((x - mean) ** 2, axis=-1, keepdims=True)
    return (x - mean) / jnp.sqrt(var + eps) * g + b


def _ref_attn(q, k, v, hd):
    w = jnp.einsum('bhqd,bhkd->bhqk', q, k) / (hd ** 0.5)
    w = jax.nn.softmax(w, axis=-1)
    return jnp.einsum('bhqk,bhkd->bhqd', w, v)


def perceiver_block_ref(latents, inputs, p, nheads):
    B, L, D = latents.shape
    _, S, Din = inputs.shape
    hd = D // nheads

    q = (latents @ p['wq']).reshape(B, L, nheads, hd).transpose(0, 2, 1, 3)
    kv = (inputs @ p['wkv']).reshape(B, S, nheads, 2 * hd).transpose(0, 2, 1, 3)
    k, v = kv[..., :hd], kv[..., hd:]
    a = _ref_attn(q, k, v, hd).transpose(0, 2, 1, 3).reshape(B, L, D)
    cross = a @ p['wco'] + p['bco'][0]
    lat1 = _ref_layer_norm(cross + latents, p['ln1_g'][0], p['ln1_b'][0])

    qkv = (lat1 @ p['wqkv']).reshape(B, L, nheads, 3 * hd).transpose(0, 2, 1, 3)
    q, k, v = qkv[..., :hd], qkv[..., hd:2 * hd], qkv[..., 2 * hd:]
    a = _ref_attn(q, k, v, hd).transpose(0, 2, 1, 3).reshape(B, L, D)
    self_att = a @ p['wso'] + p['bso'][0]
    lat2 = _ref_layer_norm(self_att + lat1, p['ln2_g'][0], p['ln2_b'][0])

    h = jax.nn.relu(lat2 @ p['w1'] + p['b1'][0])
    ff = h @ p['w2'] + p['b2'][0]
    return lat2 + ff


# -------------------- main --------------------

if __name__ == "__main__":
    B, L, S = 2, 8, 16          # batch, latent_len, input seq_len
    D, Din = 32, 16             # latent_dim, input_dim
    NHEADS, FF = 4, 64          # nheads, ff_hidden

    key = jax.random.PRNGKey(0)
    ks = jax.random.split(key, 16)

    def uni(k, shape, fan_in):
        bound = 1.0 / np.sqrt(fan_in)
        return jax.random.uniform(k, shape, jnp.float32, -bound, bound)

    # Weights stored as (in, out) — i.e. transpose of PyTorch's (out, in).
    params = {
        'wq':   uni(ks[0], (D, D), D),
        'wkv':  uni(ks[1], (Din, 2 * D), Din),
        'wco':  uni(ks[2], (D, D), D),
        'bco':  uni(ks[3], (1, D), D),
        'ln1_g': jnp.ones((1, D), jnp.float32),
        'ln1_b': jnp.zeros((1, D), jnp.float32),
        'wqkv': uni(ks[4], (D, 3 * D), D),
        'wso':  uni(ks[5], (D, D), D),
        'bso':  uni(ks[6], (1, D), D),
        'ln2_g': jnp.ones((1, D), jnp.float32),
        'ln2_b': jnp.zeros((1, D), jnp.float32),
        'w1':   uni(ks[7], (D, FF), D),
        'b1':   uni(ks[8], (1, FF), D),
        'w2':   uni(ks[9], (FF, D), FF),
        'b2':   uni(ks[10], (1, D), FF),
    }

    latents = jax.random.normal(ks[11], (B, L, D), jnp.float32)
    inputs = jax.random.normal(ks[12], (B, S, Din), jnp.float32)

    prepared = prepare_params(params, NHEADS)           # one-time weight transform

    out = perceiver_block(latents, inputs, prepared, NHEADS)
    out = jax.block_until_ready(out)

    ref = perceiver_block_ref(latents, inputs, params, NHEADS)
    # bf16 matmul operands + approx reciprocal -> looser tolerance vs the f32 reference.
    np.testing.assert_allclose(np.asarray(out), np.asarray(ref), rtol=5e-2, atol=5e-2)

    print("KERNEL_OK")
</pallas_src>

<mosaic_0001>
module attributes {stable_mosaic.version = 11 : i64} {
  func.func @perceiver_block_kernel(%arg0: i32, %arg1: memref<2x8x32xf32, #tpu.memory_space<vmem>>, %arg2: memref<2x16x16xf32, #tpu.memory_space<vmem>>, %arg3: memref<4x32x8xbf16, #tpu.memory_space<vmem>>, %arg4: memref<4x16x8xbf16, #tpu.memory_space<vmem>>, %arg5: memref<4x16x8xbf16, #tpu.memory_space<vmem>>, %arg6: memref<4x8x32xbf16, #tpu.memory_space<vmem>>, %arg7: memref<1x32xf32, #tpu.memory_space<vmem>>, %arg8: memref<1x32xf32, #tpu.memory_space<vmem>>, %arg9: memref<1x32xf32, #tpu.memory_space<vmem>>, %arg10: memref<4x32x8xbf16, #tpu.memory_space<vmem>>, %arg11: memref<4x32x8xbf16, #tpu.memory_space<vmem>>, %arg12: memref<4x32x8xbf16, #tpu.memory_space<vmem>>, %arg13: memref<4x8x32xbf16, #tpu.memory_space<vmem>>, %arg14: memref<1x32xf32, #tpu.memory_space<vmem>>, %arg15: memref<1x32xf32, #tpu.memory_space<vmem>>, %arg16: memref<1x32xf32, #tpu.memory_space<vmem>>, %arg17: memref<32x64xbf16, #tpu.memory_space<vmem>>, %arg18: memref<1x64xf32, #tpu.memory_space<vmem>>, %arg19: memref<64x32xbf16, #tpu.memory_space<vmem>>, %arg20: memref<1x32xf32, #tpu.memory_space<vmem>>, %arg21: memref<2x8x32xf32, #tpu.memory_space<vmem>>) attributes {dimension_semantics = [#tpu.dimension_semantics<parallel>], iteration_bounds = array<i64: 1>, scalar_prefetch = 0 : i64, scratch_operands = 0 : i64, tpu.core_type = #tpu.core_type<tc>, window_params = [{transform_indices = @transform_0, window_bounds = array<i64: 2, 8, 32>}, {transform_indices = @transform_1, window_bounds = array<i64: 2, 16, 16>}, {pipeline_mode = #tpu.pipeline_mode<synchronous>, transform_indices = @transform_2, window_bounds = array<i64: 4, 32, 8>}, {pipeline_mode = #tpu.pipeline_mode<synchronous>, transform_indices = @transform_3, window_bounds = array<i64: 4, 16, 8>}, {pipeline_mode = #tpu.pipeline_mode<synchronous>, transform_indices = @transform_4, window_bounds = array<i64: 4, 16, 8>}, {pipeline_mode = #tpu.pipeline_mode<synchronous>, transform_indices = @transform_5, window_bounds = array<i64: 4, 8, 32>}, {pipeline_mode = #tpu.pipeline_mode<synchronous>, transform_indices = @transform_6, window_bounds = array<i64: 1, 32>}, {pipeline_mode = #tpu.pipeline_mode<synchronous>, transform_indices = @transform_7, window_bounds = array<i64: 1, 32>}, {pipeline_mode = #tpu.pipeline_mode<synchronous>, transform_indices = @transform_8, window_bounds = array<i64: 1, 32>}, {pipeline_mode = #tpu.pipeline_mode<synchronous>, transform_indices = @transform_9, window_bounds = array<i64: 4, 32, 8>}, {pipeline_mode = #tpu.pipeline_mode<synchronous>, transform_indices = @transform_10, window_bounds = array<i64: 4, 32, 8>}, {pipeline_mode = #tpu.pipeline_mode<synchronous>, transform_indices = @transform_11, window_bounds = array<i64: 4, 32, 8>}, {pipeline_mode = #tpu.pipeline_mode<synchronous>, transform_indices = @transform_12, window_bounds = array<i64: 4, 8, 32>}, {pipeline_mode = #tpu.pipeline_mode<synchronous>, transform_indices = @transform_13, window_bounds = array<i64: 1, 32>}, {pipeline_mode = #tpu.pipeline_mode<synchronous>, transform_indices = @transform_14, window_bounds = array<i64: 1, 32>}, {pipeline_mode = #tpu.pipeline_mode<synchronous>, transform_indices = @transform_15, window_bounds = array<i64: 1, 32>}, {pipeline_mode = #tpu.pipeline_mode<synchronous>, transform_indices = @transform_16, window_bounds = array<i64: 32, 64>}, {pipeline_mode = #tpu.pipeline_mode<synchronous>, transform_indices = @transform_17, window_bounds = array<i64: 1, 64>}, {pipeline_mode = #tpu.pipeline_mode<synchronous>, transform_indices = @transform_18, window_bounds = array<i64: 64, 32>}, {pipeline_mode = #tpu.pipeline_mode<synchronous>, transform_indices = @transform_19, window_bounds = array<i64: 1, 32>}, {transform_indices = @transform_20, window_bounds = array<i64: 2, 8, 32>}]} {
    %c0 = arith.constant 0 : index
    %c0_0 = arith.constant 0 : index
    %c0_1 = arith.constant 0 : index
    %0 = vector.load %arg1[%c0, %c0_0, %c0_1] : memref<2x8x32xf32, #tpu.memory_space<vmem>>, vector<2x8x32xf32>
    %1 = arith.truncf %0 : vector<2x8x32xf32> to vector<2x8x32xbf16>
    %c0_2 = arith.constant 0 : index
    %c0_3 = arith.constant 0 : index
    %c0_4 = arith.constant 0 : index
    %2 = vector.load %arg2[%c0_2, %c0_3, %c0_4] : memref<2x16x16xf32, #tpu.memory_space<vmem>>, vector<2x16x16xf32>
    %3 = arith.truncf %2 : vector<2x16x16xf32> to vector<2x16x16xbf16>
    %4 = vector.shape_cast %1 : vector<2x8x32xbf16> to vector<2x1x8x32xbf16>
    %5 = vector.shape_cast %4 : vector<2x1x8x32xbf16> to vector<2x1x8x32xbf16>
    %6 = vector.broadcast %5 : vector<2x1x8x32xbf16> to vector<2x4x8x32xbf16>
    %7 = vector.shape_cast %6 : vector<2x4x8x32xbf16> to vector<8x8x32xbf16>
    %8 = vector.shape_cast %3 : vector<2x16x16xbf16> to vector<2x1x16x16xbf16>
    %9 = vector.shape_cast %8 : vector<2x1x16x16xbf16> to vector<2x1x16x16xbf16>
    %10 = vector.broadcast %9 : vector<2x1x16x16xbf16> to vector<2x4x16x16xbf16>
    %11 = vector.shape_cast %10 : vector<2x4x16x16xbf16> to vector<8x16x16xbf16>
    %c0_5 = arith.constant 0 : index
    %c0_6 = arith.constant 0 : index
    %c0_7 = arith.constant 0 : index
    %12 = vector.load %arg3[%c0_5, %c0_6, %c0_7] : memref<4x32x8xbf16, #tpu.memory_space<vmem>>, vector<4x32x8xbf16>
    %13 = vector.shape_cast %12 : vector<4x32x8xbf16> to vector<1x4x32x8xbf16>
    %14 = vector.shape_cast %13 : vector<1x4x32x8xbf16> to vector<1x4x32x8xbf16>
    %15 = vector.broadcast %14 : vector<1x4x32x8xbf16> to vector<2x4x32x8xbf16>
    %16 = vector.shape_cast %15 : vector<2x4x32x8xbf16> to vector<8x32x8xbf16>
    "tpu.trace_start"() <{level = 10 : i32, message = "nld,nde->nle"}> : () -> ()
    %cst = arith.constant dense<0.000000e+00> : vector<8x8x8xf32>
    %17 = tpu.matmul %7, %16, %cst {dimension_numbers = #tpu.dot_dimension_numbers<[2], [1], [1], [2], [0, 0, 0, 1, 1, 2], [0], [0]>} : vector<8x8x32xbf16>, vector<8x32x8xbf16>, vector<8x8x8xf32> -> vector<8x8x8xf32>
    "tpu.trace_stop"() : () -> ()
    %c0_8 = arith.constant 0 : index
    %c0_9 = arith.constant 0 : index
    %c0_10 = arith.constant 0 : index
    %18 = vector.load %arg4[%c0_8, %c0_9, %c0_10] : memref<4x16x8xbf16, #tpu.memory_space<vmem>>, vector<4x16x8xbf16>
    %19 = vector.shape_cast %18 : vector<4x16x8xbf16> to vector<1x4x16x8xbf16>
    %20 = vector.shape_cast %19 : vector<1x4x16x8xbf16> to vector<1x4x16x8xbf16>
    %21 = vector.broadcast %20 : vector<1x4x16x8xbf16> to vector<2x4x16x8xbf16>
    %22 = vector.shape_cast %21 : vector<2x4x16x8xbf16> to vector<8x16x8xbf16>
    "tpu.trace_start"() <{level = 10 : i32, message = "nsd,nde->nse"}> : () -> ()
    %cst_11 = arith.constant dense<0.000000e+00> : vector<8x16x8xf32>
    %23 = tpu.matmul %11, %22, %cst_11 {dimension_numbers = #tpu.dot_dimension_numbers<[2], [1], [1], [2], [0, 0, 0, 1, 1, 2], [0], [0]>} : vector<8x16x16xbf16>, vector<8x16x8xbf16>, vector<8x16x8xf32> -> vector<8x16x8xf32>
    "tpu.trace_stop"() : () -> ()
    %c0_12 = arith.constant 0 : index
    %c0_13 = arith.constant 0 : index
    %c0_14 = arith.constant 0 : index
    %24 = vector.load %arg5[%c0_12, %c0_13, %c0_14] : memref<4x16x8xbf16, #tpu.memory_space<vmem>>, vector<4x16x8xbf16>
    %25 = vector.shape_cast %24 : vector<4x16x8xbf16> to vector<1x4x16x8xbf16>
    %26 = vector.shape_cast %25 : vector<1x4x16x8xbf16> to vector<1x4x16x8xbf16>
    %27 = vector.broadcast %26 : vector<1x4x16x8xbf16> to vector<2x4x16x8xbf16>
    %28 = vector.shape_cast %27 : vector<2x4x16x8xbf16> to vector<8x16x8xbf16>
    "tpu.trace_start"() <{level = 10 : i32, message = "nsd,nde->nse"}> : () -> ()
    %cst_15 = arith.constant dense<0.000000e+00> : vector<8x16x8xf32>
    %29 = tpu.matmul %11, %28, %cst_15 {dimension_numbers = #tpu.dot_dimension_numbers<[2], [1], [1], [2], [0, 0, 0, 1, 1, 2], [0], [0]>} : vector<8x16x16xbf16>, vector<8x16x8xbf16>, vector<8x16x8xf32> -> vector<8x16x8xf32>
    "tpu.trace_stop"() : () -> ()
    %30 = arith.truncf %17 : vector<8x8x8xf32> to vector<8x8x8xbf16>
    %31 = arith.truncf %23 : vector<8x16x8xf32> to vector<8x16x8xbf16>
    "tpu.trace_start"() <{level = 10 : i32, message = "nle,nse->nls"}> : () -> ()
    %cst_16 = arith.constant dense<0.000000e+00> : vector<8x8x16xf32>
    %32 = tpu.matmul %30, %31, %cst_16 {dimension_numbers = #tpu.dot_dimension_numbers<[2], [2], [1], [1], [0, 0, 0, 1, 1, 1], [0], [0]>} : vector<8x8x8xbf16>, vector<8x16x8xbf16>, vector<8x8x16xf32> -> vector<8x8x16xf32>
    "tpu.trace_stop"() : () -> ()
    %cst_17 = arith.constant dense<0xFF800000> : vector<8x8xf32>
    %33 = vector.multi_reduction <maximumf>, %32, %cst_17 [2] : vector<8x8x16xf32> to vector<8x8xf32>
    %34 = vector.shape_cast %33 : vector<8x8xf32> to vector<8x8x1xf32>
    %35 = vector.broadcast %34 : vector<8x8x1xf32> to vector<8x8x16xf32>
    %36 = arith.subf %32, %35 : vector<8x8x16xf32>
    %37 = math.exp %36 : vector<8x8x16xf32>
    %cst_18 = arith.constant dense<0.000000e+00> : vector<8x8xf32>
    %38 = vector.multi_reduction <add>, %37, %cst_18 [2] : vector<8x8x16xf32> to vector<8x8xf32>
    %39 = vector.shape_cast %38 : vector<8x8xf32> to vector<8x8x1xf32>
    %40 = tpu.reciprocal %39 {approx = true} : vector<8x8x1xf32> -> vector<8x8x1xf32>
    %41 = vector.broadcast %40 : vector<8x8x1xf32> to vector<8x8x16xf32>
    %42 = arith.mulf %37, %41 : vector<8x8x16xf32>
    %43 = arith.truncf %42 : vector<8x8x16xf32> to vector<8x8x16xbf16>
    %44 = arith.truncf %29 : vector<8x16x8xf32> to vector<8x16x8xbf16>
    "tpu.trace_start"() <{level = 10 : i32, message = "nls,nse->nle"}> : () -> ()
    %cst_19 = arith.constant dense<0.000000e+00> : vector<8x8x8xf32>
    %45 = tpu.matmul %43, %44, %cst_19 {dimension_numbers = #tpu.dot_dimension_numbers<[2], [1], [1], [2], [0, 0, 0, 1, 1, 2], [0], [0]>} : vector<8x8x16xbf16>, vector<8x16x8xbf16>, vector<8x8x8xf32> -> vector<8x8x8xf32>
    "tpu.trace_stop"() : () -> ()
    %46 = arith.truncf %45 : vector<8x8x8xf32> to vector<8x8x8xbf16>
    %c0_20 = arith.constant 0 : index
    %c0_21 = arith.constant 0 : index
    %c0_22 = arith.constant 0 : index
    %47 = vector.load %arg6[%c0_20, %c0_21, %c0_22] : memref<4x8x32xbf16, #tpu.memory_space<vmem>>, vector<4x8x32xbf16>
    %48 = vector.shape_cast %47 : vector<4x8x32xbf16> to vector<1x4x8x32xbf16>
    %49 = vector.shape_cast %48 : vector<1x4x8x32xbf16> to vector<1x4x8x32xbf16>
    %50 = vector.broadcast %49 : vector<1x4x8x32xbf16> to vector<2x4x8x32xbf16>
    %51 = vector.shape_cast %50 : vector<2x4x8x32xbf16> to vector<8x8x32xbf16>
    "tpu.trace_start"() <{level = 10 : i32, message = "nle,nef->nlf"}> : () -> ()
    %cst_23 = arith.constant dense<0.000000e+00> : vector<8x8x32xf32>
    %52 = tpu.matmul %46, %51, %cst_23 {dimension_numbers = #tpu.dot_dimension_numbers<[2], [1], [1], [2], [0, 0, 0, 1, 1, 2], [0], [0]>} : vector<8x8x8xbf16>, vector<8x8x32xbf16>, vector<8x8x32xf32> -> vector<8x8x32xf32>
    "tpu.trace_stop"() : () -> ()
    %53 = vector.shape_cast %52 : vector<8x8x32xf32> to vector<2x4x8x32xf32>
    %54 = vector.extract_strided_slice %53 {offsets = [0, 0, 0, 0], sizes = [2, 1, 8, 32], strides = [1, 1, 1, 1]} : vector<2x4x8x32xf32> to vector<2x1x8x32xf32>
    %55 = vector.shape_cast %54 : vector<2x1x8x32xf32> to vector<2x8x32xf32>
    %56 = vector.extract_strided_slice %53 {offsets = [0, 1, 0, 0], sizes = [2, 1, 8, 32], strides = [1, 1, 1, 1]} : vector<2x4x8x32xf32> to vector<2x1x8x32xf32>
    %57 = vector.shape_cast %56 : vector<2x1x8x32xf32> to vector<2x8x32xf32>
    %58 = arith.addf %55, %57 : vector<2x8x32xf32>
    %59 = vector.extract_strided_slice %53 {offsets = [0, 2, 0, 0], sizes = [2, 1, 8, 32], strides = [1, 1, 1, 1]} : vector<2x4x8x32xf32> to vector<2x1x8x32xf32>
    %60 = vector.shape_cast %59 : vector<2x1x8x32xf32> to vector<2x8x32xf32>
    %61 = arith.addf %58, %60 : vector<2x8x32xf32>
    %62 = vector.extract_strided_slice %53 {offsets = [0, 3, 0, 0], sizes = [2, 1, 8, 32], strides = [1, 1, 1, 1]} : vector<2x4x8x32xf32> to vector<2x1x8x32xf32>
    %63 = vector.shape_cast %62 : vector<2x1x8x32xf32> to vector<2x8x32xf32>
    %64 = arith.addf %61, %63 : vector<2x8x32xf32>
    %c0_24 = arith.constant 0 : index
    %c0_25 = arith.constant 0 : index
    %65 = vector.load %arg7[%c0_24, %c0_25] : memref<1x32xf32, #tpu.memory_space<vmem>>, vector<1x32xf32>
    %66 = vector.shape_cast %65 : vector<1x32xf32> to vector<1x1x32xf32>
    %67 = vector.broadcast %66 : vector<1x1x32xf32> to vector<2x8x32xf32>
    %68 = arith.addf %64, %67 : vector<2x8x32xf32>
    %69 = arith.addf %68, %0 : vector<2x8x32xf32>
    %cst_26 = arith.constant dense<0.000000e+00> : vector<2x8xf32>
    %70 = vector.multi_reduction <add>, %69, %cst_26 [2] : vector<2x8x32xf32> to vector<2x8xf32>
    %71 = vector.shape_cast %70 : vector<2x8xf32> to vector<2x8x1xf32>
    %cst_27 = arith.constant 3.200000e+01 : f32
    %72 = vector.broadcast %cst_27 : f32 to vector<2x8x1xf32>
    %73 = arith.divf %71, %72 : vector<2x8x1xf32>
    %74 = vector.broadcast %73 : vector<2x8x1xf32> to vector<2x8x32xf32>
    %75 = arith.subf %69, %74 : vector<2x8x32xf32>
    %76 = arith.mulf %75, %75 : vector<2x8x32xf32>
    %cst_28 = arith.constant dense<0.000000e+00> : vector<2x8xf32>
    %77 = vector.multi_reduction <add>, %76, %cst_28 [2] : vector<2x8x32xf32> to vector<2x8xf32>
    %78 = vector.shape_cast %77 : vector<2x8xf32> to vector<2x8x1xf32>
    %cst_29 = arith.constant 3.200000e+01 : f32
    %79 = vector.broadcast %cst_29 : f32 to vector<2x8x1xf32>
    %80 = arith.divf %78, %79 : vector<2x8x1xf32>
    %81 = vector.broadcast %73 : vector<2x8x1xf32> to vector<2x8x32xf32>
    %82 = arith.subf %69, %81 : vector<2x8x32xf32>
    %cst_30 = arith.constant 9.99999974E-6 : f32
    %83 = vector.broadcast %cst_30 : f32 to vector<2x8x1xf32>
    %84 = arith.addf %80, %83 : vector<2x8x1xf32>
    %85 = math.rsqrt %84 : vector<2x8x1xf32>
    %86 = vector.broadcast %85 : vector<2x8x1xf32> to vector<2x8x32xf32>
    %87 = arith.mulf %82, %86 : vector<2x8x32xf32>
    %c0_31 = arith.constant 0 : index
    %c0_32 = arith.constant 0 : index
    %88 = vector.load %arg8[%c0_31, %c0_32] : memref<1x32xf32, #tpu.memory_space<vmem>>, vector<1x32xf32>
    %89 = vector.shape_cast %88 : vector<1x32xf32> to vector<1x1x32xf32>
    %90 = vector.broadcast %89 : vector<1x1x32xf32> to vector<2x8x32xf32>
    %91 = arith.mulf %87, %90 : vector<2x8x32xf32>
    %c0_33 = arith.constant 0 : index
    %c0_34 = arith.constant 0 : index
    %92 = vector.load %arg9[%c0_33, %c0_34] : memref<1x32xf32, #tpu.memory_space<vmem>>, vector<1x32xf32>
    %93 = vector.shape_cast %92 : vector<1x32xf32> to vector<1x1x32xf32>
    %94 = vector.broadcast %93 : vector<1x1x32xf32> to vector<2x8x32xf32>
    %95 = arith.addf %91, %94 : vector<2x8x32xf32>
    %96 = arith.truncf %95 : vector<2x8x32xf32> to vector<2x8x32xbf16>
    %97 = vector.shape_cast %96 : vector<2x8x32xbf16> to vector<2x1x8x32xbf16>
    %98 = vector.shape_cast %97 : vector<2x1x8x32xbf16> to vector<2x1x8x32xbf16>
    %99 = vector.broadcast %98 : vector<2x1x8x32xbf16> to vector<2x4x8x32xbf16>
    %100 = vector.shape_cast %99 : vector<2x4x8x32xbf16> to vector<8x8x32xbf16>
    %c0_35 = arith.constant 0 : index
    %c0_36 = arith.constant 0 : index
    %c0_37 = arith.constant 0 : index
    %101 = vector.load %arg10[%c0_35, %c0_36, %c0_37] : memref<4x32x8xbf16, #tpu.memory_space<vmem>>, vector<4x32x8xbf16>
    %102 = vector.shape_cast %101 : vector<4x32x8xbf16> to vector<1x4x32x8xbf16>
    %103 = vector.shape_cast %102 : vector<1x4x32x8xbf16> to vector<1x4x32x8xbf16>
    %104 = vector.broadcast %103 : vector<1x4x32x8xbf16> to vector<2x4x32x8xbf16>
    %105 = vector.shape_cast %104 : vector<2x4x32x8xbf16> to vector<8x32x8xbf16>
    "tpu.trace_start"() <{level = 10 : i32, message = "nld,nde->nle"}> : () -> ()
    %cst_38 = arith.constant dense<0.000000e+00> : vector<8x8x8xf32>
    %106 = tpu.matmul %100, %105, %cst_38 {dimension_numbers = #tpu.dot_dimension_numbers<[2], [1], [1], [2], [0, 0, 0, 1, 1, 2], [0], [0]>} : vector<8x8x32xbf16>, vector<8x32x8xbf16>, vector<8x8x8xf32> -> vector<8x8x8xf32>
    "tpu.trace_stop"() : () -> ()
    %c0_39 = arith.constant 0 : index
    %c0_40 = arith.constant 0 : index
    %c0_41 = arith.constant 0 : index
    %107 = vector.load %arg11[%c0_39, %c0_40, %c0_41] : memref<4x32x8xbf16, #tpu.memory_space<vmem>>, vector<4x32x8xbf16>
    %108 = vector.shape_cast %107 : vector<4x32x8xbf16> to vector<1x4x32x8xbf16>
    %109 = vector.shape_cast %108 : vector<1x4x32x8xbf16> to vector<1x4x32x8xbf16>
    %110 = vector.broadcast %109 : vector<1x4x32x8xbf16> to vector<2x4x32x8xbf16>
    %111 = vector.shape_cast %110 : vector<2x4x32x8xbf16> to vector<8x32x8xbf16>
    "tpu.trace_start"() <{level = 10 : i32, message = "nsd,nde->nse"}> : () -> ()
    %cst_42 = arith.constant dense<0.000000e+00> : vector<8x8x8xf32>
    %112 = tpu.matmul %100, %111, %cst_42 {dimension_numbers = #tpu.dot_dimension_numbers<[2], [1], [1], [2], [0, 0, 0, 1, 1, 2], [0], [0]>} : vector<8x8x32xbf16>, vector<8x32x8xbf16>, vector<8x8x8xf32> -> vector<8x8x8xf32>
    "tpu.trace_stop"() : () -> ()
    %c0_43 = arith.constant 0 : index
    %c0_44 = arith.constant 0 : index
    %c0_45 = arith.constant 0 : index
    %113 = vector.load %arg12[%c0_43, %c0_44, %c0_45] : memref<4x32x8xbf16, #tpu.memory_space<vmem>>, vector<4x32x8xbf16>
    %114 = vector.shape_cast %113 : vector<4x32x8xbf16> to vector<1x4x32x8xbf16>
    %115 = vector.shape_cast %114 : vector<1x4x32x8xbf16> to vector<1x4x32x8xbf16>
    %116 = vector.broadcast %115 : vector<1x4x32x8xbf16> to vector<2x4x32x8xbf16>
    %117 = vector.shape_cast %116 : vector<2x4x32x8xbf16> to vector<8x32x8xbf16>
    "tpu.trace_start"() <{level = 10 : i32, message = "nsd,nde->nse"}> : () -> ()
    %cst_46 = arith.constant dense<0.000000e+00> : vector<8x8x8xf32>
    %118 = tpu.matmul %100, %117, %cst_46 {dimension_numbers = #tpu.dot_dimension_numbers<[2], [1], [1], [2], [0, 0, 0, 1, 1, 2], [0], [0]>} : vector<8x8x32xbf16>, vector<8x32x8xbf16>, vector<8x8x8xf32> -> vector<8x8x8xf32>
    "tpu.trace_stop"() : () -> ()
    %119 = arith.truncf %106 : vector<8x8x8xf32> to vector<8x8x8xbf16>
    %120 = arith.truncf %112 : vector<8x8x8xf32> to vector<8x8x8xbf16>
    "tpu.trace_start"() <{level = 10 : i32, message = "nle,nse->nls"}> : () -> ()
    %cst_47 = arith.constant dense<0.000000e+00> : vector<8x8x8xf32>
    %121 = tpu.matmul %119, %120, %cst_47 {dimension_numbers = #tpu.dot_dimension_numbers<[2], [2], [1], [1], [0, 0, 0, 1, 1, 1], [0], [0]>} : vector<8x8x8xbf16>, vector<8x8x8xbf16>, vector<8x8x8xf32> -> vector<8x8x8xf32>
    "tpu.trace_stop"() : () -> ()
    %cst_48 = arith.constant dense<0xFF800000> : vector<8x8xf32>
    %122 = vector.multi_reduction <maximumf>, %121, %cst_48 [2] : vector<8x8x8xf32> to vector<8x8xf32>
    %123 = vector.shape_cast %122 : vector<8x8xf32> to vector<8x8x1xf32>
    %124 = vector.broadcast %123 : vector<8x8x1xf32> to vector<8x8x8xf32>
    %125 = arith.subf %121, %124 : vector<8x8x8xf32>
    %126 = math.exp %125 : vector<8x8x8xf32>
    %cst_49 = arith.constant dense<0.000000e+00> : vector<8x8xf32>
    %127 = vector.multi_reduction <add>, %126, %cst_49 [2] : vector<8x8x8xf32> to vector<8x8xf32>
    %128 = vector.shape_cast %127 : vector<8x8xf32> to vector<8x8x1xf32>
    %129 = tpu.reciprocal %128 {approx = true} : vector<8x8x1xf32> -> vector<8x8x1xf32>
    %130 = vector.broadcast %129 : vector<8x8x1xf32> to vector<8x8x8xf32>
    %131 = arith.mulf %126, %130 : vector<8x8x8xf32>
    %132 = arith.truncf %131 : vector<8x8x8xf32> to vector<8x8x8xbf16>
    %133 = arith.truncf %118 : vector<8x8x8xf32> to vector<8x8x8xbf16>
    "tpu.trace_start"() <{level = 10 : i32, message = "nls,nse->nle"}> : () -> ()
    %cst_50 = arith.constant dense<0.000000e+00> : vector<8x8x8xf32>
    %134 = tpu.matmul %132, %133, %cst_50 {dimension_numbers = #tpu.dot_dimension_numbers<[2], [1], [1], [2], [0, 0, 0, 1, 1, 2], [0], [0]>} : vector<8x8x8xbf16>, vector<8x8x8xbf16>, vector<8x8x8xf32> -> vector<8x8x8xf32>
    "tpu.trace_stop"() : () -> ()
    %135 = arith.truncf %134 : vector<8x8x8xf32> to vector<8x8x8xbf16>
    %c0_51 = arith.constant 0 : index
    %c0_52 = arith.constant 0 : index
    %c0_53 = arith.constant 0 : index
    %136 = vector.load %arg13[%c0_51, %c0_52, %c0_53] : memref<4x8x32xbf16, #tpu.memory_space<vmem>>, vector<4x8x32xbf16>
    %137 = vector.shape_cast %136 : vector<4x8x32xbf16> to vector<1x4x8x32xbf16>
    %138 = vector.shape_cast %137 : vector<1x4x8x32xbf16> to vector<1x4x8x32xbf16>
    %139 = vector.broadcast %138 : vector<1x4x8x32xbf16> to vector<2x4x8x32xbf16>
    %140 = vector.shape_cast %139 : vector<2x4x8x32xbf16> to vector<8x8x32xbf16>
    "tpu.trace_start"() <{level = 10 : i32, message = "nle,nef->nlf"}> : () -> ()
    %cst_54 = arith.constant dense<0.000000e+00> : vector<8x8x32xf32>
    %141 = tpu.matmul %135, %140, %cst_54 {dimension_numbers = #tpu.dot_dimension_numbers<[2], [1], [1], [2], [0, 0, 0, 1, 1, 2], [0], [0]>} : vector<8x8x8xbf16>, vector<8x8x32xbf16>, vector<8x8x32xf32> -> vector<8x8x32xf32>
    "tpu.trace_stop"() : () -> ()
    %142 = vector.shape_cast %141 : vector<8x8x32xf32> to vector<2x4x8x32xf32>
    %143 = vector.extract_strided_slice %142 {offsets = [0, 0, 0, 0], sizes = [2, 1, 8, 32], strides = [1, 1, 1, 1]} : vector<2x4x8x32xf32> to vector<2x1x8x32xf32>
    %144 = vector.shape_cast %143 : vector<2x1x8x32xf32> to vector<2x8x32xf32>
    %145 = vector.extract_strided_slice %142 {offsets = [0, 1, 0, 0], sizes = [2, 1, 8, 32], strides = [1, 1, 1, 1]} : vector<2x4x8x32xf32> to vector<2x1x8x32xf32>
    %146 = vector.shape_cast %145 : vector<2x1x8x32xf32> to vector<2x8x32xf32>
    %147 = arith.addf %144, %146 : vector<2x8x32xf32>
    %148 = vector.extract_strided_slice %142 {offsets = [0, 2, 0, 0], sizes = [2, 1, 8, 32], strides = [1, 1, 1, 1]} : vector<2x4x8x32xf32> to vector<2x1x8x32xf32>
    %149 = vector.shape_cast %148 : vector<2x1x8x32xf32> to vector<2x8x32xf32>
    %150 = arith.addf %147, %149 : vector<2x8x32xf32>
    %151 = vector.extract_strided_slice %142 {offsets = [0, 3, 0, 0], sizes = [2, 1, 8, 32], strides = [1, 1, 1, 1]} : vector<2x4x8x32xf32> to vector<2x1x8x32xf32>
    %152 = vector.shape_cast %151 : vector<2x1x8x32xf32> to vector<2x8x32xf32>
    %153 = arith.addf %150, %152 : vector<2x8x32xf32>
    %c0_55 = arith.constant 0 : index
    %c0_56 = arith.constant 0 : index
    %154 = vector.load %arg14[%c0_55, %c0_56] : memref<1x32xf32, #tpu.memory_space<vmem>>, vector<1x32xf32>
    %155 = vector.shape_cast %154 : vector<1x32xf32> to vector<1x1x32xf32>
    %156 = vector.broadcast %155 : vector<1x1x32xf32> to vector<2x8x32xf32>
    %157 = arith.addf %153, %156 : vector<2x8x32xf32>
    %158 = arith.addf %157, %95 : vector<2x8x32xf32>
    %cst_57 = arith.constant dense<0.000000e+00> : vector<2x8xf32>
    %159 = vector.multi_reduction <add>, %158, %cst_57 [2] : vector<2x8x32xf32> to vector<2x8xf32>
    %160 = vector.shape_cast %159 : vector<2x8xf32> to vector<2x8x1xf32>
    %cst_58 = arith.constant 3.200000e+01 : f32
    %161 = vector.broadcast %cst_58 : f32 to vector<2x8x1xf32>
    %162 = arith.divf %160, %161 : vector<2x8x1xf32>
    %163 = vector.broadcast %162 : vector<2x8x1xf32> to vector<2x8x32xf32>
    %164 = arith.subf %158, %163 : vector<2x8x32xf32>
    %165 = arith.mulf %164, %164 : vector<2x8x32xf32>
    %cst_59 = arith.constant dense<0.000000e+00> : vector<2x8xf32>
    %166 = vector.multi_reduction <add>, %165, %cst_59 [2] : vector<2x8x32xf32> to vector<2x8xf32>
    %167 = vector.shape_cast %166 : vector<2x8xf32> to vector<2x8x1xf32>
    %cst_60 = arith.constant 3.200000e+01 : f32
    %168 = vector.broadcast %cst_60 : f32 to vector<2x8x1xf32>
    %169 = arith.divf %167, %168 : vector<2x8x1xf32>
    %170 = vector.broadcast %162 : vector<2x8x1xf32> to vector<2x8x32xf32>
    %171 = arith.subf %158, %170 : vector<2x8x32xf32>
    %cst_61 = arith.constant 9.99999974E-6 : f32
    %172 = vector.broadcast %cst_61 : f32 to vector<2x8x1xf32>
    %173 = arith.addf %169, %172 : vector<2x8x1xf32>
    %174 = math.rsqrt %173 : vector<2x8x1xf32>
    %175 = vector.broadcast %174 : vector<2x8x1xf32> to vector<2x8x32xf32>
    %176 = arith.mulf %171, %175 : vector<2x8x32xf32>
    %c0_62 = arith.constant 0 : index
    %c0_63 = arith.constant 0 : index
    %177 = vector.load %arg15[%c0_62, %c0_63] : memref<1x32xf32, #tpu.memory_space<vmem>>, vector<1x32xf32>
    %178 = vector.shape_cast %177 : vector<1x32xf32> to vector<1x1x32xf32>
    %179 = vector.broadcast %178 : vector<1x1x32xf32> to vector<2x8x32xf32>
    %180 = arith.mulf %176, %179 : vector<2x8x32xf32>
    %c0_64 = arith.constant 0 : index
    %c0_65 = arith.constant 0 : index
    %181 = vector.load %arg16[%c0_64, %c0_65] : memref<1x32xf32, #tpu.memory_space<vmem>>, vector<1x32xf32>
    %182 = vector.shape_cast %181 : vector<1x32xf32> to vector<1x1x32xf32>
    %183 = vector.broadcast %182 : vector<1x1x32xf32> to vector<2x8x32xf32>
    %184 = arith.addf %180, %183 : vector<2x8x32xf32>
    %185 = vector.shape_cast %184 : vector<2x8x32xf32> to vector<16x32xf32>
    %186 = arith.truncf %185 : vector<16x32xf32> to vector<16x32xbf16>
    %c0_66 = arith.constant 0 : index
    %c0_67 = arith.constant 0 : index
    %187 = vector.load %arg17[%c0_66, %c0_67] : memref<32x64xbf16, #tpu.memory_space<vmem>>, vector<32x64xbf16>
    %cst_68 = arith.constant dense<0.000000e+00> : vector<16x64xf32>
    %188 = tpu.matmul %186, %187, %cst_68 {dimension_numbers = #tpu.dot_dimension_numbers<[1], [0], [0], [1], [0, 0, 1, 1], [], []>} : vector<16x32xbf16>, vector<32x64xbf16>, vector<16x64xf32> -> vector<16x64xf32>
    %c0_69 = arith.constant 0 : index
    %c0_70 = arith.constant 0 : index
    %189 = vector.load %arg18[%c0_69, %c0_70] : memref<1x64xf32, #tpu.memory_space<vmem>>, vector<1x64xf32>
    %190 = vector.broadcast %189 : vector<1x64xf32> to vector<16x64xf32>
    %191 = arith.addf %188, %190 : vector<16x64xf32>
    %cst_71 = arith.constant 0.000000e+00 : f32
    %192 = vector.broadcast %cst_71 : f32 to vector<16x64xf32>
    %193 = arith.maximumf %191, %192 : vector<16x64xf32>
    %194 = arith.truncf %193 : vector<16x64xf32> to vector<16x64xbf16>
    %c0_72 = arith.constant 0 : index
    %c0_73 = arith.constant 0 : index
    %195 = vector.load %arg19[%c0_72, %c0_73] : memref<64x32xbf16, #tpu.memory_space<vmem>>, vector<64x32xbf16>
    %cst_74 = arith.constant dense<0.000000e+00> : vector<16x32xf32>
    %196 = tpu.matmul %194, %195, %cst_74 {dimension_numbers = #tpu.dot_dimension_numbers<[1], [0], [0], [1], [0, 0, 1, 1], [], []>} : vector<16x64xbf16>, vector<64x32xbf16>, vector<16x32xf32> -> vector<16x32xf32>
    %c0_75 = arith.constant 0 : index
    %c0_76 = arith.constant 0 : index
    %197 = vector.load %arg20[%c0_75, %c0_76] : memref<1x32xf32, #tpu.memory_space<vmem>>, vector<1x32xf32>
    %198 = vector.broadcast %197 : vector<1x32xf32> to vector<16x32xf32>
    %199 = arith.addf %196, %198 : vector<16x32xf32>
    %200 = vector.shape_cast %199 : vector<16x32xf32> to vector<2x8x32xf32>
    %201 = arith.addf %184, %200 : vector<2x8x32xf32>
    %c0_77 = arith.constant 0 : index
    %c0_78 = arith.constant 0 : index
    %c0_79 = arith.constant 0 : index
    %202 = vector.load %arg21[%c0_77, %c0_78, %c0_79] : memref<2x8x32xf32, #tpu.memory_space<vmem>>, vector<2x8x32xf32>
    tpu.vector_store %arg21[%c0_77, %c0_78, %c0_79], %201 {strides = array<i32>} : memref<2x8x32xf32, #tpu.memory_space<vmem>>, vector<2x8x32xf32>,
    return
  }
  func.func @transform_0(%arg0: i32) -> (i32, i32, i32) {
    %c0_i32 = arith.constant 0 : i32
    %c0_i32_0 = arith.constant 0 : i32
    %c0_i32_1 = arith.constant 0 : i32
    return %arg0, %c0_i32, %c0_i32_0 : i32, i32, i32
  }
  func.func @transform_1(%arg0: i32) -> (i32, i32, i32) {
    %c0_i32 = arith.constant 0 : i32
    %c0_i32_0 = arith.constant 0 : i32
    %c0_i32_1 = arith.constant 0 : i32
    return %arg0, %c0_i32, %c0_i32_0 : i32, i32, i32
  }
  func.func @transform_2(%arg0: i32) -> (i32, i32, i32) {
    %c0_i32 = arith.constant 0 : i32
    %c0_i32_0 = arith.constant 0 : i32
    %c0_i32_1 = arith.constant 0 : i32
    %c0_i32_2 = arith.constant 0 : i32
    return %c0_i32, %c0_i32_0, %c0_i32_1 : i32, i32, i32
  }
  func.func @transform_3(%arg0: i32) -> (i32, i32, i32) {
    %c0_i32 = arith.constant 0 : i32
    %c0_i32_0 = arith.constant 0 : i32
    %c0_i32_1 = arith.constant 0 : i32
    %c0_i32_2 = arith.constant 0 : i32
    return %c0_i32, %c0_i32_0, %c0_i32_1 : i32, i32, i32
  }
  func.func @transform_4(%arg0: i32) -> (i32, i32, i32) {
    %c0_i32 = arith.constant 0 : i32
    %c0_i32_0 = arith.constant 0 : i32
    %c0_i32_1 = arith.constant 0 : i32
    %c0_i32_2 = arith.constant 0 : i32
    return %c0_i32, %c0_i32_0, %c0_i32_1 : i32, i32, i32
  }
  func.func @transform_5(%arg0: i32) -> (i32, i32, i32) {
    %c0_i32 = arith.constant 0 : i32
    %c0_i32_0 = arith.constant 0 : i32
    %c0_i32_1 = arith.constant 0 : i32
    %c0_i32_2 = arith.constant 0 : i32
    return %c0_i32, %c0_i32_0, %c0_i32_1 : i32, i32, i32
  }
  func.func @transform_6(%arg0: i32) -> (i32, i32) {
    %c0_i32 = arith.constant 0 : i32
    %c0_i32_0 = arith.constant 0 : i32
    %c0_i32_1 = arith.constant 0 : i32
    return %c0_i32, %c0_i32_0 : i32, i32
  }
  func.func @transform_7(%arg0: i32) -> (i32, i32) {
    %c0_i32 = arith.constant 0 : i32
    %c0_i32_0 = arith.constant 0 : i32
    %c0_i32_1 = arith.constant 0 : i32
    return %c0_i32, %c0_i32_0 : i32, i32
  }
  func.func @transform_8(%arg0: i32) -> (i32, i32) {
    %c0_i32 = arith.constant 0 : i32
    %c0_i32_0 = arith.constant 0 : i32
    %c0_i32_1 = arith.constant 0 : i32
    return %c0_i32, %c0_i32_0 : i32, i32
  }
  func.func @transform_9(%arg0: i32) -> (i32, i32, i32) {
    %c0_i32 = arith.constant 0 : i32
    %c0_i32_0 = arith.constant 0 : i32
    %c0_i32_1 = arith.constant 0 : i32
    %c0_i32_2 = arith.constant 0 : i32
    return %c0_i32, %c0_i32_0, %c0_i32_1 : i32, i32, i32
  }
  func.func @transform_10(%arg0: i32) -> (i32, i32, i32) {
    %c0_i32 = arith.constant 0 : i32
    %c0_i32_0 = arith.constant 0 : i32
    %c0_i32_1 = arith.constant 0 : i32
    %c0_i32_2 = arith.constant 0 : i32
    return %c0_i32, %c0_i32_0, %c0_i32_1 : i32, i32, i32
  }
  func.func @transform_11(%arg0: i32) -> (i32, i32, i32) {
    %c0_i32 = arith.constant 0 : i32
    %c0_i32_0 = arith.constant 0 : i32
    %c0_i32_1 = arith.constant 0 : i32
    %c0_i32_2 = arith.constant 0 : i32
    return %c0_i32, %c0_i32_0, %c0_i32_1 : i32, i32, i32
  }
  func.func @transform_12(%arg0: i32) -> (i32, i32, i32) {
    %c0_i32 = arith.constant 0 : i32
    %c0_i32_0 = arith.constant 0 : i32
    %c0_i32_1 = arith.constant 0 : i32
    %c0_i32_2 = arith.constant 0 : i32
    return %c0_i32, %c0_i32_0, %c0_i32_1 : i32, i32, i32
  }
  func.func @transform_13(%arg0: i32) -> (i32, i32) {
    %c0_i32 = arith.constant 0 : i32
    %c0_i32_0 = arith.constant 0 : i32
    %c0_i32_1 = arith.constant 0 : i32
    return %c0_i32, %c0_i32_0 : i32, i32
  }
  func.func @transform_14(%arg0: i32) -> (i32, i32) {
    %c0_i32 = arith.constant 0 : i32
    %c0_i32_0 = arith.constant 0 : i32
    %c0_i32_1 = arith.constant 0 : i32
    return %c0_i32, %c0_i32_0 : i32, i32
  }
  func.func @transform_15(%arg0: i32) -> (i32, i32) {
    %c0_i32 = arith.constant 0 : i32
    %c0_i32_0 = arith.constant 0 : i32
    %c0_i32_1 = arith.constant 0 : i32
    return %c0_i32, %c0_i32_0 : i32, i32
  }
  func.func @transform_16(%arg0: i32) -> (i32, i32) {
    %c0_i32 = arith.constant 0 : i32
    %c0_i32_0 = arith.constant 0 : i32
    %c0_i32_1 = arith.constant 0 : i32
    return %c0_i32, %c0_i32_0 : i32, i32
  }
  func.func @transform_17(%arg0: i32) -> (i32, i32) {
    %c0_i32 = arith.constant 0 : i32
    %c0_i32_0 = arith.constant 0 : i32
    %c0_i32_1 = arith.constant 0 : i32
    return %c0_i32, %c0_i32_0 : i32, i32
  }
  func.func @transform_18(%arg0: i32) -> (i32, i32) {
    %c0_i32 = arith.constant 0 : i32
    %c0_i32_0 = arith.constant 0 : i32
    %c0_i32_1 = arith.constant 0 : i32
    return %c0_i32, %c0_i32_0 : i32, i32
  }
  func.func @transform_19(%arg0: i32) -> (i32, i32) {
    %c0_i32 = arith.constant 0 : i32
    %c0_i32_0 = arith.constant 0 : i32
    %c0_i32_1 = arith.constant 0 : i32
    return %c0_i32, %c0_i32_0 : i32, i32
  }
  func.func @transform_20(%arg0: i32) -> (i32, i32, i32) {
    %c0_i32 = arith.constant 0 : i32
    %c0_i32_0 = arith.constant 0 : i32
    %c0_i32_1 = arith.constant 0 : i32
    return %arg0, %c0_i32, %c0_i32_0 : i32, i32, i32
  }
}

</mosaic_0001>

<llo_original>
// kernel: tpu_custom_call.1
$region0: #{tpu_custom_call.1}
  #allocation0 [shape = 'u32[]', space=smem, size = 0x4, offset = 0x4, fixed_abs, tag = 'smem constant byte address 0x4 - core index']
  #allocation1 [shape = 'u32[144,128]{1,0:T(1,128)}', space=vmem, size = 0x12000, scoped, tag = 'internal scratch']
  %s0 = inlined_call_operand.vmem [shape: f32[2,8,32], index: 0, kind: input, shape index: {}]
  %s1 = inlined_call_operand.vmem [shape: f32[2,16,16], index: 1, kind: input, shape index: {}]
  %s2 = inlined_call_operand.vmem [shape: bf16[4,32,8], index: 2, kind: input, shape index: {}]
  %s3 = inlined_call_operand.vmem [shape: bf16[4,16,8], index: 3, kind: input, shape index: {}]
  %s4 = inlined_call_operand.vmem [shape: bf16[4,16,8], index: 4, kind: input, shape index: {}]
  %s5 = inlined_call_operand.vmem [shape: bf16[4,8,32], index: 5, kind: input, shape index: {}]
  %s6 = inlined_call_operand.vmem [shape: f32[1,32], index: 6, kind: input, shape index: {}]
  %s7 = inlined_call_operand.vmem [shape: f32[1,32], index: 7, kind: input, shape index: {}]
  %s8 = inlined_call_operand.vmem [shape: f32[1,32], index: 8, kind: input, shape index: {}]
  %s9 = inlined_call_operand.vmem [shape: bf16[4,32,8], index: 9, kind: input, shape index: {}]
  %s10 = inlined_call_operand.vmem [shape: bf16[4,32,8], index: 10, kind: input, shape index: {}]
  %s11 = inlined_call_operand.vmem [shape: bf16[4,32,8], index: 11, kind: input, shape index: {}]
  %s12 = inlined_call_operand.vmem [shape: bf16[4,8,32], index: 12, kind: input, shape index: {}]
  %s13 = inlined_call_operand.vmem [shape: f32[1,32], index: 13, kind: input, shape index: {}]
  %s14 = inlined_call_operand.vmem [shape: f32[1,32], index: 14, kind: input, shape index: {}]
  %s15 = inlined_call_operand.vmem [shape: f32[1,32], index: 15, kind: input, shape index: {}]
  %s16 = inlined_call_operand.vmem [shape: bf16[32,64], index: 16, kind: input, shape index: {}]
  %s17 = inlined_call_operand.vmem [shape: f32[1,64], index: 17, kind: input, shape index: {}]
  %s18 = inlined_call_operand.vmem [shape: bf16[64,32], index: 18, kind: input, shape index: {}]
  %s19 = inlined_call_operand.vmem [shape: f32[1,32], index: 19, kind: input, shape index: {}]
  %s20 = inlined_call_operand.hbm [shape: f32[2,8,32], index: 20, kind: output, shape index: {}]
  %s21 = sld [smem:[#allocation0]]
  $region90: #{tpu_custom_call.1} parent=0
    _
  %s23 = ssub.s32 1, %s21
  %s24 = scalar_select 0, %s23, %s21
  $region1: #{tpu_custom_call.1} parent=0
    #allocation2 [shape = 'u8[8192]{0}', space=vmem, size = 0x2000, scoped, tag = 'output window, operand 0, single buffered']
    #allocation3 [shape = 's32[1]{0}', space=sflag, size = 0x4, scoped, tag = 'scoped memory for tpu_custom_call.1']
    %25 = vsyncpa [#allocation3], 0
    // Predicated region
    $region2: #{tpu_custom_call.1} parent=1 // pred_check
      _
    $region3: #{tpu_custom_call.1} parent=1 // pred_check_branch
      %27 = sbr.rel (0) target = $region5
    $region4: #{tpu_custom_call.1} parent=1 // pred_region
      _
    $region5: #{tpu_custom_call.1} parent=1 // pred_fallthru
      _
    // Predicated region
    $region6: #{tpu_custom_call.1} parent=1 // pred_check
      _
    $region7: #{tpu_custom_call.1} parent=1 // pred_check_branch
      %29 = sbr.rel (0) target = $region9
    $region8: #{tpu_custom_call.1} parent=1 // pred_region
      _
    $region9: #{tpu_custom_call.1} parent=1 // pred_fallthru
      _
    // Predicated region
    $region10: #{tpu_custom_call.1} parent=1 // pred_check
      _
    $region11: #{tpu_custom_call.1} parent=1 // pred_check_branch
      %31 = sbr.rel (0) target = $region13
    $region12: #{tpu_custom_call.1} parent=1 // pred_region
      _
    $region13: #{tpu_custom_call.1} parent=1 // pred_fallthru
      _
    // Predicated region
    $region14: #{tpu_custom_call.1} parent=1 // pred_check
      _
    $region15: #{tpu_custom_call.1} parent=1 // pred_check_branch
      %33 = sbr.rel (0) target = $region17
    $region16: #{tpu_custom_call.1} parent=1 // pred_region
      _
    $region17: #{tpu_custom_call.1} parent=1 // pred_fallthru
      _
    // Predicated region
    $region18: #{tpu_custom_call.1} parent=1 // pred_check
      _
    $region19: #{tpu_custom_call.1} parent=1 // pred_check_branch
      %35 = sbr.rel (0) target = $region21
    $region20: #{tpu_custom_call.1} parent=1 // pred_region
      _
    $region21: #{tpu_custom_call.1} parent=1 // pred_fallthru
      _
    // Predicated region
    $region22: #{tpu_custom_call.1} parent=1 // pred_check
      _
    $region23: #{tpu_custom_call.1} parent=1 // pred_check_branch
      %37 = sbr.rel (0) target = $region25
    $region24: #{tpu_custom_call.1} parent=1 // pred_region
      _
    $region25: #{tpu_custom_call.1} parent=1 // pred_fallthru
      _
    // Predicated region
    $region26: #{tpu_custom_call.1} parent=1 // pred_check
      _
    $region27: #{tpu_custom_call.1} parent=1 // pred_check_branch
      %39 = sbr.rel (0) target = $region29
    $region28: #{tpu_custom_call.1} parent=1 // pred_region
      _
    $region29: #{tpu_custom_call.1} parent=1 // pred_fallthru
      _
    // Predicated region
    $region30: #{tpu_custom_call.1} parent=1 // pred_check
      _
    $region31: #{tpu_custom_call.1} parent=1 // pred_check_branch
      %41 = sbr.rel (0) target = $region33
    $region32: #{tpu_custom_call.1} parent=1 // pred_region
      _
    $region33: #{tpu_custom_call.1} parent=1 // pred_fallthru
      _
    // Predicated region
    $region34: #{tpu_custom_call.1} parent=1 // pred_check
      _
    $region35: #{tpu_custom_call.1} parent=1 // pred_check_branch
      %43 = sbr.rel (0) target = $region37
    $region36: #{tpu_custom_call.1} parent=1 // pred_region
      _
    $region37: #{tpu_custom_call.1} parent=1 // pred_fallthru
      _
    // Predicated region
    $region38: #{tpu_custom_call.1} parent=1 // pred_check
      _
    $region39: #{tpu_custom_call.1} parent=1 // pred_check_branch
      %45 = sbr.rel (0) target = $region41
    $region40: #{tpu_custom_call.1} parent=1 // pred_region
      _
    $region41: #{tpu_custom_call.1} parent=1 // pred_fallthru
      _
    // Predicated region
    $region42: #{tpu_custom_call.1} parent=1 // pred_check
      _
    $region43: #{tpu_custom_call.1} parent=1 // pred_check_branch
      %47 = sbr.rel (0) target = $region45
    $region44: #{tpu_custom_call.1} parent=1 // pred_region
      _
    $region45: #{tpu_custom_call.1} parent=1 // pred_fallthru
      _
    // Predicated region
    $region46: #{tpu_custom_call.1} parent=1 // pred_check
      _
    $region47: #{tpu_custom_call.1} parent=1 // pred_check_branch
      %49 = sbr.rel (0) target = $region49
    $region48: #{tpu_custom_call.1} parent=1 // pred_region
      _
    $region49: #{tpu_custom_call.1} parent=1 // pred_fallthru
      _
    // Predicated region
    $region50: #{tpu_custom_call.1} parent=1 // pred_check
      _
    $region51: #{tpu_custom_call.1} parent=1 // pred_check_branch
      %51 = sbr.rel (0) target = $region53
    $region52: #{tpu_custom_call.1} parent=1 // pred_region
      _
    $region53: #{tpu_custom_call.1} parent=1 // pred_fallthru
      _
    // Predicated region
    $region54: #{tpu_custom_call.1} parent=1 // pred_check
      _
    $region55: #{tpu_custom_call.1} parent=1 // pred_check_branch
      %53 = sbr.rel (0) target = $region57
    $region56: #{tpu_custom_call.1} parent=1 // pred_region
      _
    $region57: #{tpu_custom_call.1} parent=1 // pred_fallthru
      _
    // Predicated region
    $region58: #{tpu_custom_call.1} parent=1 // pred_check
      _
    $region59: #{tpu_custom_call.1} parent=1 // pred_check_branch
      %55 = sbr.rel (0) target = $region61
    $region60: #{tpu_custom_call.1} parent=1 // pred_region
      _
    $region61: #{tpu_custom_call.1} parent=1 // pred_fallthru
      _
    // Predicated region
    $region62: #{tpu_custom_call.1} parent=1 // pred_check
      _
    $region63: #{tpu_custom_call.1} parent=1 // pred_check_branch
      %57 = sbr.rel (0) target = $region65
    $region64: #{tpu_custom_call.1} parent=1 // pred_region
      _
    $region65: #{tpu_custom_call.1} parent=1 // pred_fallthru
      _
    // Predicated region
    $region66: #{tpu_custom_call.1} parent=1 // pred_check
      _
    $region67: #{tpu_custom_call.1} parent=1 // pred_check_branch
      %59 = sbr.rel (0) target = $region69
    $region68: #{tpu_custom_call.1} parent=1 // pred_region
      _
    $region69: #{tpu_custom_call.1} parent=1 // pred_fallthru
      _
    // Predicated region
    $region70: #{tpu_custom_call.1} parent=1 // pred_check
      _
    $region71: #{tpu_custom_call.1} parent=1 // pred_check_branch
      %61 = sbr.rel (0) target = $region73
    $region72: #{tpu_custom_call.1} parent=1 // pred_region
      _
    $region73: #{tpu_custom_call.1} parent=1 // pred_fallthru
      _
    // Predicated region
    $region74: #{tpu_custom_call.1} parent=1 // pred_check
      _
    $region75: #{tpu_custom_call.1} parent=1 // pred_check_branch
      %63 = sbr.rel (0) target = $region77
    $region76: #{tpu_custom_call.1} parent=1 // pred_region
      _
    $region77: #{tpu_custom_call.1} parent=1 // pred_fallthru
      _
    // Predicated region
    $region78: #{tpu_custom_call.1} parent=1 // pred_check
      _
    $region79: #{tpu_custom_call.1} parent=1 // pred_check_branch
      %65 = sbr.rel (0) target = $region81
    $region80: #{tpu_custom_call.1} parent=1 // pred_region
      _
    $region81: #{tpu_custom_call.1} parent=1 // pred_fallthru
      _
    %v67 = vld [vmem:[%s0] sm:$0xff]
    %v68 = vld [vmem:[%s0 + $0x8] sm:$0xff]
    %v69 = vpack.c.bf16 %v67, %v67
    %v70 = vpack.c.bf16 %v68, %v68
    %v71 = vld [vmem:[%s1] sm:$0xff]
    %v72 = vld [vmem:[%s1 + $0x8] sm:$0xff]
    %v73 = vld [vmem:[%s1 + $0x10] sm:$0xff]
    %v74 = vld [vmem:[%s1 + $0x18] sm:$0xff]
    %v75 = vpack.c.bf16 %v72, %v71
    %v76 = vpack.c.bf16 %v74, %v73
    %v77 = vld [vmem:[%s2] sm:$0xf]
    %v78 = vld [vmem:[%s2 + $0x4] sm:$0xf]
    %v79 = vld [vmem:[%s2 + $0x8] sm:$0xf]
    %v80 = vld [vmem:[%s2 + $0xc] sm:$0xf]
    %v81 = vld [vmem:[%s2 + $0x10] sm:$0xf]
    %v82 = vld [vmem:[%s2 + $0x14] sm:$0xf]
    %v83 = vld [vmem:[%s2 + $0x18] sm:$0xf]
    %v84 = vld [vmem:[%s2 + $0x1c] sm:$0xf]
    %v85 = vld [vmem:[%s2 + $0x20] sm:$0xf]
    %v86 = vld [vmem:[%s2 + $0x24] sm:$0xf]
    %v87 = vld [vmem:[%s2 + $0x28] sm:$0xf]
    %v88 = vld [vmem:[%s2 + $0x2c] sm:$0xf]
    %v89 = vld [vmem:[%s2 + $0x30] sm:$0xf]
    %v90 = vld [vmem:[%s2 + $0x34] sm:$0xf]
    %v91 = vld [vmem:[%s2 + $0x38] sm:$0xf]
    %v92 = vld [vmem:[%s2 + $0x3c] sm:$0xf]
    %v97 = vunpack.c.l.b16 %v77
    %v98 = vunpack.c.l.b16 %v78
    %v99 = vunpack.c.l.b16 %v79
    %v100 = vunpack.c.l.b16 %v80
    %v101 = vpack.c.b16 %v98, %v97
    %v102 = vpack.c.b16 %v100, %v99
    %vm105 = vcmask 261120
    %v107 = vsel %vm105, %v69, 0
    %109 = vmatprep.subr.bf16.mxu0 0
    %110 = vmatpush1.bf16.msra.mxu0 %v101
    %111 = vmatprep.subr.bf16.mxu0 0
    %112 = vmatpush1.bf16.msra.mxu0 %v102
    %113 = vmatprep.subr.bf16.mxu0 0
    %114 = vmatpush1.bf16.msra.mxu0 0
    %115 = vmatprep.subr.bf16.mxu0 0
    %116 = vmatpush1.bf16.msra.mxu0 0
    %117 = vmatprep.subr.bf16.mxu0 0
    %118 = vmatpush1.bf16.msra.mxu0 0
    %119 = vmatprep.subr.bf16.mxu0 0
    %120 = vmatpush1.bf16.msra.mxu0 0
    %121 = vmatprep.subr.bf16.mxu0 0
    %122 = vmatpush1.bf16.msra.mxu0 0
    %123 = vmatprep.subr.bf16.mxu0 0
    %124 = vmatpush1.bf16.msra.mxu0 0
    %125 = vmatprep.subr.bf16.mxu0 0
    %126 = vmatpush1.bf16.msra.mxu0 0
    %127 = vmatprep.subr.bf16.mxu0 0
    %128 = vmatpush1.bf16.msra.mxu0 0
    %129 = vmatprep.subr.bf16.mxu0 0
    %130 = vmatpush1.bf16.msra.mxu0 0
    %131 = vmatprep.subr.bf16.mxu0 0
    %132 = vmatpush1.bf16.msra.mxu0 0
    %133 = vmatprep.subr.bf16.mxu0 0
    %134 = vmatpush1.bf16.msra.mxu0 0
    %135 = vmatprep.subr.bf16.mxu0 0
    %136 = vmatpush1.bf16.msra.mxu0 0
    %137 = vmatprep.subr.bf16.mxu0 0
    %138 = vmatpush1.bf16.msra.mxu0 0
    %139 = vmatprep.subr.bf16.mxu0 0
    %140 = vmatpush1.bf16.msra.mxu0 0
    %141 = vmatprep.mubr.bf16.mxu0 0
    %142 = vmatmul.mubr.bf16.gmra.mrb[0].mxu0 %v107
    %v143 = vpop.f32.mrb[0].mxu0
    %v144 = vadd.f32 0.0, %v143
    %v145 = vpop.f32.mrb[0].mxu0
    %v146 = vpop.f32.mrb[0].mxu0
    %v147 = vpop.f32.mrb[0].mxu0
    %148 = vdwg.mxu0
    %v153 = vunpack.c.l.b16 %v81
    %v154 = vunpack.c.l.b16 %v82
    %v155 = vunpack.c.l.b16 %v83
    %v156 = vunpack.c.l.b16 %v84
    %v157 = vpack.c.b16 %v154, %v153
    %v158 = vpack.c.b16 %v156, %v155
    %161 = vmatprep.subr.bf16.mxu0 0
    %162 = vmatpush1.bf16.msra.mxu0 %v157
    %163 = vmatprep.subr.bf16.mxu0 0
    %164 = vmatpush1.bf16.msra.mxu0 %v158
    %165 = vmatprep.subr.bf16.mxu0 0
    %166 = vmatpush1.bf16.msra.mxu0 0
    %167 = vmatprep.subr.bf16.mxu0 0
    %168 = vmatpush1.bf16.msra.mxu0 0
    %169 = vmatprep.subr.bf16.mxu0 0
    %170 = vmatpush1.bf16.msra.mxu0 0
    %171 = vmatprep.subr.bf16.mxu0 0
    %172 = vmatpush1.bf16.msra.mxu0 0
    %173 = vmatprep.subr.bf16.mxu0 0
    %174 = vmatpush1.bf16.msra.mxu0 0
    %175 = vmatprep.subr.bf16.mxu0 0
    %176 = vmatpush1.bf16.msra.mxu0 0
    %177 = vmatprep.subr.bf16.mxu0 0
    %178 = vmatpush1.bf16.msra.mxu0 0
    %179 = vmatprep.subr.bf16.mxu0 0
    %180 = vmatpush1.bf16.msra.mxu0 0
    %181 = vmatprep.subr.bf16.mxu0 0
    %182 = vmatpush1.bf16.msra.mxu0 0
    %183 = vmatprep.subr.bf16.mxu0 0
    %184 = vmatpush1.bf16.msra.mxu0 0
    %185 = vmatprep.subr.bf16.mxu0 0
    %186 = vmatpush1.bf16.msra.mxu0 0
    %187 = vmatprep.subr.bf16.mxu0 0
    %188 = vmatpush1.bf16.msra.mxu0 0
    %189 = vmatprep.subr.bf16.mxu0 0
    %190 = vmatpush1.bf16.msra.mxu0 0
    %191 = vmatprep.subr.bf16.mxu0 0
    %192 = vmatpush1.bf16.msra.mxu0 0
    %193 = vmatprep.mubr.bf16.mxu0 0
    %194 = vmatmul.mubr.bf16.gmra.mrb[0].mxu0 %v107
    %v195 = vpop.f32.mrb[0].mxu0
    %v196 = vadd.f32 0.0, %v195
    %v197 = vpop.f32.mrb[0].mxu0
    %v198 = vpop.f32.mrb[0].mxu0
    %v199 = vpop.f32.mrb[0].mxu0
    %200 = vdwg.mxu0
    %v205 = vunpack.c.l.b16 %v85
    %v206 = vunpack.c.l.b16 %v86
    %v207 = vunpack.c.l.b16 %v87
    %v208 = vunpack.c.l.b16 %v88
    %v209 = vpack.c.b16 %v206, %v205
    %v210 = vpack.c.b16 %v208, %v207
    %213 = vmatprep.subr.bf16.mxu0 0
    %214 = vmatpush1.bf16.msra.mxu0 %v209
    %215 = vmatprep.subr.bf16.mxu0 0
    %216 = vmatpush1.bf16.msra.mxu0 %v210
    %217 = vmatprep.subr.bf16.mxu0 0
    %218 = vmatpush1.bf16.msra.mxu0 0
    %219 = vmatprep.subr.bf16.mxu0 0
    %220 = vmatpush1.bf16.msra.mxu0 0
    %221 = vmatprep.subr.bf16.mxu0 0
    %222 = vmatpush1.bf16.msra.mxu0 0
    %223 = vmatprep.subr.bf16.mxu0 0
    %224 = vmatpush1.bf16.msra.mxu0 0
    %225 = vmatprep.subr.bf16.mxu0 0
    %226 = vmatpush1.bf16.msra.mxu0 0
    %227 = vmatprep.subr.bf16.mxu0 0
    %228 = vmatpush1.bf16.msra.mxu0 0
    %229 = vmatprep.subr.bf16.mxu0 0
    %230 = vmatpush1.bf16.msra.mxu0 0
    %231 = vmatprep.subr.bf16.mxu0 0
    %232 = vmatpush1.bf16.msra.mxu0 0
    %233 = vmatprep.subr.bf16.mxu0 0
    %234 = vmatpush1.bf16.msra.mxu0 0
    %235 = vmatprep.subr.bf16.mxu0 0
    %236 = vmatpush1.bf16.msra.mxu0 0
    %237 = vmatprep.subr.bf16.mxu0 0
    %238 = vmatpush1.bf16.msra.mxu0 0
    %239 = vmatprep.subr.bf16.mxu0 0
    %240 = vmatpush1.bf16.msra.mxu0 0
    %241 = vmatprep.subr.bf16.mxu0 0
    %242 = vmatpush1.bf16.msra.mxu0 0
    %243 = vmatprep.subr.bf16.mxu0 0
    %244 = vmatpush1.bf16.msra.mxu0 0
    %245 = vmatprep.mubr.bf16.mxu0 0
    %246 = vmatmul.mubr.bf16.gmra.mrb[0].mxu0 %v107
    %v247 = vpop.f32.mrb[0].mxu0
    %v248 = vadd.f32 0.0, %v247
    %v249 = vpop.f32.mrb[0].mxu0
    %v250 = vpop.f32.mrb[0].mxu0
    %v251 = vpop.f32.mrb[0].mxu0
    %252 = vdwg.mxu0
    %v257 = vunpack.c.l.b16 %v89
    %v258 = vunpack.c.l.b16 %v90
    %v259 = vunpack.c.l.b16 %v91
    %v260 = vunpack.c.l.b16 %v92
    %v261 = vpack.c.b16 %v258, %v257
    %v262 = vpack.c.b16 %v260, %v259
    %265 = vmatprep.subr.bf16.mxu0 0
    %266 = vmatpush1.bf16.msra.mxu0 %v261
    %267 = vmatprep.subr.bf16.mxu0 0
    %268 = vmatpush1.bf16.msra.mxu0 %v262
    %269 = vmatprep.subr.bf16.mxu0 0
    %270 = vmatpush1.bf16.msra.mxu0 0
    %271 = vmatprep.subr.bf16.mxu0 0
    %272 = vmatpush1.bf16.msra.mxu0 0
    %273 = vmatprep.subr.bf16.mxu0 0
    %274 = vmatpush1.bf16.msra.mxu0 0
    %275 = vmatprep.subr.bf16.mxu0 0
    %276 = vmatpush1.bf16.msra.mxu0 0
    %277 = vmatprep.subr.bf16.mxu0 0
    %278 = vmatpush1.bf16.msra.mxu0 0
    %279 = vmatprep.subr.bf16.mxu0 0
    %280 = vmatpush1.bf16.msra.mxu0 0
    %281 = vmatprep.subr.bf16.mxu0 0
    %282 = vmatpush1.bf16.msra.mxu0 0
    %283 = vmatprep.subr.bf16.mxu0 0
    %284 = vmatpush1.bf16.msra.mxu0 0
    %285 = vmatprep.subr.bf16.mxu0 0
    %286 = vmatpush1.bf16.msra.mxu0 0
    %287 = vmatprep.subr.bf16.mxu0 0
    %288 = vmatpush1.bf16.msra.mxu0 0
    %289 = vmatprep.subr.bf16.mxu0 0
    %290 = vmatpush1.bf16.msra.mxu0 0
    %291 = vmatprep.subr.bf16.mxu0 0
    %292 = vmatpush1.bf16.msra.mxu0 0
    %293 = vmatprep.subr.bf16.mxu0 0
    %294 = vmatpush1.bf16.msra.mxu0 0
    %295 = vmatprep.subr.bf16.mxu0 0
    %296 = vmatpush1.bf16.msra.mxu0 0
    %297 = vmatprep.mubr.bf16.mxu0 0
    %298 = vmatmul.mubr.bf16.gmra.mrb[0].mxu0 %v107
    %v299 = vpop.f32.mrb[0].mxu0
    %v300 = vadd.f32 0.0, %v299
    %v301 = vpop.f32.mrb[0].mxu0
    %v302 = vpop.f32.mrb[0].mxu0
    %v303 = vpop.f32.mrb[0].mxu0
    %304 = vdwg.mxu0
    %v306 = vsel %vm105, %v70, 0
    %308 = vmatprep.subr.bf16.mxu0 0
    %309 = vmatpush1.bf16.msra.mxu0 %v101
    %310 = vmatprep.subr.bf16.mxu0 0
    %311 = vmatpush1.bf16.msra.mxu0 %v102
    %312 = vmatprep.subr.bf16.mxu0 0
    %313 = vmatpush1.bf16.msra.mxu0 0
    %314 = vmatprep.subr.bf16.mxu0 0
    %315 = vmatpush1.bf16.msra.mxu0 0
    %316 = vmatprep.subr.bf16.mxu0 0
    %317 = vmatpush1.bf16.msra.mxu0 0
    %318 = vmatprep.subr.bf16.mxu0 0
    %319 = vmatpush1.bf16.msra.mxu0 0
    %320 = vmatprep.subr.bf16.mxu0 0
    %321 = vmatpush1.bf16.msra.mxu0 0
    %322 = vmatprep.subr.bf16.mxu0 0
    %323 = vmatpush1.bf16.msra.mxu0 0
    %324 = vmatprep.subr.bf16.mxu0 0
    %325 = vmatpush1.bf16.msra.mxu0 0
    %326 = vmatprep.subr.bf16.mxu0 0
    %327 = vmatpush1.bf16.msra.mxu0 0
    %328 = vmatprep.subr.bf16.mxu0 0
    %329 = vmatpush1.bf16.msra.mxu0 0
    %330 = vmatprep.subr.bf16.mxu0 0
    %331 = vmatpush1.bf16.msra.mxu0 0
    %332 = vmatprep.subr.bf16.mxu0 0
    %333 = vmatpush1.bf16.msra.mxu0 0
    %334 = vmatprep.subr.bf16.mxu0 0
    %335 = vmatpush1.bf16.msra.mxu0 0
    %336 = vmatprep.subr.bf16.mxu0 0
    %337 = vmatpush1.bf16.msra.mxu0 0
    %338 = vmatprep.subr.bf16.mxu0 0
    %339 = vmatpush1.bf16.msra.mxu0 0
    %340 = vmatprep.mubr.bf16.mxu0 0
    %341 = vmatmul.mubr.bf16.gmra.mrb[0].mxu0 %v306
    %v342 = vpop.f32.mrb[0].mxu0
    %v343 = vadd.f32 0.0, %v342
    %v344 = vpop.f32.mrb[0].mxu0
    %v345 = vpop.f32.mrb[0].mxu0
    %v346 = vpop.f32.mrb[0].mxu0
    %347 = vdwg.mxu0
    %348 = vmatprep.subr.bf16.mxu0 0
    %349 = vmatpush1.bf16.msra.mxu0 %v157
    %350 = vmatprep.subr.bf16.mxu0 0
    %351 = vmatpush1.bf16.msra.mxu0 %v158
    %352 = vmatprep.subr.bf16.mxu0 0
    %353 = vmatpush1.bf16.msra.mxu0 0
    %354 = vmatprep.subr.bf16.mxu0 0
    %355 = vmatpush1.bf16.msra.mxu0 0
    %356 = vmatprep.subr.bf16.mxu0 0
    %357 = vmatpush1.bf16.msra.mxu0 0
    %358 = vmatprep.subr.bf16.mxu0 0
    %359 = vmatpush1.bf16.msra.mxu0 0
    %360 = vmatprep.subr.bf16.mxu0 0
    %361 = vmatpush1.bf16.msra.mxu0 0
    %362 = vmatprep.subr.bf16.mxu0 0
    %363 = vmatpush1.bf16.msra.mxu0 0
    %364 = vmatprep.subr.bf16.mxu0 0
    %365 = vmatpush1.bf16.msra.mxu0 0
    %366 = vmatprep.subr.bf16.mxu0 0
    %367 = vmatpush1.bf16.msra.mxu0 0
    %368 = vmatprep.subr.bf16.mxu0 0
    %369 = vmatpush1.bf16.msra.mxu0 0
    %370 = vmatprep.subr.bf16.mxu0 0
    %371 = vmatpush1.bf16.msra.mxu0 0
    %372 = vmatprep.subr.bf16.mxu0 0
    %373 = vmatpush1.bf16.msra.mxu0 0
    %374 = vmatprep.subr.bf16.mxu0 0
    %375 = vmatpush1.bf16.msra.mxu0 0
    %376 = vmatprep.subr.bf16.mxu0 0
    %377 = vmatpush1.bf16.msra.mxu0 0
    %378 = vmatprep.subr.bf16.mxu0 0
    %379 = vmatpush1.bf16.msra.mxu0 0
    %380 = vmatprep.mubr.bf16.mxu0 0
    %381 = vmatmul.mubr.bf16.gmra.mrb[0].mxu0 %v306
    %v382 = vpop.f32.mrb[0].mxu0
    %v383 = vadd.f32 0.0, %v382
    %v384 = vpop.f32.mrb[0].mxu0
    %v385 = vpop.f32.mrb[0].mxu0
    %v386 = vpop.f32.mrb[0].mxu0
    %387 = vdwg.mxu0
    %388 = vmatprep.subr.bf16.mxu0 0
    %389 = vmatpush1.bf16.msra.mxu0 %v209
    %390 = vmatprep.subr.bf16.mxu0 0
    %391 = vmatpush1.bf16.msra.mxu0 %v210
    %392 = vmatprep.subr.bf16.mxu0 0
    %393 = vmatpush1.bf16.msra.mxu0 0
    %394 = vmatprep.subr.bf16.mxu0 0
    %395 = vmatpush1.bf16.msra.mxu0 0
    %396 = vmatprep.subr.bf16.mxu0 0
    %397 = vmatpush1.bf16.msra.mxu0 0
    %398 = vmatprep.subr.bf16.mxu0 0
    %399 = vmatpush1.bf16.msra.mxu0 0
    %400 = vmatprep.subr.bf16.mxu0 0
    %401 = vmatpush1.bf16.msra.mxu0 0
    %402 = vmatprep.subr.bf16.mxu0 0
    %403 = vmatpush1.bf16.msra.mxu0 0
    %404 = vmatprep.subr.bf16.mxu0 0
    %405 = vmatpush1.bf16.msra.mxu0 0
    %406 = vmatprep.subr.bf16.mxu0 0
    %407 = vmatpush1.bf16.msra.mxu0 0
    %408 = vmatprep.subr.bf16.mxu0 0
    %409 = vmatpush1.bf16.msra.mxu0 0
    %410 = vmatprep.subr.bf16.mxu0 0
    %411 = vmatpush1.bf16.msra.mxu0 0
    %412 = vmatprep.subr.bf16.mxu0 0
    %413 = vmatpush1.bf16.msra.mxu0 0
    %414 = vmatprep.subr.bf16.mxu0 0
    %415 = vmatpush1.bf16.msra.mxu0 0
    %416 = vmatprep.subr.bf16.mxu0 0
    %417 = vmatpush1.bf16.msra.mxu0 0
    %418 = vmatprep.subr.bf16.mxu0 0
    %419 = vmatpush1.bf16.msra.mxu0 0
    %420 = vmatprep.mubr.bf16.mxu0 0
    %421 = vmatmul.mubr.bf16.gmra.mrb[0].mxu0 %v306
    %v422 = vpop.f32.mrb[0].mxu0
    %v423 = vadd.f32 0.0, %v422
    %v424 = vpop.f32.mrb[0].mxu0
    %v425 = vpop.f32.mrb[0].mxu0
    %v426 = vpop.f32.mrb[0].mxu0
    %427 = vdwg.mxu0
    %428 = vmatprep.subr.bf16.mxu0 0
    %429 = vmatpush1.bf16.msra.mxu0 %v261
    %430 = vmatprep.subr.bf16.mxu0 0
    %431 = vmatpush1.bf16.msra.mxu0 %v262
    %432 = vmatprep.subr.bf16.mxu0 0
    %433 = vmatpush1.bf16.msra.mxu0 0
    %434 = vmatprep.subr.bf16.mxu0 0
    %435 = vmatpush1.bf16.msra.mxu0 0
    %436 = vmatprep.subr.bf16.mxu0 0
    %437 = vmatpush1.bf16.msra.mxu0 0
    %438 = vmatprep.subr.bf16.mxu0 0
    %439 = vmatpush1.bf16.msra.mxu0 0
    %440 = vmatprep.subr.bf16.mxu0 0
    %441 = vmatpush1.bf16.msra.mxu0 0
    %442 = vmatprep.subr.bf16.mxu0 0
    %443 = vmatpush1.bf16.msra.mxu0 0
    %444 = vmatprep.subr.bf16.mxu0 0
    %445 = vmatpush1.bf16.msra.mxu0 0
    %446 = vmatprep.subr.bf16.mxu0 0
    %447 = vmatpush1.bf16.msra.mxu0 0
    %448 = vmatprep.subr.bf16.mxu0 0
    %449 = vmatpush1.bf16.msra.mxu0 0
    %450 = vmatprep.subr.bf16.mxu0 0
    %451 = vmatpush1.bf16.msra.mxu0 0
    %452 = vmatprep.subr.bf16.mxu0 0
    %453 = vmatpush1.bf16.msra.mxu0 0
    %454 = vmatprep.subr.bf16.mxu0 0
    %455 = vmatpush1.bf16.msra.mxu0 0
    %456 = vmatprep.subr.bf16.mxu0 0
    %457 = vmatpush1.bf16.msra.mxu0 0
    %458 = vmatprep.subr.bf16.mxu0 0
    %459 = vmatpush1.bf16.msra.mxu0 0
    %460 = vmatprep.mubr.bf16.mxu0 0
    %461 = vmatmul.mubr.bf16.gmra.mrb[0].mxu0 %v306
    %v462 = vpop.f32.mrb[0].mxu0
    %v463 = vadd.f32 0.0, %v462
    %v464 = vpop.f32.mrb[0].mxu0
    %v465 = vpop.f32.mrb[0].mxu0
    %v466 = vpop.f32.mrb[0].mxu0
    %467 = vdwg.mxu0
    %v468 = vld [vmem:[%s3] sm:$0xf]
    %v469 = vld [vmem:[%s3 + $0x4] sm:$0xf]
    %v470 = vld [vmem:[%s3 + $0x8] sm:$0xf]
    %v471 = vld [vmem:[%s3 + $0xc] sm:$0xf]
    %v472 = vld [vmem:[%s3 + $0x10] sm:$0xf]
    %v473 = vld [vmem:[%s3 + $0x14] sm:$0xf]
    %v474 = vld [vmem:[%s3 + $0x18] sm:$0xf]
    %v475 = vld [vmem:[%s3 + $0x1c] sm:$0xf]
    %v478 = vunpack.c.l.b16 %v468
    %v479 = vunpack.c.l.b16 %v469
    %v480 = vpack.c.b16 %v479, %v478
    %vm482 = vcmask 130048
    %v484 = vsel %vm482, %v75, 0
    %486 = vmatprep.subr.bf16.mxu0 0
    %487 = vmatpush1.bf16.msra.mxu0 %v480
    %488 = vmatprep.subr.bf16.mxu0 0
    %489 = vmatpush1.bf16.msra.mxu0 0
    %490 = vmatprep.subr.bf16.mxu0 0
    %491 = vmatpush1.bf16.msra.mxu0 0
    %492 = vmatprep.subr.bf16.mxu0 0
    %493 = vmatpush1.bf16.msra.mxu0 0
    %494 = vmatprep.subr.bf16.mxu0 0
    %495 = vmatpush1.bf16.msra.mxu0 0
    %496 = vmatprep.subr.bf16.mxu0 0
    %497 = vmatpush1.bf16.msra.mxu0 0
    %498 = vmatprep.subr.bf16.mxu0 0
    %499 = vmatpush1.bf16.msra.mxu0 0
    %500 = vmatprep.subr.bf16.mxu0 0
    %501 = vmatpush1.bf16.msra.mxu0 0
    %502 = vmatprep.subr.bf16.mxu0 0
    %503 = vmatpush1.bf16.msra.mxu0 0
    %504 = vmatprep.subr.bf16.mxu0 0
    %505 = vmatpush1.bf16.msra.mxu0 0
    %506 = vmatprep.subr.bf16.mxu0 0
    %507 = vmatpush1.bf16.msra.mxu0 0
    %508 = vmatprep.subr.bf16.mxu0 0
    %509 = vmatpush1.bf16.msra.mxu0 0
    %510 = vmatprep.subr.bf16.mxu0 0
    %511 = vmatpush1.bf16.msra.mxu0 0
    %512 = vmatprep.subr.bf16.mxu0 0
    %513 = vmatpush1.bf16.msra.mxu0 0
    %514 = vmatprep.subr.bf16.mxu0 0
    %515 = vmatpush1.bf16.msra.mxu0 0
    %516 = vmatprep.subr.bf16.mxu0 0
    %517 = vmatpush1.bf16.msra.mxu0 0
    %518 = vmatprep.mubr.bf16.mxu0 0
    %519 = vmatmul.mubr.bf16.gmra.mrb[0].mxu0 %v484
    %v520 = vpop.f32.mrb[0].mxu0
    %v521 = vadd.f32 0.0, %v520
    %v522 = vpop.f32.mrb[0].mxu0
    %v523 = vpop.f32.mrb[0].mxu0
    %v524 = vadd.f32 0.0, %v523
    %v525 = vpop.f32.mrb[0].mxu0
    %526 = vdwg.mxu0
    %v529 = vunpack.c.l.b16 %v470
    %v530 = vunpack.c.l.b16 %v471
    %v531 = vpack.c.b16 %v530, %v529
    %533 = vmatprep.subr.bf16.mxu0 0
    %534 = vmatpush1.bf16.msra.mxu0 %v531
    %535 = vmatprep.subr.bf16.mxu0 0
    %536 = vmatpush1.bf16.msra.mxu0 0
    %537 = vmatprep.subr.bf16.mxu0 0
    %538 = vmatpush1.bf16.msra.mxu0 0
    %539 = vmatprep.subr.bf16.mxu0 0
    %540 = vmatpush1.bf16.msra.mxu0 0
    %541 = vmatprep.subr.bf16.mxu0 0
    %542 = vmatpush1.bf16.msra.mxu0 0
    %543 = vmatprep.subr.bf16.mxu0 0
    %544 = vmatpush1.bf16.msra.mxu0 0
    %545 = vmatprep.subr.bf16.mxu0 0
    %546 = vmatpush1.bf16.msra.mxu0 0
    %547 = vmatprep.subr.bf16.mxu0 0
    %548 = vmatpush1.bf16.msra.mxu0 0
    %549 = vmatprep.subr.bf16.mxu0 0
    %550 = vmatpush1.bf16.msra.mxu0 0
    %551 = vmatprep.subr.bf16.mxu0 0
    %552 = vmatpush1.bf16.msra.mxu0 0
    %553 = vmatprep.subr.bf16.mxu0 0
    %554 = vmatpush1.bf16.msra.mxu0 0
    %555 = vmatprep.subr.bf16.mxu0 0
    %556 = vmatpush1.bf16.msra.mxu0 0
    %557 = vmatprep.subr.bf16.mxu0 0
    %558 = vmatpush1.bf16.msra.mxu0 0
    %559 = vmatprep.subr.bf16.mxu0 0
    %560 = vmatpush1.bf16.msra.mxu0 0
    %561 = vmatprep.subr.bf16.mxu0 0
    %562 = vmatpush1.bf16.msra.mxu0 0
    %563 = vmatprep.subr.bf16.mxu0 0
    %564 = vmatpush1.bf16.msra.mxu0 0
    %565 = vmatprep.mubr.bf16.mxu0 0
    %566 = vmatmul.mubr.bf16.gmra.mrb[0].mxu0 %v484
    %v567 = vpop.f32.mrb[0].mxu0
    %v568 = vadd.f32 0.0, %v567
    %v569 = vpop.f32.mrb[0].mxu0
    %v570 = vpop.f32.mrb[0].mxu0
    %v571 = vadd.f32 0.0, %v570
    %v572 = vpop.f32.mrb[0].mxu0
    %573 = vdwg.mxu0
    %v576 = vunpack.c.l.b16 %v472
    %v577 = vunpack.c.l.b16 %v473
    %v578 = vpack.c.b16 %v577, %v576
    %580 = vmatprep.subr.bf16.mxu0 0
    %581 = vmatpush1.bf16.msra.mxu0 %v578
    %582 = vmatprep.subr.bf16.mxu0 0
    %583 = vmatpush1.bf16.msra.mxu0 0
    %584 = vmatprep.subr.bf16.mxu0 0
    %585 = vmatpush1.bf16.msra.mxu0 0
    %586 = vmatprep.subr.bf16.mxu0 0
    %587 = vmatpush1.bf16.msra.mxu0 0
    %588 = vmatprep.subr.bf16.mxu0 0
    %589 = vmatpush1.bf16.msra.mxu0 0
    %590 = vmatprep.subr.bf16.mxu0 0
    %591 = vmatpush1.bf16.msra.mxu0 0
    %592 = vmatprep.subr.bf16.mxu0 0
    %593 = vmatpush1.bf16.msra.mxu0 0
    %594 = vmatprep.subr.bf16.mxu0 0
    %595 = vmatpush1.bf16.msra.mxu0 0
    %596 = vmatprep.subr.bf16.mxu0 0
    %597 = vmatpush1.bf16.msra.mxu0 0
    %598 = vmatprep.subr.bf16.mxu0 0
    %599 = vmatpush1.bf16.msra.mxu0 0
    %600 = vmatprep.subr.bf16.mxu0 0
    %601 = vmatpush1.bf16.msra.mxu0 0
    %602 = vmatprep.subr.bf16.mxu0 0
    %603 = vmatpush1.bf16.msra.mxu0 0
    %604 = vmatprep.subr.bf16.mxu0 0
    %605 = vmatpush1.bf16.msra.mxu0 0
    %606 = vmatprep.subr.bf16.mxu0 0
    %607 = vmatpush1.bf16.msra.mxu0 0
    %608 = vmatprep.subr.bf16.mxu0 0
    %609 = vmatpush1.bf16.msra.mxu0 0
    %610 = vmatprep.subr.bf16.mxu0 0
    %611 = vmatpush1.bf16.msra.mxu0 0
    %612 = vmatprep.mubr.bf16.mxu0 0
    %613 = vmatmul.mubr.bf16.gmra.mrb[0].mxu0 %v484
    %v614 = vpop.f32.mrb[0].mxu0
    %v615 = vadd.f32 0.0, %v614
    %v616 = vpop.f32.mrb[0].mxu0
    %v617 = vpop.f32.mrb[0].mxu0
    %v618 = vadd.f32 0.0, %v617
    %v619 = vpop.f32.mrb[0].mxu0
    %620 = vdwg.mxu0
    %v623 = vunpack.c.l.b16 %v474
    %v624 = vunpack.c.l.b16 %v475
    %v625 = vpack.c.b16 %v624, %v623
    %627 = vmatprep.subr.bf16.mxu0 0
    %628 = vmatpush1.bf16.msra.mxu0 %v625
    %629 = vmatprep.subr.bf16.mxu0 0
    %630 = vmatpush1.bf16.msra.mxu0 0
    %631 = vmatprep.subr.bf16.mxu0 0
    %632 = vmatpush1.bf16.msra.mxu0 0
    %633 = vmatprep.subr.bf16.mxu0 0
    %634 = vmatpush1.bf16.msra.mxu0 0
    %635 = vmatprep.subr.bf16.mxu0 0
    %636 = vmatpush1.bf16.msra.mxu0 0
    %637 = vmatprep.subr.bf16.mxu0 0
    %638 = vmatpush1.bf16.msra.mxu0 0
    %639 = vmatprep.subr.bf16.mxu0 0
    %640 = vmatpush1.bf16.msra.mxu0 0
    %641 = vmatprep.subr.bf16.mxu0 0
    %642 = vmatpush1.bf16.msra.mxu0 0
    %643 = vmatprep.subr.bf16.mxu0 0
    %644 = vmatpush1.bf16.msra.mxu0 0
    %645 = vmatprep.subr.bf16.mxu0 0
    %646 = vmatpush1.bf16.msra.mxu0 0
    %647 = vmatprep.subr.bf16.mxu0 0
    %648 = vmatpush1.bf16.msra.mxu0 0
    %649 = vmatprep.subr.bf16.mxu0 0
    %650 = vmatpush1.bf16.msra.mxu0 0
    %651 = vmatprep.subr.bf16.mxu0 0
    %652 = vmatpush1.bf16.msra.mxu0 0
    %653 = vmatprep.subr.bf16.mxu0 0
    %654 = vmatpush1.bf16.msra.mxu0 0
    %655 = vmatprep.subr.bf16.mxu0 0
    %656 = vmatpush1.bf16.msra.mxu0 0
    %657 = vmatprep.subr.bf16.mxu0 0
    %658 = vmatpush1.bf16.msra.mxu0 0
    %659 = vmatprep.mubr.bf16.mxu0 0
    %660 = vmatmul.mubr.bf16.gmra.mrb[0].mxu0 %v484
    %v661 = vpop.f32.mrb[0].mxu0
    %v662 = vadd.f32 0.0, %v661
    %v663 = vpop.f32.mrb[0].mxu0
    %v664 = vpop.f32.mrb[0].mxu0
    %v665 = vadd.f32 0.0, %v664
    %v666 = vpop.f32.mrb[0].mxu0
    %667 = vdwg.mxu0
    %v669 = vsel %vm482, %v76, 0
    %671 = vmatprep.subr.bf16.mxu0 0
    %672 = vmatpush1.bf16.msra.mxu0 %v480
    %673 = vmatprep.subr.bf16.mxu0 0
    %674 = vmatpush1.bf16.msra.mxu0 0
    %675 = vmatprep.subr.bf16.mxu0 0
    %676 = vmatpush1.bf16.msra.mxu0 0
    %677 = vmatprep.subr.bf16.mxu0 0
    %678 = vmatpush1.bf16.msra.mxu0 0
    %679 = vmatprep.subr.bf16.mxu0 0
    %680 = vmatpush1.bf16.msra.mxu0 0
    %681 = vmatprep.subr.bf16.mxu0 0
    %682 = vmatpush1.bf16.msra.mxu0 0
    %683 = vmatprep.subr.bf16.mxu0 0
    %684 = vmatpush1.bf16.msra.mxu0 0
    %685 = vmatprep.subr.bf16.mxu0 0
    %686 = vmatpush1.bf16.msra.mxu0 0
    %687 = vmatprep.subr.bf16.mxu0 0
    %688 = vmatpush1.bf16.msra.mxu0 0
    %689 = vmatprep.subr.bf16.mxu0 0
    %690 = vmatpush1.bf16.msra.mxu0 0
    %691 = vmatprep.subr.bf16.mxu0 0
    %692 = vmatpush1.bf16.msra.mxu0 0
    %693 = vmatprep.subr.bf16.mxu0 0
    %694 = vmatpush1.bf16.msra.mxu0 0
    %695 = vmatprep.subr.bf16.mxu0 0
    %696 = vmatpush1.bf16.msra.mxu0 0
    %697 = vmatprep.subr.bf16.mxu0 0
    %698 = vmatpush1.bf16.msra.mxu0 0
    %699 = vmatprep.subr.bf16.mxu0 0
    %700 = vmatpush1.bf16.msra.mxu0 0
    %701 = vmatprep.subr.bf16.mxu0 0
    %702 = vmatpush1.bf16.msra.mxu0 0
    %703 = vmatprep.mubr.bf16.mxu0 0
    %704 = vmatmul.mubr.bf16.gmra.mrb[0].mxu0 %v669
    %v705 = vpop.f32.mrb[0].mxu0
    %v706 = vadd.f32 0.0, %v705
    %v707 = vpop.f32.mrb[0].mxu0
    %v708 = vpop.f32.mrb[0].mxu0
    %v709 = vadd.f32 0.0, %v708
    %v710 = vpop.f32.mrb[0].mxu0
    %711 = vdwg.mxu0
    %712 = vmatprep.subr.bf16.mxu0 0
    %713 = vmatpush1.bf16.msra.mxu0 %v531
    %714 = vmatprep.subr.bf16.mxu0 0
    %715 = vmatpush1.bf16.msra.mxu0 0
    %716 = vmatprep.subr.bf16.mxu0 0
    %717 = vmatpush1.bf16.msra.mxu0 0
    %718 = vmatprep.subr.bf16.mxu0 0
    %719 = vmatpush1.bf16.msra.mxu0 0
    %720 = vmatprep.subr.bf16.mxu0 0
    %721 = vmatpush1.bf16.msra.mxu0 0
    %722 = vmatprep.subr.bf16.mxu0 0
    %723 = vmatpush1.bf16.msra.mxu0 0
    %724 = vmatprep.subr.bf16.mxu0 0
    %725 = vmatpush1.bf16.msra.mxu0 0
    %726 = vmatprep.subr.bf16.mxu0 0
    %727 = vmatpush1.bf16.msra.mxu0 0
    %728 = vmatprep.subr.bf16.mxu0 0
    %729 = vmatpush1.bf16.msra.mxu0 0
    %730 = vmatprep.subr.bf16.mxu0 0
    %731 = vmatpush1.bf16.msra.mxu0 0
    %732 = vmatprep.subr.bf16.mxu0 0
    %733 = vmatpush1.bf16.msra.mxu0 0
    %734 = vmatprep.subr.bf16.mxu0 0
    %735 = vmatpush1.bf16.msra.mxu0 0
    %736 = vmatprep.subr.bf16.mxu0 0
    %737 = vmatpush1.bf16.msra.mxu0 0
    %738 = vmatprep.subr.bf16.mxu0 0
    %739 = vmatpush1.bf16.msra.mxu0 0
    %740 = vmatprep.subr.bf16.mxu0 0
    %741 = vmatpush1.bf16.msra.mxu0 0
    %742 = vmatprep.subr.bf16.mxu0 0
    %743 = vmatpush1.bf16.msra.mxu0 0
    %744 = vmatprep.mubr.bf16.mxu0 0
    %745 = vmatmul.mubr.bf16.gmra.mrb[0].mxu0 %v669
    %v746 = vpop.f32.mrb[0].mxu0
    %v747 = vadd.f32 0.0, %v746
    %v748 = vpop.f32.mrb[0].mxu0
    %v749 = vpop.f32.mrb[0].mxu0
    %v750 = vadd.f32 0.0, %v749
    %v751 = vpop.f32.mrb[0].mxu0
    %752 = vdwg.mxu0
    %753 = vmatprep.subr.bf16.mxu0 0
    %754 = vmatpush1.bf16.msra.mxu0 %v578
    %755 = vmatprep.subr.bf16.mxu0 0
    %756 = vmatpush1.bf16.msra.mxu0 0
    %757 = vmatprep.subr.bf16.mxu0 0
    %758 = vmatpush1.bf16.msra.mxu0 0
    %759 = vmatprep.subr.bf16.mxu0 0
    %760 = vmatpush1.bf16.msra.mxu0 0
    %761 = vmatprep.subr.bf16.mxu0 0
    %762 = vmatpush1.bf16.msra.mxu0 0
    %763 = vmatprep.subr.bf16.mxu0 0
    %764 = vmatpush1.bf16.msra.mxu0 0
    %765 = vmatprep.subr.bf16.mxu0 0
    %766 = vmatpush1.bf16.msra.mxu0 0
    %767 = vmatprep.subr.bf16.mxu0 0
    %768 = vmatpush1.bf16.msra.mxu0 0
    %769 = vmatprep.subr.bf16.mxu0 0
    %770 = vmatpush1.bf16.msra.mxu0 0
    %771 = vmatprep.subr.bf16.mxu0 0
    %772 = vmatpush1.bf16.msra.mxu0 0
    %773 = vmatprep.subr.bf16.mxu0 0
    %774 = vmatpush1.bf16.msra.mxu0 0
    %775 = vmatprep.subr.bf16.mxu0 0
    %776 = vmatpush1.bf16.msra.mxu0 0
    %777 = vmatprep.subr.bf16.mxu0 0
    %778 = vmatpush1.bf16.msra.mxu0 0
    %779 = vmatprep.subr.bf16.mxu0 0
    %780 = vmatpush1.bf16.msra.mxu0 0
    %781 = vmatprep.subr.bf16.mxu0 0
    %782 = vmatpush1.bf16.msra.mxu0 0
    %783 = vmatprep.subr.bf16.mxu0 0
    %784 = vmatpush1.bf16.msra.mxu0 0
    %785 = vmatprep.mubr.bf16.mxu0 0
    %786 = vmatmul.mubr.bf16.gmra.mrb[0].mxu0 %v669
    %v787 = vpop.f32.mrb[0].mxu0
    %v788 = vadd.f32 0.0, %v787
    %v789 = vpop.f32.mrb[0].mxu0
    %v790 = vpop.f32.mrb[0].mxu0
    %v791 = vadd.f32 0.0, %v790
    %v792 = vpop.f32.mrb[0].mxu0
    %793 = vdwg.mxu0
    %794 = vmatprep.subr.bf16.mxu0 0
    %795 = vmatpush1.bf16.msra.mxu0 %v625
    %796 = vmatprep.subr.bf16.mxu0 0
    %797 = vmatpush1.bf16.msra.mxu0 0
    %798 = vmatprep.subr.bf16.mxu0 0
    %799 = vmatpush1.bf16.msra.mxu0 0
    %800 = vmatprep.subr.bf16.mxu0 0
    %801 = vmatpush1.bf16.msra.mxu0 0
    %802 = vmatprep.subr.bf16.mxu0 0
    %803 = vmatpush1.bf16.msra.mxu0 0
    %804 = vmatprep.subr.bf16.mxu0 0
    %805 = vmatpush1.bf16.msra.mxu0 0
    %806 = vmatprep.subr.bf16.mxu0 0
    %807 = vmatpush1.bf16.msra.mxu0 0
    %808 = vmatprep.subr.bf16.mxu0 0
    %809 = vmatpush1.bf16.msra.mxu0 0
    %810 = vmatprep.subr.bf16.mxu0 0
    %811 = vmatpush1.bf16.msra.mxu0 0
    %812 = vmatprep.subr.bf16.mxu0 0
    %813 = vmatpush1.bf16.msra.mxu0 0
    %814 = vmatprep.subr.bf16.mxu0 0
    %815 = vmatpush1.bf16.msra.mxu0 0
    %816 = vmatprep.subr.bf16.mxu0 0
    %817 = vmatpush1.bf16.msra.mxu0 0
    %818 = vmatprep.subr.bf16.mxu0 0
    %819 = vmatpush1.bf16.msra.mxu0 0
    %820 = vmatprep.subr.bf16.mxu0 0
    %821 = vmatpush1.bf16.msra.mxu0 0
    %822 = vmatprep.subr.bf16.mxu0 0
    %823 = vmatpush1.bf16.msra.mxu0 0
    %824 = vmatprep.subr.bf16.mxu0 0
    %825 = vmatpush1.bf16.msra.mxu0 0
    %826 = vmatprep.mubr.bf16.mxu0 0
    %827 = vmatmul.mubr.bf16.gmra.mrb[0].mxu0 %v669
    %v828 = vpop.f32.mrb[0].mxu0
    %v829 = vadd.f32 0.0, %v828
    %v830 = vpop.f32.mrb[0].mxu0
    %v831 = vpop.f32.mrb[0].mxu0
    %v832 = vadd.f32 0.0, %v831
    %v833 = vpop.f32.mrb[0].mxu0
    %834 = vdwg.mxu0
    %v835 = vld [vmem:[%s4] sm:$0xf]
    %v836 = vld [vmem:[%s4 + $0x4] sm:$0xf]
    %v837 = vld [vmem:[%s4 + $0x8] sm:$0xf]
    %v838 = vld [vmem:[%s4 + $0xc] sm:$0xf]
    %v839 = vld [vmem:[%s4 + $0x10] sm:$0xf]
    %v840 = vld [vmem:[%s4 + $0x14] sm:$0xf]
    %v841 = vld [vmem:[%s4 + $0x18] sm:$0xf]
    %v842 = vld [vmem:[%s4 + $0x1c] sm:$0xf]
    %v845 = vunpack.c.l.b16 %v835
    %v846 = vunpack.c.l.b16 %v836
    %v847 = vpack.c.b16 %v846, %v845
    %849 = vmatprep.subr.bf16.mxu0 0
    %850 = vmatpush1.bf16.msra.mxu0 %v847
    %851 = vmatprep.subr.bf16.mxu0 0
    %852 = vmatpush1.bf16.msra.mxu0 0
    %853 = vmatprep.subr.bf16.mxu0 0
    %854 = vmatpush1.bf16.msra.mxu0 0
    %855 = vmatprep.subr.bf16.mxu0 0
    %856 = vmatpush1.bf16.msra.mxu0 0
    %857 = vmatprep.subr.bf16.mxu0 0
    %858 = vmatpush1.bf16.msra.mxu0 0
    %859 = vmatprep.subr.bf16.mxu0 0
    %860 = vmatpush1.bf16.msra.mxu0 0
    %861 = vmatprep.subr.bf16.mxu0 0
    %862 = vmatpush1.bf16.msra.mxu0 0
    %863 = vmatprep.subr.bf16.mxu0 0
    %864 = vmatpush1.bf16.msra.mxu0 0
    %865 = vmatprep.subr.bf16.mxu0 0
    %866 = vmatpush1.bf16.msra.mxu0 0
    %867 = vmatprep.subr.bf16.mxu0 0
    %868 = vmatpush1.bf16.msra.mxu0 0
    %869 = vmatprep.subr.bf16.mxu0 0
    %870 = vmatpush1.bf16.msra.mxu0 0
    %871 = vmatprep.subr.bf16.mxu0 0
    %872 = vmatpush1.bf16.msra.mxu0 0
    %873 = vmatprep.subr.bf16.mxu0 0
    %874 = vmatpush1.bf16.msra.mxu0 0
    %875 = vmatprep.subr.bf16.mxu0 0
    %876 = vmatpush1.bf16.msra.mxu0 0
    %877 = vmatprep.subr.bf16.mxu0 0
    %878 = vmatpush1.bf16.msra.mxu0 0
    %879 = vmatprep.subr.bf16.mxu0 0
    %880 = vmatpush1.bf16.msra.mxu0 0
    %881 = vmatprep.mubr.bf16.mxu0 0
    %882 = vmatmul.mubr.bf16.gmra.mrb[0].mxu0 %v484
    %v883 = vpop.f32.mrb[0].mxu0
    %v884 = vadd.f32 0.0, %v883
    %v885 = vpop.f32.mrb[0].mxu0
    %v886 = vpop.f32.mrb[0].mxu0
    %v887 = vadd.f32 0.0, %v886
    %v888 = vpop.f32.mrb[0].mxu0
    %889 = vdwg.mxu0
    %v892 = vunpack.c.l.b16 %v837
    %v893 = vunpack.c.l.b16 %v838
    %v894 = vpack.c.b16 %v893, %v892
    %896 = vmatprep.subr.bf16.mxu0 0
    %897 = vmatpush1.bf16.msra.mxu0 %v894
    %898 = vmatprep.subr.bf16.mxu0 0
    %899 = vmatpush1.bf16.msra.mxu0 0
    %900 = vmatprep.subr.bf16.mxu0 0
    %901 = vmatpush1.bf16.msra.mxu0 0
    %902 = vmatprep.subr.bf16.mxu0 0
    %903 = vmatpush1.bf16.msra.mxu0 0
    %904 = vmatprep.subr.bf16.mxu0 0
    %905 = vmatpush1.bf16.msra.mxu0 0
    %906 = vmatprep.subr.bf16.mxu0 0
    %907 = vmatpush1.bf16.msra.mxu0 0
    %908 = vmatprep.subr.bf16.mxu0 0
    %909 = vmatpush1.bf16.msra.mxu0 0
    %910 = vmatprep.subr.bf16.mxu0 0
    %911 = vmatpush1.bf16.msra.mxu0 0
    %912 = vmatprep.subr.bf16.mxu0 0
    %913 = vmatpush1.bf16.msra.mxu0 0
    %914 = vmatprep.subr.bf16.mxu0 0
    %915 = vmatpush1.bf16.msra.mxu0 0
    %916 = vmatprep.subr.bf16.mxu0 0
    %917 = vmatpush1.bf16.msra.mxu0 0
    %918 = vmatprep.subr.bf16.mxu0 0
    %919 = vmatpush1.bf16.msra.mxu0 0
    %920 = vmatprep.subr.bf16.mxu0 0
    %921 = vmatpush1.bf16.msra.mxu0 0
    %922 = vmatprep.subr.bf16.mxu0 0
    %923 = vmatpush1.bf16.msra.mxu0 0
    %924 = vmatprep.subr.bf16.mxu0 0
    %925 = vmatpush1.bf16.msra.mxu0 0
    %926 = vmatprep.subr.bf16.mxu0 0
    %927 = vmatpush1.bf16.msra.mxu0 0
    %928 = vmatprep.mubr.bf16.mxu0 0
    %929 = vmatmul.mubr.bf16.gmra.mrb[0].mxu0 %v484
    %v930 = vpop.f32.mrb[0].mxu0
    %v931 = vadd.f32 0.0, %v930
    %v932 = vpop.f32.mrb[0].mxu0
    %v933 = vpop.f32.mrb[0].mxu0
    %v934 = vadd.f32 0.0, %v933
    %v935 = vpop.f32.mrb[0].mxu0
    %936 = vdwg.mxu0
    %v939 = vunpack.c.l.b16 %v839
    %v940 = vunpack.c.l.b16 %v840
    %v941 = vpack.c.b16 %v940, %v939
    %943 = vmatprep.subr.bf16.mxu0 0
    %944 = vmatpush1.bf16.msra.mxu0 %v941
    %945 = vmatprep.subr.bf16.mxu0 0
    %946 = vmatpush1.bf16.msra.mxu0 0
    %947 = vmatprep.subr.bf16.mxu0 0
    %948 = vmatpush1.bf16.msra.mxu0 0
    %949 = vmatprep.subr.bf16.mxu0 0
    %950 = vmatpush1.bf16.msra.mxu0 0
    %951 = vmatprep.subr.bf16.mxu0 0
    %952 = vmatpush1.bf16.msra.mxu0 0
    %953 = vmatprep.subr.bf16.mxu0 0
    %954 = vmatpush1.bf16.msra.mxu0 0
    %955 = vmatprep.subr.bf16.mxu0 0
    %956 = vmatpush1.bf16.msra.mxu0 0
    %957 = vmatprep.subr.bf16.mxu0 0
    %958 = vmatpush1.bf16.msra.mxu0 0
    %959 = vmatprep.subr.bf16.mxu0 0
    %960 = vmatpush1.bf16.msra.mxu0 0
    %961 = vmatprep.subr.bf16.mxu0 0
    %962 = vmatpush1.bf16.msra.mxu0 0
    %963 = vmatprep.subr.bf16.mxu0 0
    %964 = vmatpush1.bf16.msra.mxu0 0
    %965 = vmatprep.subr.bf16.mxu0 0
    %966 = vmatpush1.bf16.msra.mxu0 0
    %967 = vmatprep.subr.bf16.mxu0 0
    %968 = vmatpush1.bf16.msra.mxu0 0
    %969 = vmatprep.subr.bf16.mxu0 0
    %970 = vmatpush1.bf16.msra.mxu0 0
    %971 = vmatprep.subr.bf16.mxu0 0
    %972 = vmatpush1.bf16.msra.mxu0 0
    %973 = vmatprep.subr.bf16.mxu0 0
    %974 = vmatpush1.bf16.msra.mxu0 0
    %975 = vmatprep.mubr.bf16.mxu0 0
    %976 = vmatmul.mubr.bf16.gmra.mrb[0].mxu0 %v484
    %v977 = vpop.f32.mrb[0].mxu0
    %v978 = vadd.f32 0.0, %v977
    %v979 = vpop.f32.mrb[0].mxu0
    %v980 = vpop.f32.mrb[0].mxu0
    %v981 = vadd.f32 0.0, %v980
    %v982 = vpop.f32.mrb[0].mxu0
    %983 = vdwg.mxu0
    %v986 = vunpack.c.l.b16 %v841
    %v987 = vunpack.c.l.b16 %v842
    %v988 = vpack.c.b16 %v987, %v986
    %990 = vmatprep.subr.bf16.mxu0 0
    %991 = vmatpush1.bf16.msra.mxu0 %v988
    %992 = vmatprep.subr.bf16.mxu0 0
    %993 = vmatpush1.bf16.msra.mxu0 0
    %994 = vmatprep.subr.bf16.mxu0 0
    %995 = vmatpush1.bf16.msra.mxu0 0
    %996 = vmatprep.subr.bf16.mxu0 0
    %997 = vmatpush1.bf16.msra.mxu0 0
    %998 = vmatprep.subr.bf16.mxu0 0
    %999 = vmatpush1.bf16.msra.mxu0 0
    %1000 = vmatprep.subr.bf16.mxu0 0
    %1001 = vmatpush1.bf16.msra.mxu0 0
    %1002 = vmatprep.subr.bf16.mxu0 0
    %1003 = vmatpush1.bf16.msra.mxu0 0
    %1004 = vmatprep.subr.bf16.mxu0 0
    %1005 = vmatpush1.bf16.msra.mxu0 0
    %1006 = vmatprep.subr.bf16.mxu0 0
    %1007 = vmatpush1.bf16.msra.mxu0 0
    %1008 = vmatprep.subr.bf16.mxu0 0
    %1009 = vmatpush1.bf16.msra.mxu0 0
    %1010 = vmatprep.subr.bf16.mxu0 0
    %1011 = vmatpush1.bf16.msra.mxu0 0
    %1012 = vmatprep.subr.bf16.mxu0 0
    %1013 = vmatpush1.bf16.msra.mxu0 0
    %1014 = vmatprep.subr.bf16.mxu0 0
    %1015 = vmatpush1.bf16.msra.mxu0 0
    %1016 = vmatprep.subr.bf16.mxu0 0
    %1017 = vmatpush1.bf16.msra.mxu0 0
    %1018 = vmatprep.subr.bf16.mxu0 0
    %1019 = vmatpush1.bf16.msra.mxu0 0
    %1020 = vmatprep.subr.bf16.mxu0 0
    %1021 = vmatpush1.bf16.msra.mxu0 0
    %1022 = vmatprep.mubr.bf16.mxu0 0
    %1023 = vmatmul.mubr.bf16.gmra.mrb[0].mxu0 %v484
    %v1024 = vpop.f32.mrb[0].mxu0
    %v1025 = vadd.f32 0.0, %v1024
    %v1026 = vpop.f32.mrb[0].mxu0
    %v1027 = vpop.f32.mrb[0].mxu0
    %v1028 = vadd.f32 0.0, %v1027
    %v1029 = vpop.f32.mrb[0].mxu0
    %1030 = vdwg.mxu0
    %1031 = vmatprep.subr.bf16.mxu0 0
    %1032 = vmatpush1.bf16.msra.mxu0 %v847
    %1033 = vmatprep.subr.bf16.mxu0 0
    %1034 = vmatpush1.bf16.msra.mxu0 0
    %1035 = vmatprep.subr.bf16.mxu0 0
    %1036 = vmatpush1.bf16.msra.mxu0 0
    %1037 = vmatprep.subr.bf16.mxu0 0
    %1038 = vmatpush1.bf16.msra.mxu0 0
    %1039 = vmatprep.subr.bf16.mxu0 0
    %1040 = vmatpush1.bf16.msra.mxu0 0
    %1041 = vmatprep.subr.bf16.mxu0 0
    %1042 = vmatpush1.bf16.msra.mxu0 0
    %1043 = vmatprep.subr.bf16.mxu0 0
    %1044 = vmatpush1.bf16.msra.mxu0 0
    %1045 = vmatprep.subr.bf16.mxu0 0
    %1046 = vmatpush1.bf16.msra.mxu0 0
    %1047 = vmatprep.subr.bf16.mxu0 0
    %1048 = vmatpush1.bf16.msra.mxu0 0
    %1049 = vmatprep.subr.bf16.mxu0 0
    %1050 = vmatpush1.bf16.msra.mxu0 0
    %1051 = vmatprep.subr.bf16.mxu0 0
    %1052 = vmatpush1.bf16.msra.mxu0 0
    %1053 = vmatprep.subr.bf16.mxu0 0
    %1054 = vmatpush1.bf16.msra.mxu0 0
    %1055 = vmatprep.subr.bf16.mxu0 0
    %1056 = vmatpush1.bf16.msra.mxu0 0
    %1057 = vmatprep.subr.bf16.mxu0 0
    %1058 = vmatpush1.bf16.msra.mxu0 0
    %1059 = vmatprep.subr.bf16.mxu0 0
    %1060 = vmatpush1.bf16.msra.mxu0 0
    %1061 = vmatprep.subr.bf16.mxu0 0
    %1062 = vmatpush1.bf16.msra.mxu0 0
    %1063 = vmatprep.mubr.bf16.mxu0 0
    %1064 = vmatmul.mubr.bf16.gmra.mrb[0].mxu0 %v669
    %v1065 = vpop.f32.mrb[0].mxu0
    %v1066 = vadd.f32 0.0, %v1065
    %v1067 = vpop.f32.mrb[0].mxu0
    %v1068 = vpop.f32.mrb[0].mxu0
    %v1069 = vadd.f32 0.0, %v1068
    %v1070 = vpop.f32.mrb[0].mxu0
    %1071 = vdwg.mxu0
    %1072 = vmatprep.subr.bf16.mxu0 0
    %1073 = vmatpush1.bf16.msra.mxu0 %v894
    %1074 = vmatprep.subr.bf16.mxu0 0
    %1075 = vmatpush1.bf16.msra.mxu0 0
    %1076 = vmatprep.subr.bf16.mxu0 0
    %1077 = vmatpush1.bf16.msra.mxu0 0
    %1078 = vmatprep.subr.bf16.mxu0 0
    %1079 = vmatpush1.bf16.msra.mxu0 0
    %1080 = vmatprep.subr.bf16.mxu0 0
    %1081 = vmatpush1.bf16.msra.mxu0 0
    %1082 = vmatprep.subr.bf16.mxu0 0
    %1083 = vmatpush1.bf16.msra.mxu0 0
    %1084 = vmatprep.subr.bf16.mxu0 0
    %1085 = vmatpush1.bf16.msra.mxu0 0
    %1086 = vmatprep.subr.bf16.mxu0 0
    %1087 = vmatpush1.bf16.msra.mxu0 0
    %1088 = vmatprep.subr.bf16.mxu0 0
    %1089 = vmatpush1.bf16.msra.mxu0 0
    %1090 = vmatprep.subr.bf16.mxu0 0
    %1091 = vmatpush1.bf16.msra.mxu0 0
    %1092 = vmatprep.subr.bf16.mxu0 0
    %1093 = vmatpush1.bf16.msra.mxu0 0
    %1094 = vmatprep.subr.bf16.mxu0 0
    %1095 = vmatpush1.bf16.msra.mxu0 0
    %1096 = vmatprep.subr.bf16.mxu0 0
    %1097 = vmatpush1.bf16.msra.mxu0 0
    %1098 = vmatprep.subr.bf16.mxu0 0
    %1099 = vmatpush1.bf16.msra.mxu0 0
    %1100 = vmatprep.subr.bf16.mxu0 0
    %1101 = vmatpush1.bf16.msra.mxu0 0
    %1102 = vmatprep.subr.bf16.mxu0 0
    %1103 = vmatpush1.bf16.msra.mxu0 0
    %1104 = vmatprep.mubr.bf16.mxu0 0
    %1105 = vmatmul.mubr.bf16.gmra.mrb[0].mxu0 %v669
    %v1106 = vpop.f32.mrb[0].mxu0
    %v1107 = vadd.f32 0.0, %v1106
    %v1108 = vpop.f32.mrb[0].mxu0
    %v1109 = vpop.f32.mrb[0].mxu0
    %v1110 = vadd.f32 0.0, %v1109
    %v1111 = vpop.f32.mrb[0].mxu0
    %1112 = vdwg.mxu0
    %1113 = vmatprep.subr.bf16.mxu0 0
    %1114 = vmatpush1.bf16.msra.mxu0 %v941
    %1115 = vmatprep.subr.bf16.mxu0 0
    %1116 = vmatpush1.bf16.msra.mxu0 0
    %1117 = vmatprep.subr.bf16.mxu0 0
    %1118 = vmatpush1.bf16.msra.mxu0 0
    %1119 = vmatprep.subr.bf16.mxu0 0
    %1120 = vmatpush1.bf16.msra.mxu0 0
    %1121 = vmatprep.subr.bf16.mxu0 0
    %1122 = vmatpush1.bf16.msra.mxu0 0
    %1123 = vmatprep.subr.bf16.mxu0 0
    %1124 = vmatpush1.bf16.msra.mxu0 0
    %1125 = vmatprep.subr.bf16.mxu0 0
    %1126 = vmatpush1.bf16.msra.mxu0 0
    %1127 = vmatprep.subr.bf16.mxu0 0
    %1128 = vmatpush1.bf16.msra.mxu0 0
    %1129 = vmatprep.subr.bf16.mxu0 0
    %1130 = vmatpush1.bf16.msra.mxu0 0
    %1131 = vmatprep.subr.bf16.mxu0 0
    %1132 = vmatpush1.bf16.msra.mxu0 0
    %1133 = vmatprep.subr.bf16.mxu0 0
    %1134 = vmatpush1.bf16.msra.mxu0 0
    %1135 = vmatprep.subr.bf16.mxu0 0
    %1136 = vmatpush1.bf16.msra.mxu0 0
    %1137 = vmatprep.subr.bf16.mxu0 0
    %1138 = vmatpush1.bf16.msra.mxu0 0
    %1139 = vmatprep.subr.bf16.mxu0 0
    %1140 = vmatpush1.bf16.msra.mxu0 0
    %1141 = vmatprep.subr.bf16.mxu0 0
    %1142 = vmatpush1.bf16.msra.mxu0 0
    %1143 = vmatprep.subr.bf16.mxu0 0
    %1144 = vmatpush1.bf16.msra.mxu0 0
    %1145 = vmatprep.mubr.bf16.mxu0 0
    %1146 = vmatmul.mubr.bf16.gmra.mrb[0].mxu0 %v669
    %v1147 = vpop.f32.mrb[0].mxu0
    %v1148 = vadd.f32 0.0, %v1147
    %v1149 = vpop.f32.mrb[0].mxu0
    %v1150 = vpop.f32.mrb[0].mxu0
    %v1151 = vadd.f32 0.0, %v1150
    %v1152 = vpop.f32.mrb[0].mxu0
    %1153 = vdwg.mxu0
    %1154 = vmatprep.subr.bf16.mxu0 0
    %1155 = vmatpush1.bf16.msra.mxu0 %v988
    %1156 = vmatprep.subr.bf16.mxu0 0
    %1157 = vmatpush1.bf16.msra.mxu0 0
    %1158 = vmatprep.subr.bf16.mxu0 0
    %1159 = vmatpush1.bf16.msra.mxu0 0
    %1160 = vmatprep.subr.bf16.mxu0 0
    %1161 = vmatpush1.bf16.msra.mxu0 0
    %1162 = vmatprep.subr.bf16.mxu0 0
    %1163 = vmatpush1.bf16.msra.mxu0 0
    %1164 = vmatprep.subr.bf16.mxu0 0
    %1165 = vmatpush1.bf16.msra.mxu0 0
    %1166 = vmatprep.subr.bf16.mxu0 0
    %1167 = vmatpush1.bf16.msra.mxu0 0
    %1168 = vmatprep.subr.bf16.mxu0 0
    %1169 = vmatpush1.bf16.msra.mxu0 0
    %1170 = vmatprep.subr.bf16.mxu0 0
    %1171 = vmatpush1.bf16.msra.mxu0 0
    %1172 = vmatprep.subr.bf16.mxu0 0
    %1173 = vmatpush1.bf16.msra.mxu0 0
    %1174 = vmatprep.subr.bf16.mxu0 0
    %1175 = vmatpush1.bf16.msra.mxu0 0
    %1176 = vmatprep.subr.bf16.mxu0 0
    %1177 = vmatpush1.bf16.msra.mxu0 0
    %1178 = vmatprep.subr.bf16.mxu0 0
    %1179 = vmatpush1.bf16.msra.mxu0 0
    %1180 = vmatprep.subr.bf16.mxu0 0
    %1181 = vmatpush1.bf16.msra.mxu0 0
    %1182 = vmatprep.subr.bf16.mxu0 0
    %1183 = vmatpush1.bf16.msra.mxu0 0
    %1184 = vmatprep.subr.bf16.mxu0 0
    %1185 = vmatpush1.bf16.msra.mxu0 0
    %1186 = vmatprep.mubr.bf16.mxu0 0
    %1187 = vmatmul.mubr.bf16.gmra.mrb[0].mxu0 %v669
    %v1188 = vpop.f32.mrb[0].mxu0
    %v1189 = vadd.f32 0.0, %v1188
    %v1190 = vpop.f32.mrb[0].mxu0
    %v1191 = vpop.f32.mrb[0].mxu0
    %v1192 = vadd.f32 0.0, %v1191
    %v1193 = vpop.f32.mrb[0].mxu0
    %1194 = vdwg.mxu0
    %v1195 = vpack.c.bf16 %v144, %v144
    %v1196 = vpack.c.bf16 %v196, %v196
    %v1197 = vpack.c.bf16 %v248, %v248
    %v1198 = vpack.c.bf16 %v300, %v300
    %v1199 = vpack.c.bf16 %v343, %v343
    %v1200 = vpack.c.bf16 %v383, %v383
    %v1201 = vpack.c.bf16 %v423, %v423
    %v1202 = vpack.c.bf16 %v463, %v463
    %v1203 = vpack.c.bf16 %v524, %v521
    %v1204 = vpack.c.bf16 %v571, %v568
    %v1205 = vpack.c.bf16 %v618, %v615
    %v1206 = vpack.c.bf16 %v665, %v662
    %v1207 = vpack.c.bf16 %v709, %v706
    %v1208 = vpack.c.bf16 %v750, %v747
    %v1209 = vpack.c.bf16 %v791, %v788
    %v1210 = vpack.c.bf16 %v832, %v829
    %vm1211 = vcmask 64512
    %v1213 = vsel %vm1211, %v1195, 0
    %v1216 = vsel %vm1211, %v1203, 0
    %1218 = vmatprep.subr.bf16.mxu0 0
    %1219 = vmatpush1.bf16.xpose.msra.mxu0 %v1216
    %1220 = vmatprep.subr.bf16.mxu0 0
    %1221 = vmatpush1.bf16.xpose.msra.mxu0 0
    %1222 = vmatprep.subr.bf16.mxu0 0
    %1223 = vmatpush1.bf16.xpose.msra.mxu0 0
    %1224 = vmatprep.subr.bf16.mxu0 0
    %1225 = vmatpush1.bf16.xpose.msra.mxu0 0
    %1226 = vmatprep.subr.bf16.mxu0 0
    %1227 = vmatpush1.bf16.xpose.msra.mxu0 0
    %1228 = vmatprep.subr.bf16.mxu0 0
    %1229 = vmatpush1.bf16.xpose.msra.mxu0 0
    %1230 = vmatprep.subr.bf16.mxu0 0
    %1231 = vmatpush1.bf16.xpose.msra.mxu0 0
    %1232 = vmatprep.subr.bf16.mxu0 0
    %1233 = vmatpush1.bf16.xpose.msra.mxu0 0
    %1234 = vmatprep.subr.bf16.mxu0 0
    %1235 = vmatpush1.bf16.xpose.msra.mxu0 0
    %1236 = vmatprep.subr.bf16.mxu0 0
    %1237 = vmatpush1.bf16.xpose.msra.mxu0 0
    %1238 = vmatprep.subr.bf16.mxu0 0
    %1239 = vmatpush1.bf16.xpose.msra.mxu0 0
    %1240 = vmatprep.subr.bf16.mxu0 0
    %1241 = vmatpush1.bf16.xpose.msra.mxu0 0
    %1242 = vmatprep.subr.bf16.mxu0 0
    %1243 = vmatpush1.bf16.xpose.msra.mxu0 0
    %1244 = vmatprep.subr.bf16.mxu0 0
    %1245 = vmatpush1.bf16.xpose.msra.mxu0 0
    %1246 = vmatprep.subr.bf16.mxu0 0
    %1247 = vmatpush1.bf16.xpose.msra.mxu0 0
    %1248 = vmatprep.subr.bf16.mxu0 0
    %1249 = vmatpush1.bf16.xpose.msra.mxu0 0
    %1250 = vmatprep.mubr.bf16.mxu0 0
    %1251 = vmatmul.mubr.bf16.gmra.mrb[0].mxu0 %v1213
    %v1252 = vpop.f32.mrb[0].mxu0
    %v1253 = vadd.f32 0.0, %v1252
    %v1254 = vpop.f32.mrb[0].mxu0
    %v1255 = vpop.f32.mrb[0].mxu0
    %v1256 = vpop.f32.mrb[0].mxu0
    %1257 = vdwg.mxu0
    %v1259 = vsel %vm1211, %v1196, 0
    %v1262 = vsel %vm1211, %v1204, 0
    %1264 = vmatprep.subr.bf16.mxu0 0
    %1265 = vmatpush1.bf16.xpose.msra.mxu0 %v1262
    %1266 = vmatprep.subr.bf16.mxu0 0
    %1267 = vmatpush1.bf16.xpose.msra.mxu0 0
    %1268 = vmatprep.subr.bf16.mxu0 0
    %1269 = vmatpush1.bf16.xpose.msra.mxu0 0
    %1270 = vmatprep.subr.bf16.mxu0 0
    %1271 = vmatpush1.bf16.xpose.msra.mxu0 0
    %1272 = vmatprep.subr.bf16.mxu0 0
    %1273 = vmatpush1.bf16.xpose.msra.mxu0 0
    %1274 = vmatprep.subr.bf16.mxu0 0
    %1275 = vmatpush1.bf16.xpose.msra.mxu0 0
    %1276 = vmatprep.subr.bf16.mxu0 0
    %1277 = vmatpush1.bf16.xpose.msra.mxu0 0
    %1278 = vmatprep.subr.bf16.mxu0 0
    %1279 = vmatpush1.bf16.xpose.msra.mxu0 0
    %1280 = vmatprep.subr.bf16.mxu0 0
    %1281 = vmatpush1.bf16.xpose.msra.mxu0 0
    %1282 = vmatprep.subr.bf16.mxu0 0
    %1283 = vmatpush1.bf16.xpose.msra.mxu0 0
    %1284 = vmatprep.subr.bf16.mxu0 0
    %1285 = vmatpush1.bf16.xpose.msra.mxu0 0
    %1286 = vmatprep.subr.bf16.mxu0 0
    %1287 = vmatpush1.bf16.xpose.msra.mxu0 0
    %1288 = vmatprep.subr.bf16.mxu0 0
    %1289 = vmatpush1.bf16.xpose.msra.mxu0 0
    %1290 = vmatprep.subr.bf16.mxu0 0
    %1291 = vmatpush1.bf16.xpose.msra.mxu0 0
    %1292 = vmatprep.subr.bf16.mxu0 0
    %1293 = vmatpush1.bf16.xpose.msra.mxu0 0
    %1294 = vmatprep.subr.bf16.mxu0 0
    %1295 = vmatpush1.bf16.xpose.msra.mxu0 0
    %1296 = vmatprep.mubr.bf16.mxu0 0
    %1297 = vmatmul.mubr.bf16.gmra.mrb[0].mxu0 %v1259
    %v1298 = vpop.f32.mrb[0].mxu0
    %v1299 = vadd.f32 0.0, %v1298
    %v1300 = vpop.f32.mrb[0].mxu0
    %v1301 = vpop.f32.mrb[0].mxu0
    %v1302 = vpop.f32.mrb[0].mxu0
    %1303 = vdwg.mxu0
    %v1305 = vsel %vm1211, %v1197, 0
    %v1308 = vsel %vm1211, %v1205, 0
    %1310 = vmatprep.subr.bf16.mxu0 0
    %1311 = vmatpush1.bf16.xpose.msra.mxu0 %v1308
    %1312 = vmatprep.subr.bf16.mxu0 0
    %1313 = vmatpush1.bf16.xpose.msra.mxu0 0
    %1314 = vmatprep.subr.bf16.mxu0 0
    %1315 = vmatpush1.bf16.xpose.msra.mxu0 0
    %1316 = vmatprep.subr.bf16.mxu0 0
    %1317 = vmatpush1.bf16.xpose.msra.mxu0 0
    %1318 = vmatprep.subr.bf16.mxu0 0
    %1319 = vmatpush1.bf16.xpose.msra.mxu0 0
    %1320 = vmatprep.subr.bf16.mxu0 0
    %1321 = vmatpush1.bf16.xpose.msra.mxu0 0
    %1322 = vmatprep.subr.bf16.mxu0 0
    %1323 = vmatpush1.bf16.xpose.msra.mxu0 0
    %1324 = vmatprep.subr.bf16.mxu0 0
    %1325 = vmatpush1.bf16.xpose.msra.mxu0 0
    %1326 = vmatprep.subr.bf16.mxu0 0
    %1327 = vmatpush1.bf16.xpose.msra.mxu0 0
    %1328 = vmatprep.subr.bf16.mxu0 0
    %1329 = vmatpush1.bf16.xpose.msra.mxu0 0
    %1330 = vmatprep.subr.bf16.mxu0 0
    %1331 = vmatpush1.bf16.xpose.msra.mxu0 0
    %1332 = vmatprep.subr.bf16.mxu0 0
    %1333 = vmatpush1.bf16.xpose.msra.mxu0 0
    %1334 = vmatprep.subr.bf16.mxu0 0
    %1335 = vmatpush1.bf16.xpose.msra.mxu0 0
    %1336 = vmatprep.subr.bf16.mxu0 0
    %1337 = vmatpush1.bf16.xpose.msra.mxu0 0
    %1338 = vmatprep.subr.bf16.mxu0 0
    %1339 = vmatpush1.bf16.xpose.msra.mxu0 0
    %1340 = vmatprep.subr.bf16.mxu0 0
    %1341 = vmatpush1.bf16.xpose.msra.mxu0 0
    %1342 = vmatprep.mubr.bf16.mxu0 0
    %1343 = vmatmul.mubr.bf16.gmra.mrb[0].mxu0 %v1305
    %v1344 = vpop.f32.mrb[0].mxu0
    %v1345 = vadd.f32 0.0, %v1344
    %v1346 = vpop.f32.mrb[0].mxu0
    %v1347 = vpop.f32.mrb[0].mxu0
    %v1348 = vpop.f32.mrb[0].mxu0
    %1349 = vdwg.mxu0
    %v1351 = vsel %vm1211, %v1198, 0
    %v1354 = vsel %vm1211, %v1206, 0
    %1356 = vmatprep.subr.bf16.mxu0 0
    %1357 = vmatpush1.bf16.xpose.msra.mxu0 %v1354
    %1358 = vmatprep.subr.bf16.mxu0 0
    %1359 = vmatpush1.bf16.xpose.msra.mxu0 0
    %1360 = vmatprep.subr.bf16.mxu0 0
    %1361 = vmatpush1.bf16.xpose.msra.mxu0 0
    %1362 = vmatprep.subr.bf16.mxu0 0
    %1363 = vmatpush1.bf16.xpose.msra.mxu0 0
    %1364 = vmatprep.subr.bf16.mxu0 0
    %1365 = vmatpush1.bf16.xpose.msra.mxu0 0
    %1366 = vmatprep.subr.bf16.mxu0 0
    %1367 = vmatpush1.bf16.xpose.msra.mxu0 0
    %1368 = vmatprep.subr.bf16.mxu0 0
    %1369 = vmatpush1.bf16.xpose.msra.mxu0 0
    %1370 = vmatprep.subr.bf16.mxu0 0
    %1371 = vmatpush1.bf16.xpose.msra.mxu0 0
    %1372 = vmatprep.subr.bf16.mxu0 0
    %1373 = vmatpush1.bf16.xpose.msra.mxu0 0
    %1374 = vmatprep.subr.bf16.mxu0 0
    %1375 = vmatpush1.bf16.xpose.msra.mxu0 0
    %1376 = vmatprep.subr.bf16.mxu0 0
    %1377 = vmatpush1.bf16.xpose.msra.mxu0 0
    %1378 = vmatprep.subr.bf16.mxu0 0
    %1379 = vmatpush1.bf16.xpose.msra.mxu0 0
    %1380 = vmatprep.subr.bf16.mxu0 0
    %1381 = vmatpush1.bf16.xpose.msra.mxu0 0
    %1382 = vmatprep.subr.bf16.mxu0 0
    %1383 = vmatpush1.bf16.xpose.msra.mxu0 0
    %1384 = vmatprep.subr.bf16.mxu0 0
    %1385 = vmatpush1.bf16.xpose.msra.mxu0 0
    %1386 = vmatprep.subr.bf16.mxu0 0
    %1387 = vmatpush1.bf16.xpose.msra.mxu0 0
    %1388 = vmatprep.mubr.bf16.mxu0 0
    %1389 = vmatmul.mubr.bf16.gmra.mrb[0].mxu0 %v1351
    %v1390 = vpop.f32.mrb[0].mxu0
    %v1391 = vadd.f32 0.0, %v1390
    %v1392 = vpop.f32.mrb[0].mxu0
    %v1393 = vpop.f32.mrb[0].mxu0
    %v1394 = vpop.f32.mrb[0].mxu0
    %1395 = vdwg.mxu0
    %v1397 = vsel %vm1211, %v1199, 0
    %v1400 = vsel %vm1211, %v1207, 0
    %1402 = vmatprep.subr.bf16.mxu0 0
    %1403 = vmatpush1.bf16.xpose.msra.mxu0 %v1400
    %1404 = vmatprep.subr.bf16.mxu0 0
    %1405 = vmatpush1.bf16.xpose.msra.mxu0 0
    %1406 = vmatprep.subr.bf16.mxu0 0
    %1407 = vmatpush1.bf16.xpose.msra.mxu0 0
    %1408 = vmatprep.subr.bf16.mxu0 0
    %1409 = vmatpush1.bf16.xpose.msra.mxu0 0
    %1410 = vmatprep.subr.bf16.mxu0 0
    %1411 = vmatpush1.bf16.xpose.msra.mxu0 0
    %1412 = vmatprep.subr.bf16.mxu0 0
    %1413 = vmatpush1.bf16.xpose.msra.mxu0 0
    %1414 = vmatprep.subr.bf16.mxu0 0
    %1415 = vmatpush1.bf16.xpose.msra.mxu0 0
    %1416 = vmatprep.subr.bf16.mxu0 0
    %1417 = vmatpush1.bf16.xpose.msra.mxu0 0
    %1418 = vmatprep.subr.bf16.mxu0 0
    %1419 = vmatpush1.bf16.xpose.msra.mxu0 0
    %1420 = vmatprep.subr.bf16.mxu0 0
    %1421 = vmatpush1.bf16.xpose.msra.mxu0 0
    %1422 = vmatprep.subr.bf16.mxu0 0
    %1423 = vmatpush1.bf16.xpose.msra.mxu0 0
    %1424 = vmatprep.subr.bf16.mxu0 0
    %1425 = vmatpush1.bf16.xpose.msra.mxu0 0
    %1426 = vmatprep.subr.bf16.mxu0 0
    %1427 = vmatpush1.bf16.xpose.msra.mxu0 0
    %1428 = vmatprep.subr.bf16.mxu0 0
    %1429 = vmatpush1.bf16.xpose.msra.mxu0 0
    %1430 = vmatprep.subr.bf16.mxu0 0
    %1431 = vmatpush1.bf16.xpose.msra.mxu0 0
    %1432 = vmatprep.subr.bf16.mxu0 0
    %1433 = vmatpush1.bf16.xpose.msra.mxu0 0
    %1434 = vmatprep.mubr.bf16.mxu0 0
    %1435 = vmatmul.mubr.bf16.gmra.mrb[0].mxu0 %v1397
    %v1436 = vpop.f32.mrb[0].mxu0
    %v1437 = vadd.f32 0.0, %v1436
    %v1438 = vpop.f32.mrb[0].mxu0
    %v1439 = vpop.f32.mrb[0].mxu0
    %v1440 = vpop.f32.mrb[0].mxu0
    %1441 = vdwg.mxu0
    %v1443 = vsel %vm1211, %v1200, 0
    %v1446 = vsel %vm1211, %v1208, 0
    %1448 = vmatprep.subr.bf16.mxu0 0
    %1449 = vmatpush1.bf16.xpose.msra.mxu0 %v1446
    %1450 = vmatprep.subr.bf16.mxu0 0
    %1451 = vmatpush1.bf16.xpose.msra.mxu0 0
    %1452 = vmatprep.subr.bf16.mxu0 0
    %1453 = vmatpush1.bf16.xpose.msra.mxu0 0
    %1454 = vmatprep.subr.bf16.mxu0 0
    %1455 = vmatpush1.bf16.xpose.msra.mxu0 0
    %1456 = vmatprep.subr.bf16.mxu0 0
    %1457 = vmatpush1.bf16.xpose.msra.mxu0 0
    %1458 = vmatprep.subr.bf16.mxu0 0
    %1459 = vmatpush1.bf16.xpose.msra.mxu0 0
    %1460 = vmatprep.subr.bf16.mxu0 0
    %1461 = vmatpush1.bf16.xpose.msra.mxu0 0
    %1462 = vmatprep.subr.bf16.mxu0 0
    %1463 = vmatpush1.bf16.xpose.msra.mxu0 0
    %1464 = vmatprep.subr.bf16.mxu0 0
    %1465 = vmatpush1.bf16.xpose.msra.mxu0 0
    %1466 = vmatprep.subr.bf16.mxu0 0
    %1467 = vmatpush1.bf16.xpose.msra.mxu0 0
    %1468 = vmatprep.subr.bf16.mxu0 0
    %1469 = vmatpush1.bf16.xpose.msra.mxu0 0
    %1470 = vmatprep.subr.bf16.mxu0 0
    %1471 = vmatpush1.bf16.xpose.msra.mxu0 0
    %1472 = vmatprep.subr.bf16.mxu0 0
    %1473 = vmatpush1.bf16.xpose.msra.mxu0 0
    %1474 = vmatprep.subr.bf16.mxu0 0
    %1475 = vmatpush1.bf16.xpose.msra.mxu0 0
    %1476 = vmatprep.subr.bf16.mxu0 0
    %1477 = vmatpush1.bf16.xpose.msra.mxu0 0
    %1478 = vmatprep.subr.bf16.mxu0 0
    %1479 = vmatpush1.bf16.xpose.msra.mxu0 0
    %1480 = vmatprep.mubr.bf16.mxu0 0
    %1481 = vmatmul.mubr.bf16.gmra.mrb[0].mxu0 %v1443
    %v1482 = vpop.f32.mrb[0].mxu0
    %v1483 = vadd.f32 0.0, %v1482
    %v1484 = vpop.f32.mrb[0].mxu0
    %v1485 = vpop.f32.mrb[0].mxu0
    %v1486 = vpop.f32.mrb[0].mxu0
    %1487 = vdwg.mxu0
    %v1489 = vsel %vm1211, %v1201, 0
    %v1492 = vsel %vm1211, %v1209, 0
    %1494 = vmatprep.subr.bf16.mxu0 0
    %1495 = vmatpush1.bf16.xpose.msra.mxu0 %v1492
    %1496 = vmatprep.subr.bf16.mxu0 0
    %1497 = vmatpush1.bf16.xpose.msra.mxu0 0
    %1498 = vmatprep.subr.bf16.mxu0 0
    %1499 = vmatpush1.bf16.xpose.msra.mxu0 0
    %1500 = vmatprep.subr.bf16.mxu0 0
    %1501 = vmatpush1.bf16.xpose.msra.mxu0 0
    %1502 = vmatprep.subr.bf16.mxu0 0
    %1503 = vmatpush1.bf16.xpose.msra.mxu0 0
    %1504 = vmatprep.subr.bf16.mxu0 0
    %1505 = vmatpush1.bf16.xpose.msra.mxu0 0
    %1506 = vmatprep.subr.bf16.mxu0 0
    %1507 = vmatpush1.bf16.xpose.msra.mxu0 0
    %1508 = vmatprep.subr.bf16.mxu0 0
    %1509 = vmatpush1.bf16.xpose.msra.mxu0 0
    %1510 = vmatprep.subr.bf16.mxu0 0
    %1511 = vmatpush1.bf16.xpose.msra.mxu0 0
    %1512 = vmatprep.subr.bf16.mxu0 0
    %1513 = vmatpush1.bf16.xpose.msra.mxu0 0
    %1514 = vmatprep.subr.bf16.mxu0 0
    %1515 = vmatpush1.bf16.xpose.msra.mxu0 0
    %1516 = vmatprep.subr.bf16.mxu0 0
    %1517 = vmatpush1.bf16.xpose.msra.mxu0 0
    %1518 = vmatprep.subr.bf16.mxu0 0
    %1519 = vmatpush1.bf16.xpose.msra.mxu0 0
    %1520 = vmatprep.subr.bf16.mxu0 0
    %1521 = vmatpush1.bf16.xpose.msra.mxu0 0
    %1522 = vmatprep.subr.bf16.mxu0 0
    %1523 = vmatpush1.bf16.xpose.msra.mxu0 0
    %1524 = vmatprep.subr.bf16.mxu0 0
    %1525 = vmatpush1.bf16.xpose.msra.mxu0 0
    %1526 = vmatprep.mubr.bf16.mxu0 0
    %1527 = vmatmul.mubr.bf16.gmra.mrb[0].mxu0 %v1489
    %v1528 = vpop.f32.mrb[0].mxu0
    %v1529 = vadd.f32 0.0, %v1528
    %v1530 = vpop.f32.mrb[0].mxu0
    %v1531 = vpop.f32.mrb[0].mxu0
    %v1532 = vpop.f32.mrb[0].mxu0
    %1533 = vdwg.mxu0
    %v1535 = vsel %vm1211, %v1202, 0
    %v1538 = vsel %vm1211, %v1210, 0
    %1540 = vmatprep.subr.bf16.mxu0 0
    %1541 = vmatpush1.bf16.xpose.msra.mxu0 %v1538
    %1542 = vmatprep.subr.bf16.mxu0 0
    %1543 = vmatpush1.bf16.xpose.msra.mxu0 0
    %1544 = vmatprep.subr.bf16.mxu0 0
    %1545 = vmatpush1.bf16.xpose.msra.mxu0 0
    %1546 = vmatprep.subr.bf16.mxu0 0
    %1547 = vmatpush1.bf16.xpose.msra.mxu0 0
    %1548 = vmatprep.subr.bf16.mxu0 0
    %1549 = vmatpush1.bf16.xpose.msra.mxu0 0
    %1550 = vmatprep.subr.bf16.mxu0 0
    %1551 = vmatpush1.bf16.xpose.msra.mxu0 0
    %1552 = vmatprep.subr.bf16.mxu0 0
    %1553 = vmatpush1.bf16.xpose.msra.mxu0 0
    %1554 = vmatprep.subr.bf16.mxu0 0
    %1555 = vmatpush1.bf16.xpose.msra.mxu0 0
    %1556 = vmatprep.subr.bf16.mxu0 0
    %1557 = vmatpush1.bf16.xpose.msra.mxu0 0
    %1558 = vmatprep.subr.bf16.mxu0 0
    %1559 = vmatpush1.bf16.xpose.msra.mxu0 0
    %1560 = vmatprep.subr.bf16.mxu0 0
    %1561 = vmatpush1.bf16.xpose.msra.mxu0 0
    %1562 = vmatprep.subr.bf16.mxu0 0
    %1563 = vmatpush1.bf16.xpose.msra.mxu0 0
    %1564 = vmatprep.subr.bf16.mxu0 0
    %1565 = vmatpush1.bf16.xpose.msra.mxu0 0
    %1566 = vmatprep.subr.bf16.mxu0 0
    %1567 = vmatpush1.bf16.xpose.msra.mxu0 0
    %1568 = vmatprep.subr.bf16.mxu0 0
    %1569 = vmatpush1.bf16.xpose.msra.mxu0 0
    %1570 = vmatprep.subr.bf16.mxu0 0
    %1571 = vmatpush1.bf16.xpose.msra.mxu0 0
    %1572 = vmatprep.mubr.bf16.mxu0 0
    %1573 = vmatmul.mubr.bf16.gmra.mrb[0].mxu0 %v1535
    %v1574 = vpop.f32.mrb[0].mxu0
    %v1575 = vadd.f32 0.0, %v1574
    %v1576 = vpop.f32.mrb[0].mxu0
    %v1577 = vpop.f32.mrb[0].mxu0
    %v1578 = vpop.f32.mrb[0].mxu0
    %1579 = vdwg.mxu0
    %v1580 = vsel %vm482, %v1253, -inf
    %1581 = vmax.xlane.f32.xlu0 %v1580
    %v1582 = vpop.xlane.xlu0 %1581
    %v1583 = vsel %vm482, %v1299, -inf
    %1584 = vmax.xlane.f32.xlu0 %v1583
    %v1585 = vpop.xlane.xlu0 %1584
    %v1586 = vsel %vm482, %v1345, -inf
    %1587 = vmax.xlane.f32.xlu0 %v1586
    %v1588 = vpop.xlane.xlu0 %1587
    %v1589 = vsel %vm482, %v1391, -inf
    %1590 = vmax.xlane.f32.xlu0 %v1589
    %v1591 = vpop.xlane.xlu0 %1590
    %v1592 = vsel %vm482, %v1437, -inf
    %1593 = vmax.xlane.f32.xlu0 %v1592
    %v1594 = vpop.xlane.xlu0 %1593
    %v1595 = vsel %vm482, %v1483, -inf
    %1596 = vmax.xlane.f32.xlu0 %v1595
    %v1597 = vpop.xlane.xlu0 %1596
    %v1598 = vsel %vm482, %v1529, -inf
    %1599 = vmax.xlane.f32.xlu0 %v1598
    %v1600 = vpop.xlane.xlu0 %1599
    %v1601 = vsel %vm482, %v1575, -inf
    %1602 = vmax.xlane.f32.xlu0 %v1601
    %v1603 = vpop.xlane.xlu0 %1602
    %v1604 = vsub.f32 %v1253, %v1582
    %v1605 = vsub.f32 %v1299, %v1585
    %v1606 = vsub.f32 %v1345, %v1588
    %v1607 = vsub.f32 %v1391, %v1591
    %v1608 = vsub.f32 %v1437, %v1594
    %v1609 = vsub.f32 %v1483, %v1597
    %v1610 = vsub.f32 %v1529, %v1600
    %v1611 = vsub.f32 %v1575, %v1603
    %v1612 = vmul.f32 %v1604, 1.442695
    %v1613 = vpow.pop %v1612
    %v1614 = vmul.f32 %v1605, 1.442695
    %v1615 = vpow.pop %v1614
    %v1616 = vmul.f32 %v1606, 1.442695
    %v1617 = vpow.pop %v1616
    %v1618 = vmul.f32 %v1607, 1.442695
    %v1619 = vpow.pop %v1618
    %v1620 = vmul.f32 %v1608, 1.442695
    %v1621 = vpow.pop %v1620
    %v1622 = vmul.f32 %v1609, 1.442695
    %v1623 = vpow.pop %v1622
    %v1624 = vmul.f32 %v1610, 1.442695
    %v1625 = vpow.pop %v1624
    %v1626 = vmul.f32 %v1611, 1.442695
    %v1627 = vpow.pop %v1626
    %v1628 = vsel %vm482, %v1613, 0.0
    %1629 = vadd.xlane.f32.xlu0 %v1628
    %v1630 = vpop.xlane.xlu0 %1629
    %v1631 = vsel %vm482, %v1615, 0.0
    %1632 = vadd.xlane.f32.xlu0 %v1631
    %v1633 = vpop.xlane.xlu0 %1632
    %v1634 = vsel %vm482, %v1617, 0.0
    %1635 = vadd.xlane.f32.xlu0 %v1634
    %v1636 = vpop.xlane.xlu0 %1635
    %v1637 = vsel %vm482, %v1619, 0.0
    %1638 = vadd.xlane.f32.xlu0 %v1637
    %v1639 = vpop.xlane.xlu0 %1638
    %v1640 = vsel %vm482, %v1621, 0.0
    %1641 = vadd.xlane.f32.xlu0 %v1640
    %v1642 = vpop.xlane.xlu0 %1641
    %v1643 = vsel %vm482, %v1623, 0.0
    %1644 = vadd.xlane.f32.xlu0 %v1643
    %v1645 = vpop.xlane.xlu0 %1644
    %v1646 = vsel %vm482, %v1625, 0.0
    %1647 = vadd.xlane.f32.xlu0 %v1646
    %v1648 = vpop.xlane.xlu0 %1647
    %v1649 = vsel %vm482, %v1627, 0.0
    %1650 = vadd.xlane.f32.xlu0 %v1649
    %v1651 = vpop.xlane.xlu0 %1650
    %v1652 = vrcp.pop %v1630
    %v1653 = vrcp.pop %v1633
    %v1654 = vrcp.pop %v1636
    %v1655 = vrcp.pop %v1639
    %v1656 = vrcp.pop %v1642
    %v1657 = vrcp.pop %v1645
    %v1658 = vrcp.pop %v1648
    %v1659 = vrcp.pop %v1651
    %v1660 = vmul.f32 %v1613, %v1652
    %v1661 = vmul.f32 %v1615, %v1653
    %v1662 = vmul.f32 %v1617, %v1654
    %v1663 = vmul.f32 %v1619, %v1655
    %v1664 = vmul.f32 %v1621, %v1656
    %v1665 = vmul.f32 %v1623, %v1657
    %v1666 = vmul.f32 %v1625, %v1658
    %v1667 = vmul.f32 %v1627, %v1659
    %v1668 = vpack.c.bf16 %v1660, %v1660
    %v1669 = vpack.c.bf16 %v1661, %v1661
    %v1670 = vpack.c.bf16 %v1662, %v1662
    %v1671 = vpack.c.bf16 %v1663, %v1663
    %v1672 = vpack.c.bf16 %v1664, %v1664
    %v1673 = vpack.c.bf16 %v1665, %v1665
    %v1674 = vpack.c.bf16 %v1666, %v1666
    %v1675 = vpack.c.bf16 %v1667, %v1667
    %v1676 = vpack.c.bf16 %v887, %v884
    %v1677 = vpack.c.bf16 %v934, %v931
    %v1678 = vpack.c.bf16 %v981, %v978
    %v1679 = vpack.c.bf16 %v1028, %v1025
    %v1680 = vpack.c.bf16 %v1069, %v1066
    %v1681 = vpack.c.bf16 %v1110, %v1107
    %v1682 = vpack.c.bf16 %v1151, %v1148
    %v1683 = vpack.c.bf16 %v1192, %v1189
    %v1685 = vsel %vm482, %v1668, 0
    %1687 = vmatprep.subr.bf16.mxu0 0
    %1688 = vmatpush1.bf16.msra.mxu0 %v1676
    %1689 = vmatprep.subr.bf16.mxu0 0
    %1690 = vmatpush1.bf16.msra.mxu0 0
    %1691 = vmatprep.subr.bf16.mxu0 0
    %1692 = vmatpush1.bf16.msra.mxu0 0
    %1693 = vmatprep.subr.bf16.mxu0 0
    %1694 = vmatpush1.bf16.msra.mxu0 0
    %1695 = vmatprep.subr.bf16.mxu0 0
    %1696 = vmatpush1.bf16.msra.mxu0 0
    %1697 = vmatprep.subr.bf16.mxu0 0
    %1698 = vmatpush1.bf16.msra.mxu0 0
    %1699 = vmatprep.subr.bf16.mxu0 0
    %1700 = vmatpush1.bf16.msra.mxu0 0
    %1701 = vmatprep.subr.bf16.mxu0 0
    %1702 = vmatpush1.bf16.msra.mxu0 0
    %1703 = vmatprep.subr.bf16.mxu0 0
    %1704 = vmatpush1.bf16.msra.mxu0 0
    %1705 = vmatprep.subr.bf16.mxu0 0
    %1706 = vmatpush1.bf16.msra.mxu0 0
    %1707 = vmatprep.subr.bf16.mxu0 0
    %1708 = vmatpush1.bf16.msra.mxu0 0
    %1709 = vmatprep.subr.bf16.mxu0 0
    %1710 = vmatpush1.bf16.msra.mxu0 0
    %1711 = vmatprep.subr.bf16.mxu0 0
    %1712 = vmatpush1.bf16.msra.mxu0 0
    %1713 = vmatprep.subr.bf16.mxu0 0
    %1714 = vmatpush1.bf16.msra.mxu0 0
    %1715 = vmatprep.subr.bf16.mxu0 0
    %1716 = vmatpush1.bf16.msra.mxu0 0
    %1717 = vmatprep.subr.bf16.mxu0 0
    %1718 = vmatpush1.bf16.msra.mxu0 0
    %1719 = vmatprep.mubr.bf16.mxu0 0
    %1720 = vmatmul.mubr.bf16.gmra.mrb[0].mxu0 %v1685
    %v1721 = vpop.f32.mrb[0].mxu0
    %v1722 = vadd.f32 0.0, %v1721
    %v1723 = vpop.f32.mrb[0].mxu0
    %v1724 = vpop.f32.mrb[0].mxu0
    %v1725 = vpop.f32.mrb[0].mxu0
    %1726 = vdwg.mxu0
    %v1728 = vsel %vm482, %v1669, 0
    %1730 = vmatprep.subr.bf16.mxu0 0
    %1731 = vmatpush1.bf16.msra.mxu0 %v1677
    %1732 = vmatprep.subr.bf16.mxu0 0
    %1733 = vmatpush1.bf16.msra.mxu0 0
    %1734 = vmatprep.subr.bf16.mxu0 0
    %1735 = vmatpush1.bf16.msra.mxu0 0
    %1736 = vmatprep.subr.bf16.mxu0 0
    %1737 = vmatpush1.bf16.msra.mxu0 0
    %1738 = vmatprep.subr.bf16.mxu0 0
    %1739 = vmatpush1.bf16.msra.mxu0 0
    %1740 = vmatprep.subr.bf16.mxu0 0
    %1741 = vmatpush1.bf16.msra.mxu0 0
    %1742 = vmatprep.subr.bf16.mxu0 0
    %1743 = vmatpush1.bf16.msra.mxu0 0
    %1744 = vmatprep.subr.bf16.mxu0 0
    %1745 = vmatpush1.bf16.msra.mxu0 0
    %1746 = vmatprep.subr.bf16.mxu0 0
    %1747 = vmatpush1.bf16.msra.mxu0 0
    %1748 = vmatprep.subr.bf16.mxu0 0
    %1749 = vmatpush1.bf16.msra.mxu0 0
    %1750 = vmatprep.subr.bf16.mxu0 0
    %1751 = vmatpush1.bf16.msra.mxu0 0
    %1752 = vmatprep.subr.bf16.mxu0 0
    %1753 = vmatpush1.bf16.msra.mxu0 0
    %1754 = vmatprep.subr.bf16.mxu0 0
    %1755 = vmatpush1.bf16.msra.mxu0 0
    %1756 = vmatprep.subr.bf16.mxu0 0
    %1757 = vmatpush1.bf16.msra.mxu0 0
    %1758 = vmatprep.subr.bf16.mxu0 0
    %1759 = vmatpush1.bf16.msra.mxu0 0
    %1760 = vmatprep.subr.bf16.mxu0 0
    %1761 = vmatpush1.bf16.msra.mxu0 0
    %1762 = vmatprep.mubr.bf16.mxu0 0
    %1763 = vmatmul.mubr.bf16.gmra.mrb[0].mxu0 %v1728
    %v1764 = vpop.f32.mrb[0].mxu0
    %v1765 = vadd.f32 0.0, %v1764
    %v1766 = vpop.f32.mrb[0].mxu0
    %v1767 = vpop.f32.mrb[0].mxu0
    %v1768 = vpop.f32.mrb[0].mxu0
    %1769 = vdwg.mxu0
    %v1771 = vsel %vm482, %v1670, 0
    %1773 = vmatprep.subr.bf16.mxu0 0
    %1774 = vmatpush1.bf16.msra.mxu0 %v1678
    %1775 = vmatprep.subr.bf16.mxu0 0
    %1776 = vmatpush1.bf16.msra.mxu0 0
    %1777 = vmatprep.subr.bf16.mxu0 0
    %1778 = vmatpush1.bf16.msra.mxu0 0
    %1779 = vmatprep.subr.bf16.mxu0 0
    %1780 = vmatpush1.bf16.msra.mxu0 0
    %1781 = vmatprep.subr.bf16.mxu0 0
    %1782 = vmatpush1.bf16.msra.mxu0 0
    %1783 = vmatprep.subr.bf16.mxu0 0
    %1784 = vmatpush1.bf16.msra.mxu0 0
    %1785 = vmatprep.subr.bf16.mxu0 0
    %1786 = vmatpush1.bf16.msra.mxu0 0
    %1787 = vmatprep.subr.bf16.mxu0 0
    %1788 = vmatpush1.bf16.msra.mxu0 0
    %1789 = vmatprep.subr.bf16.mxu0 0
    %1790 = vmatpush1.bf16.msra.mxu0 0
    %1791 = vmatprep.subr.bf16.mxu0 0
    %1792 = vmatpush1.bf16.msra.mxu0 0
    %1793 = vmatprep.subr.bf16.mxu0 0
    %1794 = vmatpush1.bf16.msra.mxu0 0
    %1795 = vmatprep.subr.bf16.mxu0 0
    %1796 = vmatpush1.bf16.msra.mxu0 0
    %1797 = vmatprep.subr.bf16.mxu0 0
    %1798 = vmatpush1.bf16.msra.mxu0 0
    %1799 = vmatprep.subr.bf16.mxu0 0
    %1800 = vmatpush1.bf16.msra.mxu0 0
    %1801 = vmatprep.subr.bf16.mxu0 0
    %1802 = vmatpush1.bf16.msra.mxu0 0
    %1803 = vmatprep.subr.bf16.mxu0 0
    %1804 = vmatpush1.bf16.msra.mxu0 0
    %1805 = vmatprep.mubr.bf16.mxu0 0
    %1806 = vmatmul.mubr.bf16.gmra.mrb[0].mxu0 %v1771
    %v1807 = vpop.f32.mrb[0].mxu0
    %v1808 = vadd.f32 0.0, %v1807
    %v1809 = vpop.f32.mrb[0].mxu0
    %v1810 = vpop.f32.mrb[0].mxu0
    %v1811 = vpop.f32.mrb[0].mxu0
    %1812 = vdwg.mxu0
    %v1814 = vsel %vm482, %v1671, 0
    %1816 = vmatprep.subr.bf16.mxu0 0
    %1817 = vmatpush1.bf16.msra.mxu0 %v1679
    %1818 = vmatprep.subr.bf16.mxu0 0
    %1819 = vmatpush1.bf16.msra.mxu0 0
    %1820 = vmatprep.subr.bf16.mxu0 0
    %1821 = vmatpush1.bf16.msra.mxu0 0
    %1822 = vmatprep.subr.bf16.mxu0 0
    %1823 = vmatpush1.bf16.msra.mxu0 0
    %1824 = vmatprep.subr.bf16.mxu0 0
    %1825 = vmatpush1.bf16.msra.mxu0 0
    %1826 = vmatprep.subr.bf16.mxu0 0
    %1827 = vmatpush1.bf16.msra.mxu0 0
    %1828 = vmatprep.subr.bf16.mxu0 0
    %1829 = vmatpush1.bf16.msra.mxu0 0
    %1830 = vmatprep.subr.bf16.mxu0 0
    %1831 = vmatpush1.bf16.msra.mxu0 0
    %1832 = vmatprep.subr.bf16.mxu0 0
    %1833 = vmatpush1.bf16.msra.mxu0 0
    %1834 = vmatprep.subr.bf16.mxu0 0
    %1835 = vmatpush1.bf16.msra.mxu0 0
    %1836 = vmatprep.subr.bf16.mxu0 0
    %1837 = vmatpush1.bf16.msra.mxu0 0
    %1838 = vmatprep.subr.bf16.mxu0 0
    %1839 = vmatpush1.bf16.msra.mxu0 0
    %1840 = vmatprep.subr.bf16.mxu0 0
    %1841 = vmatpush1.bf16.msra.mxu0 0
    %1842 = vmatprep.subr.bf16.mxu0 0
    %1843 = vmatpush1.bf16.msra.mxu0 0
    %1844 = vmatprep.subr.bf16.mxu0 0
    %1845 = vmatpush1.bf16.msra.mxu0 0
    %1846 = vmatprep.subr.bf16.mxu0 0
    %1847 = vmatpush1.bf16.msra.mxu0 0
    %1848 = vmatprep.mubr.bf16.mxu0 0
    %1849 = vmatmul.mubr.bf16.gmra.mrb[0].mxu0 %v1814
    %v1850 = vpop.f32.mrb[0].mxu0
    %v1851 = vadd.f32 0.0, %v1850
    %v1852 = vpop.f32.mrb[0].mxu0
    %v1853 = vpop.f32.mrb[0].mxu0
    %v1854 = vpop.f32.mrb[0].mxu0
    %1855 = vdwg.mxu0
    %v1857 = vsel %vm482, %v1672, 0
    %1859 = vmatprep.subr.bf16.mxu0 0
    %1860 = vmatpush1.bf16.msra.mxu0 %v1680
    %1861 = vmatprep.subr.bf16.mxu0 0
    %1862 = vmatpush1.bf16.msra.mxu0 0
    %1863 = vmatprep.subr.bf16.mxu0 0
    %1864 = vmatpush1.bf16.msra.mxu0 0
    %1865 = vmatprep.subr.bf16.mxu0 0
    %1866 = vmatpush1.bf16.msra.mxu0 0
    %1867 = vmatprep.subr.bf16.mxu0 0
    %1868 = vmatpush1.bf16.msra.mxu0 0
    %1869 = vmatprep.subr.bf16.mxu0 0
    %1870 = vmatpush1.bf16.msra.mxu0 0
    %1871 = vmatprep.subr.bf16.mxu0 0
    %1872 = vmatpush1.bf16.msra.mxu0 0
    %1873 = vmatprep.subr.bf16.mxu0 0
    %1874 = vmatpush1.bf16.msra.mxu0 0
    %1875 = vmatprep.subr.bf16.mxu0 0
    %1876 = vmatpush1.bf16.msra.mxu0 0
    %1877 = vmatprep.subr.bf16.mxu0 0
    %1878 = vmatpush1.bf16.msra.mxu0 0
    %1879 = vmatprep.subr.bf16.mxu0 0
    %1880 = vmatpush1.bf16.msra.mxu0 0
    %1881 = vmatprep.subr.bf16.mxu0 0
    %1882 = vmatpush1.bf16.msra.mxu0 0
    %1883 = vmatprep.subr.bf16.mxu0 0
    %1884 = vmatpush1.bf16.msra.mxu0 0
    %1885 = vmatprep.subr.bf16.mxu0 0
    %1886 = vmatpush1.bf16.msra.mxu0 0
    %1887 = vmatprep.subr.bf16.mxu0 0
    %1888 = vmatpush1.bf16.msra.mxu0 0
    %1889 = vmatprep.subr.bf16.mxu0 0
    %1890 = vmatpush1.bf16.msra.mxu0 0
    %1891 = vmatprep.mubr.bf16.mxu0 0
    %1892 = vmatmul.mubr.bf16.gmra.mrb[0].mxu0 %v1857
    %v1893 = vpop.f32.mrb[0].mxu0
    %v1894 = vadd.f32 0.0, %v1893
    %v1895 = vpop.f32.mrb[0].mxu0
    %v1896 = vpop.f32.mrb[0].mxu0
    %v1897 = vpop.f32.mrb[0].mxu0
    %1898 = vdwg.mxu0
    %v1900 = vsel %vm482, %v1673, 0
    %1902 = vmatprep.subr.bf16.mxu0 0
    %1903 = vmatpush1.bf16.msra.mxu0 %v1681
    %1904 = vmatprep.subr.bf16.mxu0 0
    %1905 = vmatpush1.bf16.msra.mxu0 0
    %1906 = vmatprep.subr.bf16.mxu0 0
    %1907 = vmatpush1.bf16.msra.mxu0 0
    %1908 = vmatprep.subr.bf16.mxu0 0
    %1909 = vmatpush1.bf16.msra.mxu0 0
    %1910 = vmatprep.subr.bf16.mxu0 0
    %1911 = vmatpush1.bf16.msra.mxu0 0
    %1912 = vmatprep.subr.bf16.mxu0 0
    %1913 = vmatpush1.bf16.msra.mxu0 0
    %1914 = vmatprep.subr.bf16.mxu0 0
    %1915 = vmatpush1.bf16.msra.mxu0 0
    %1916 = vmatprep.subr.bf16.mxu0 0
    %1917 = vmatpush1.bf16.msra.mxu0 0
    %1918 = vmatprep.subr.bf16.mxu0 0
    %1919 = vmatpush1.bf16.msra.mxu0 0
    %1920 = vmatprep.subr.bf16.mxu0 0
    %1921 = vmatpush1.bf16.msra.mxu0 0
    %1922 = vmatprep.subr.bf16.mxu0 0
    %1923 = vmatpush1.bf16.msra.mxu0 0
    %1924 = vmatprep.subr.bf16.mxu0 0
    %1925 = vmatpush1.bf16.msra.mxu0 0
    %1926 = vmatprep.subr.bf16.mxu0 0
    %1927 = vmatpush1.bf16.msra.mxu0 0
    %1928 = vmatprep.subr.bf16.mxu0 0
    %1929 = vmatpush1.bf16.msra.mxu0 0
    %1930 = vmatprep.subr.bf16.mxu0 0
    %1931 = vmatpush1.bf16.msra.mxu0 0
    %1932 = vmatprep.subr.bf16.mxu0 0
    %1933 = vmatpush1.bf16.msra.mxu0 0
    %1934 = vmatprep.mubr.bf16.mxu0 0
    %1935 = vmatmul.mubr.bf16.gmra.mrb[0].mxu0 %v1900
    %v1936 = vpop.f32.mrb[0].mxu0
    %v1937 = vadd.f32 0.0, %v1936
    %v1938 = vpop.f32.mrb[0].mxu0
    %v1939 = vpop.f32.mrb[0].mxu0
    %v1940 = vpop.f32.mrb[0].mxu0
    %1941 = vdwg.mxu0
    %v1943 = vsel %vm482, %v1674, 0
    %1945 = vmatprep.subr.bf16.mxu0 0
    %1946 = vmatpush1.bf16.msra.mxu0 %v1682
    %1947 = vmatprep.subr.bf16.mxu0 0
    %1948 = vmatpush1.bf16.msra.mxu0 0
    %1949 = vmatprep.subr.bf16.mxu0 0
    %1950 = vmatpush1.bf16.msra.mxu0 0
    %1951 = vmatprep.subr.bf16.mxu0 0
    %1952 = vmatpush1.bf16.msra.mxu0 0
    %1953 = vmatprep.subr.bf16.mxu0 0
    %1954 = vmatpush1.bf16.msra.mxu0 0
    %1955 = vmatprep.subr.bf16.mxu0 0
    %1956 = vmatpush1.bf16.msra.mxu0 0
    %1957 = vmatprep.subr.bf16.mxu0 0
    %1958 = vmatpush1.bf16.msra.mxu0 0
    %1959 = vmatprep.subr.bf16.mxu0 0
    %1960 = vmatpush1.bf16.msra.mxu0 0
    %1961 = vmatprep.subr.bf16.mxu0 0
    %1962 = vmatpush1.bf16.msra.mxu0 0
    %1963 = vmatprep.subr.bf16.mxu0 0
    %1964 = vmatpush1.bf16.msra.mxu0 0
    %1965 = vmatprep.subr.bf16.mxu0 0
    %1966 = vmatpush1.bf16.msra.mxu0 0
    %1967 = vmatprep.subr.bf16.mxu0 0
    %1968 = vmatpush1.bf16.msra.mxu0 0
    %1969 = vmatprep.subr.bf16.mxu0 0
    %1970 = vmatpush1.bf16.msra.mxu0 0
    %1971 = vmatprep.subr.bf16.mxu0 0
    %1972 = vmatpush1.bf16.msra.mxu0 0
    %1973 = vmatprep.subr.bf16.mxu0 0
    %1974 = vmatpush1.bf16.msra.mxu0 0
    %1975 = vmatprep.subr.bf16.mxu0 0
    %1976 = vmatpush1.bf16.msra.mxu0 0
    %1977 = vmatprep.mubr.bf16.mxu0 0
    %1978 = vmatmul.mubr.bf16.gmra.mrb[0].mxu0 %v1943
    %v1979 = vpop.f32.mrb[0].mxu0
    %v1980 = vadd.f32 0.0, %v1979
    %v1981 = vpop.f32.mrb[0].mxu0
    %v1982 = vpop.f32.mrb[0].mxu0
    %v1983 = vpop.f32.mrb[0].mxu0
    %1984 = vdwg.mxu0
    %v1986 = vsel %vm482, %v1675, 0
    %1988 = vmatprep.subr.bf16.mxu0 0
    %1989 = vmatpush1.bf16.msra.mxu0 %v1683
    %1990 = vmatprep.subr.bf16.mxu0 0
    %1991 = vmatpush1.bf16.msra.mxu0 0
    %1992 = vmatprep.subr.bf16.mxu0 0
    %1993 = vmatpush1.bf16.msra.mxu0 0
    %1994 = vmatprep.subr.bf16.mxu0 0
    %1995 = vmatpush1.bf16.msra.mxu0 0
    %1996 = vmatprep.subr.bf16.mxu0 0
    %1997 = vmatpush1.bf16.msra.mxu0 0
    %1998 = vmatprep.subr.bf16.mxu0 0
    %1999 = vmatpush1.bf16.msra.mxu0 0
    %2000 = vmatprep.subr.bf16.mxu0 0
    %2001 = vmatpush1.bf16.msra.mxu0 0
    %2002 = vmatprep.subr.bf16.mxu0 0
    %2003 = vmatpush1.bf16.msra.mxu0 0
    %2004 = vmatprep.subr.bf16.mxu0 0
    %2005 = vmatpush1.bf16.msra.mxu0 0
    %2006 = vmatprep.subr.bf16.mxu0 0
    %2007 = vmatpush1.bf16.msra.mxu0 0
    %2008 = vmatprep.subr.bf16.mxu0 0
    %2009 = vmatpush1.bf16.msra.mxu0 0
    %2010 = vmatprep.subr.bf16.mxu0 0
    %2011 = vmatpush1.bf16.msra.mxu0 0
    %2012 = vmatprep.subr.bf16.mxu0 0
    %2013 = vmatpush1.bf16.msra.mxu0 0
    %2014 = vmatprep.subr.bf16.mxu0 0
    %2015 = vmatpush1.bf16.msra.mxu0 0
    %2016 = vmatprep.subr.bf16.mxu0 0
    %2017 = vmatpush1.bf16.msra.mxu0 0
    %2018 = vmatprep.subr.bf16.mxu0 0
    %2019 = vmatpush1.bf16.msra.mxu0 0
    %2020 = vmatprep.mubr.bf16.mxu0 0
    %2021 = vmatmul.mubr.bf16.gmra.mrb[0].mxu0 %v1986
    %v2022 = vpop.f32.mrb[0].mxu0
    %v2023 = vadd.f32 0.0, %v2022
    %v2024 = vpop.f32.mrb[0].mxu0
    %v2025 = vpop.f32.mrb[0].mxu0
    %v2026 = vpop.f32.mrb[0].mxu0
    %2027 = vdwg.mxu0
    %v2028 = vpack.c.bf16 %v1722, %v1722
    %v2029 = vpack.c.bf16 %v1765, %v1765
    %v2030 = vpack.c.bf16 %v1808, %v1808
    %v2031 = vpack.c.bf16 %v1851, %v1851
    %v2032 = vpack.c.bf16 %v1894, %v1894
    %v2033 = vpack.c.bf16 %v1937, %v1937
    %v2034 = vpack.c.bf16 %v1980, %v1980
    %v2035 = vpack.c.bf16 %v2023, %v2023
    %v2036 = vld [vmem:[%s5] sm:$0xf]
    %v2037 = vld [vmem:[%s5 + $0x4] sm:$0xf]
    %v2038 = vld [vmem:[%s5 + $0x8] sm:$0xf]
    %v2039 = vld [vmem:[%s5 + $0xc] sm:$0xf]
    %v2041 = vsel %vm1211, %v2028, 0
    %vm2043 = vcmask 1043456
    %v2045 = vsel %vm2043, %v2036, 0
    %2047 = vmatprep.subr.bf16.mxu0 0
    %2048 = vmatpush1.bf16.msra.mxu0 %v2045
    %2049 = vmatprep.subr.bf16.mxu0 0
    %2050 = vmatpush1.bf16.msra.mxu0 0
    %2051 = vmatprep.subr.bf16.mxu0 0
    %2052 = vmatpush1.bf16.msra.mxu0 0
    %2053 = vmatprep.subr.bf16.mxu0 0
    %2054 = vmatpush1.bf16.msra.mxu0 0
    %2055 = vmatprep.subr.bf16.mxu0 0
    %2056 = vmatpush1.bf16.msra.mxu0 0
    %2057 = vmatprep.subr.bf16.mxu0 0
    %2058 = vmatpush1.bf16.msra.mxu0 0
    %2059 = vmatprep.subr.bf16.mxu0 0
    %2060 = vmatpush1.bf16.msra.mxu0 0
    %2061 = vmatprep.subr.bf16.mxu0 0
    %2062 = vmatpush1.bf16.msra.mxu0 0
    %2063 = vmatprep.subr.bf16.mxu0 0
    %2064 = vmatpush1.bf16.msra.mxu0 0
    %2065 = vmatprep.subr.bf16.mxu0 0
    %2066 = vmatpush1.bf16.msra.mxu0 0
    %2067 = vmatprep.subr.bf16.mxu0 0
    %2068 = vmatpush1.bf16.msra.mxu0 0
    %2069 = vmatprep.subr.bf16.mxu0 0
    %2070 = vmatpush1.bf16.msra.mxu0 0
    %2071 = vmatprep.subr.bf16.mxu0 0
    %2072 = vmatpush1.bf16.msra.mxu0 0
    %2073 = vmatprep.subr.bf16.mxu0 0
    %2074 = vmatpush1.bf16.msra.mxu0 0
    %2075 = vmatprep.subr.bf16.mxu0 0
    %2076 = vmatpush1.bf16.msra.mxu0 0
    %2077 = vmatprep.subr.bf16.mxu0 0
    %2078 = vmatpush1.bf16.msra.mxu0 0
    %2079 = vmatprep.mubr.bf16.mxu0 0
    %2080 = vmatmul.mubr.bf16.gmra.mrb[0].mxu0 %v2041
    %v2081 = vpop.f32.mrb[0].mxu0
    %v2082 = vadd.f32 0.0, %v2081
    %v2083 = vpop.f32.mrb[0].mxu0
    %v2084 = vpop.f32.mrb[0].mxu0
    %v2085 = vpop.f32.mrb[0].mxu0
    %2086 = vdwg.mxu0
    %v2088 = vsel %vm1211, %v2029, 0
    %v2091 = vsel %vm2043, %v2037, 0
    %2093 = vmatprep.subr.bf16.mxu0 0
    %2094 = vmatpush1.bf16.msra.mxu0 %v2091
    %2095 = vmatprep.subr.bf16.mxu0 0
    %2096 = vmatpush1.bf16.msra.mxu0 0
    %2097 = vmatprep.subr.bf16.mxu0 0
    %2098 = vmatpush1.bf16.msra.mxu0 0
    %2099 = vmatprep.subr.bf16.mxu0 0
    %2100 = vmatpush1.bf16.msra.mxu0 0
    %2101 = vmatprep.subr.bf16.mxu0 0
    %2102 = vmatpush1.bf16.msra.mxu0 0
    %2103 = vmatprep.subr.bf16.mxu0 0
    %2104 = vmatpush1.bf16.msra.mxu0 0
    %2105 = vmatprep.subr.bf16.mxu0 0
    %2106 = vmatpush1.bf16.msra.mxu0 0
    %2107 = vmatprep.subr.bf16.mxu0 0
    %2108 = vmatpush1.bf16.msra.mxu0 0
    %2109 = vmatprep.subr.bf16.mxu0 0
    %2110 = vmatpush1.bf16.msra.mxu0 0
    %2111 = vmatprep.subr.bf16.mxu0 0
    %2112 = vmatpush1.bf16.msra.mxu0 0
    %2113 = vmatprep.subr.bf16.mxu0 0
    %2114 = vmatpush1.bf16.msra.mxu0 0
    %2115 = vmatprep.subr.bf16.mxu0 0
    %2116 = vmatpush1.bf16.msra.mxu0 0
    %2117 = vmatprep.subr.bf16.mxu0 0
    %2118 = vmatpush1.bf16.msra.mxu0 0
    %2119 = vmatprep.subr.bf16.mxu0 0
    %2120 = vmatpush1.bf16.msra.mxu0 0
    %2121 = vmatprep.subr.bf16.mxu0 0
    %2122 = vmatpush1.bf16.msra.mxu0 0
    %2123 = vmatprep.subr.bf16.mxu0 0
    %2124 = vmatpush1.bf16.msra.mxu0 0
    %2125 = vmatprep.mubr.bf16.mxu0 0
    %2126 = vmatmul.mubr.bf16.gmra.mrb[0].mxu0 %v2088
    %v2127 = vpop.f32.mrb[0].mxu0
    %v2128 = vadd.f32 0.0, %v2127
    %v2129 = vpop.f32.mrb[0].mxu0
    %v2130 = vpop.f32.mrb[0].mxu0
    %v2131 = vpop.f32.mrb[0].mxu0
    %2132 = vdwg.mxu0
    %v2134 = vsel %vm1211, %v2030, 0
    %v2137 = vsel %vm2043, %v2038, 0
    %2139 = vmatprep.subr.bf16.mxu0 0
    %2140 = vmatpush1.bf16.msra.mxu0 %v2137
    %2141 = vmatprep.subr.bf16.mxu0 0
    %2142 = vmatpush1.bf16.msra.mxu0 0
    %2143 = vmatprep.subr.bf16.mxu0 0
    %2144 = vmatpush1.bf16.msra.mxu0 0
    %2145 = vmatprep.subr.bf16.mxu0 0
    %2146 = vmatpush1.bf16.msra.mxu0 0
    %2147 = vmatprep.subr.bf16.mxu0 0
    %2148 = vmatpush1.bf16.msra.mxu0 0
    %2149 = vmatprep.subr.bf16.mxu0 0
    %2150 = vmatpush1.bf16.msra.mxu0 0
    %2151 = vmatprep.subr.bf16.mxu0 0
    %2152 = vmatpush1.bf16.msra.mxu0 0
    %2153 = vmatprep.subr.bf16.mxu0 0
    %2154 = vmatpush1.bf16.msra.mxu0 0
    %2155 = vmatprep.subr.bf16.mxu0 0
    %2156 = vmatpush1.bf16.msra.mxu0 0
    %2157 = vmatprep.subr.bf16.mxu0 0
    %2158 = vmatpush1.bf16.msra.mxu0 0
    %2159 = vmatprep.subr.bf16.mxu0 0
    %2160 = vmatpush1.bf16.msra.mxu0 0
    %2161 = vmatprep.subr.bf16.mxu0 0
    %2162 = vmatpush1.bf16.msra.mxu0 0
    %2163 = vmatprep.subr.bf16.mxu0 0
    %2164 = vmatpush1.bf16.msra.mxu0 0
    %2165 = vmatprep.subr.bf16.mxu0 0
    %2166 = vmatpush1.bf16.msra.mxu0 0
    %2167 = vmatprep.subr.bf16.mxu0 0
    %2168 = vmatpush1.bf16.msra.mxu0 0
    %2169 = vmatprep.subr.bf16.mxu0 0
    %2170 = vmatpush1.bf16.msra.mxu0 0
    %2171 = vmatprep.mubr.bf16.mxu0 0
    %2172 = vmatmul.mubr.bf16.gmra.mrb[0].mxu0 %v2134
    %v2173 = vpop.f32.mrb[0].mxu0
    %v2174 = vadd.f32 0.0, %v2173
    %v2175 = vpop.f32.mrb[0].mxu0
    %v2176 = vpop.f32.mrb[0].mxu0
    %v2177 = vpop.f32.mrb[0].mxu0
    %2178 = vdwg.mxu0
    %v2180 = vsel %vm1211, %v2031, 0
    %v2183 = vsel %vm2043, %v2039, 0
    %2185 = vmatprep.subr.bf16.mxu0 0
    %2186 = vmatpush1.bf16.msra.mxu0 %v2183
    %2187 = vmatprep.subr.bf16.mxu0 0
    %2188 = vmatpush1.bf16.msra.mxu0 0
    %2189 = vmatprep.subr.bf16.mxu0 0
    %2190 = vmatpush1.bf16.msra.mxu0 0
    %2191 = vmatprep.subr.bf16.mxu0 0
    %2192 = vmatpush1.bf16.msra.mxu0 0
    %2193 = vmatprep.subr.bf16.mxu0 0
    %2194 = vmatpush1.bf16.msra.mxu0 0
    %2195 = vmatprep.subr.bf16.mxu0 0
    %2196 = vmatpush1.bf16.msra.mxu0 0
    %2197 = vmatprep.subr.bf16.mxu0 0
    %2198 = vmatpush1.bf16.msra.mxu0 0
    %2199 = vmatprep.subr.bf16.mxu0 0
    %2200 = vmatpush1.bf16.msra.mxu0 0
    %2201 = vmatprep.subr.bf16.mxu0 0
    %2202 = vmatpush1.bf16.msra.mxu0 0
    %2203 = vmatprep.subr.bf16.mxu0 0
    %2204 = vmatpush1.bf16.msra.mxu0 0
    %2205 = vmatprep.subr.bf16.mxu0 0
    %2206 = vmatpush1.bf16.msra.mxu0 0
    %2207 = vmatprep.subr.bf16.mxu0 0
    %2208 = vmatpush1.bf16.msra.mxu0 0
    %2209 = vmatprep.subr.bf16.mxu0 0
    %2210 = vmatpush1.bf16.msra.mxu0 0
    %2211 = vmatprep.subr.bf16.mxu0 0
    %2212 = vmatpush1.bf16.msra.mxu0 0
    %2213 = vmatprep.subr.bf16.mxu0 0
    %2214 = vmatpush1.bf16.msra.mxu0 0
    %2215 = vmatprep.subr.bf16.mxu0 0
    %2216 = vmatpush1.bf16.msra.mxu0 0
    %2217 = vmatprep.mubr.bf16.mxu0 0
    %2218 = vmatmul.mubr.bf16.gmra.mrb[0].mxu0 %v2180
    %v2219 = vpop.f32.mrb[0].mxu0
    %v2220 = vadd.f32 0.0, %v2219
    %v2221 = vpop.f32.mrb[0].mxu0
    %v2222 = vpop.f32.mrb[0].mxu0
    %v2223 = vpop.f32.mrb[0].mxu0
    %2224 = vdwg.mxu0
    %v2226 = vsel %vm1211, %v2032, 0
    %2228 = vmatprep.subr.bf16.mxu0 0
    %2229 = vmatpush1.bf16.msra.mxu0 %v2045
    %2230 = vmatprep.subr.bf16.mxu0 0
    %2231 = vmatpush1.bf16.msra.mxu0 0
    %2232 = vmatprep.subr.bf16.mxu0 0
    %2233 = vmatpush1.bf16.msra.mxu0 0
    %2234 = vmatprep.subr.bf16.mxu0 0
    %2235 = vmatpush1.bf16.msra.mxu0 0
    %2236 = vmatprep.subr.bf16.mxu0 0
    %2237 = vmatpush1.bf16.msra.mxu0 0
    %2238 = vmatprep.subr.bf16.mxu0 0
    %2239 = vmatpush1.bf16.msra.mxu0 0
    %2240 = vmatprep.subr.bf16.mxu0 0
    %2241 = vmatpush1.bf16.msra.mxu0 0
    %2242 = vmatprep.subr.bf16.mxu0 0
    %2243 = vmatpush1.bf16.msra.mxu0 0
    %2244 = vmatprep.subr.bf16.mxu0 0
    %2245 = vmatpush1.bf16.msra.mxu0 0
    %2246 = vmatprep.subr.bf16.mxu0 0
    %2247 = vmatpush1.bf16.msra.mxu0 0
    %2248 = vmatprep.subr.bf16.mxu0 0
    %2249 = vmatpush1.bf16.msra.mxu0 0
    %2250 = vmatprep.subr.bf16.mxu0 0
    %2251 = vmatpush1.bf16.msra.mxu0 0
    %2252 = vmatprep.subr.bf16.mxu0 0
    %2253 = vmatpush1.bf16.msra.mxu0 0
    %2254 = vmatprep.subr.bf16.mxu0 0
    %2255 = vmatpush1.bf16.msra.mxu0 0
    %2256 = vmatprep.subr.bf16.mxu0 0
    %2257 = vmatpush1.bf16.msra.mxu0 0
    %2258 = vmatprep.subr.bf16.mxu0 0
    %2259 = vmatpush1.bf16.msra.mxu0 0
    %2260 = vmatprep.mubr.bf16.mxu0 0
    %2261 = vmatmul.mubr.bf16.gmra.mrb[0].mxu0 %v2226
    %v2262 = vpop.f32.mrb[0].mxu0
    %v2263 = vadd.f32 0.0, %v2262
    %v2264 = vpop.f32.mrb[0].mxu0
    %v2265 = vpop.f32.mrb[0].mxu0
    %v2266 = vpop.f32.mrb[0].mxu0
    %2267 = vdwg.mxu0
    %v2269 = vsel %vm1211, %v2033, 0
    %2271 = vmatprep.subr.bf16.mxu0 0
    %2272 = vmatpush1.bf16.msra.mxu0 %v2091
    %2273 = vmatprep.subr.bf16.mxu0 0
    %2274 = vmatpush1.bf16.msra.mxu0 0
    %2275 = vmatprep.subr.bf16.mxu0 0
    %2276 = vmatpush1.bf16.msra.mxu0 0
    %2277 = vmatprep.subr.bf16.mxu0 0
    %2278 = vmatpush1.bf16.msra.mxu0 0
    %2279 = vmatprep.subr.bf16.mxu0 0
    %2280 = vmatpush1.bf16.msra.mxu0 0
    %2281 = vmatprep.subr.bf16.mxu0 0
    %2282 = vmatpush1.bf16.msra.mxu0 0
    %2283 = vmatprep.subr.bf16.mxu0 0
    %2284 = vmatpush1.bf16.msra.mxu0 0
    %2285 = vmatprep.subr.bf16.mxu0 0
    %2286 = vmatpush1.bf16.msra.mxu0 0
    %2287 = vmatprep.subr.bf16.mxu0 0
    %2288 = vmatpush1.bf16.msra.mxu0 0
    %2289 = vmatprep.subr.bf16.mxu0 0
    %2290 = vmatpush1.bf16.msra.mxu0 0
    %2291 = vmatprep.subr.bf16.mxu0 0
    %2292 = vmatpush1.bf16.msra.mxu0 0
    %2293 = vmatprep.subr.bf16.mxu0 0
    %2294 = vmatpush1.bf16.msra.mxu0 0
    %2295 = vmatprep.subr.bf16.mxu0 0
    %2296 = vmatpush1.bf16.msra.mxu0 0
    %2297 = vmatprep.subr.bf16.mxu0 0
    %2298 = vmatpush1.bf16.msra.mxu0 0
    %2299 = vmatprep.subr.bf16.mxu0 0
    %2300 = vmatpush1.bf16.msra.mxu0 0
    %2301 = vmatprep.subr.bf16.mxu0 0
    %2302 = vmatpush1.bf16.msra.mxu0 0
    %2303 = vmatprep.mubr.bf16.mxu0 0
    %2304 = vmatmul.mubr.bf16.gmra.mrb[0].mxu0 %v2269
    %v2305 = vpop.f32.mrb[0].mxu0
    %v2306 = vadd.f32 0.0, %v2305
    %v2307 = vpop.f32.mrb[0].mxu0
    %v2308 = vpop.f32.mrb[0].mxu0
    %v2309 = vpop.f32.mrb[0].mxu0
    %2310 = vdwg.mxu0
    %v2312 = vsel %vm1211, %v2034, 0
    %2314 = vmatprep.subr.bf16.mxu0 0
    %2315 = vmatpush1.bf16.msra.mxu0 %v2137
    %2316 = vmatprep.subr.bf16.mxu0 0
    %2317 = vmatpush1.bf16.msra.mxu0 0
    %2318 = vmatprep.subr.bf16.mxu0 0
    %2319 = vmatpush1.bf16.msra.mxu0 0
    %2320 = vmatprep.subr.bf16.mxu0 0
    %2321 = vmatpush1.bf16.msra.mxu0 0
    %2322 = vmatprep.subr.bf16.mxu0 0
    %2323 = vmatpush1.bf16.msra.mxu0 0
    %2324 = vmatprep.subr.bf16.mxu0 0
    %2325 = vmatpush1.bf16.msra.mxu0 0
    %2326 = vmatprep.subr.bf16.mxu0 0
    %2327 = vmatpush1.bf16.msra.mxu0 0
    %2328 = vmatprep.subr.bf16.mxu0 0
    %2329 = vmatpush1.bf16.msra.mxu0 0
    %2330 = vmatprep.subr.bf16.mxu0 0
    %2331 = vmatpush1.bf16.msra.mxu0 0
    %2332 = vmatprep.subr.bf16.mxu0 0
    %2333 = vmatpush1.bf16.msra.mxu0 0
    %2334 = vmatprep.subr.bf16.mxu0 0
    %2335 = vmatpush1.bf16.msra.mxu0 0
    %2336 = vmatprep.subr.bf16.mxu0 0
    %2337 = vmatpush1.bf16.msra.mxu0 0
    %2338 = vmatprep.subr.bf16.mxu0 0
    %2339 = vmatpush1.bf16.msra.mxu0 0
    %2340 = vmatprep.subr.bf16.mxu0 0
    %2341 = vmatpush1.bf16.msra.mxu0 0
    %2342 = vmatprep.subr.bf16.mxu0 0
    %2343 = vmatpush1.bf16.msra.mxu0 0
    %2344 = vmatprep.subr.bf16.mxu0 0
    %2345 = vmatpush1.bf16.msra.mxu0 0
    %2346 = vmatprep.mubr.bf16.mxu0 0
    %2347 = vmatmul.mubr.bf16.gmra.mrb[0].mxu0 %v2312
    %v2348 = vpop.f32.mrb[0].mxu0
    %v2349 = vadd.f32 0.0, %v2348
    %v2350 = vpop.f32.mrb[0].mxu0
    %v2351 = vpop.f32.mrb[0].mxu0
    %v2352 = vpop.f32.mrb[0].mxu0
    %2353 = vdwg.mxu0
    %v2355 = vsel %vm1211, %v2035, 0
    %2357 = vmatprep.subr.bf16.mxu0 0
    %2358 = vmatpush1.bf16.msra.mxu0 %v2183
    %2359 = vmatprep.subr.bf16.mxu0 0
    %2360 = vmatpush1.bf16.msra.mxu0 0
    %2361 = vmatprep.subr.bf16.mxu0 0
    %2362 = vmatpush1.bf16.msra.mxu0 0
    %2363 = vmatprep.subr.bf16.mxu0 0
    %2364 = vmatpush1.bf16.msra.mxu0 0
    %2365 = vmatprep.subr.bf16.mxu0 0
    %2366 = vmatpush1.bf16.msra.mxu0 0
    %2367 = vmatprep.subr.bf16.mxu0 0
    %2368 = vmatpush1.bf16.msra.mxu0 0
    %2369 = vmatprep.subr.bf16.mxu0 0
    %2370 = vmatpush1.bf16.msra.mxu0 0
    %2371 = vmatprep.subr.bf16.mxu0 0
    %2372 = vmatpush1.bf16.msra.mxu0 0
    %2373 = vmatprep.subr.bf16.mxu0 0
    %2374 = vmatpush1.bf16.msra.mxu0 0
    %2375 = vmatprep.subr.bf16.mxu0 0
    %2376 = vmatpush1.bf16.msra.mxu0 0
    %2377 = vmatprep.subr.bf16.mxu0 0
    %2378 = vmatpush1.bf16.msra.mxu0 0
    %2379 = vmatprep.subr.bf16.mxu0 0
    %2380 = vmatpush1.bf16.msra.mxu0 0
    %2381 = vmatprep.subr.bf16.mxu0 0
    %2382 = vmatpush1.bf16.msra.mxu0 0
    %2383 = vmatprep.subr.bf16.mxu0 0
    %2384 = vmatpush1.bf16.msra.mxu0 0
    %2385 = vmatprep.subr.bf16.mxu0 0
    %2386 = vmatpush1.bf16.msra.mxu0 0
    %2387 = vmatprep.subr.bf16.mxu0 0
    %2388 = vmatpush1.bf16.msra.mxu0 0
    %2389 = vmatprep.mubr.bf16.mxu0 0
    %2390 = vmatmul.mubr.bf16.gmra.mrb[0].mxu0 %v2355
    %v2391 = vpop.f32.mrb[0].mxu0
    %v2392 = vadd.f32 0.0, %v2391
    %v2393 = vpop.f32.mrb[0].mxu0
    %v2394 = vpop.f32.mrb[0].mxu0
    %v2395 = vpop.f32.mrb[0].mxu0
    %2396 = vdwg.mxu0
    %v2397 = vadd.f32 %v2082, %v2128
    %v2398 = vadd.f32 %v2263, %v2306
    %v2399 = vadd.f32 %v2397, %v2174
    %v2400 = vadd.f32 %v2398, %v2349
    %v2401 = vadd.f32 %v2399, %v2220
    %v2402 = vadd.f32 %v2400, %v2392
    %v2403 = vld [vmem:[%s6] sm:$0x1]
    %v2405 = vlaneseq
    %v2406 = vshrl.u32 %v2405, 7
    %v2407 = vsub.s32 0, %v2406
    %v2408 = vrot.slane %v2403, %v2407
    %v2410 = vadd.f32 %v2401, %v2408
    %v2411 = vadd.f32 %v2402, %v2408
    %v2412 = vadd.f32 %v2410, %v67
    %v2413 = vadd.f32 %v2411, %v68
    %v2414 = vsel %vm105, %v2412, 0.0
    %2415 = vadd.xlane.f32.xlu0 %v2414
    %v2416 = vpop.xlane.xlu0 %2415
    %v2417 = vsel %vm105, %v2413, 0.0
    %2418 = vadd.xlane.f32.xlu0 %v2417
    %v2419 = vpop.xlane.xlu0 %2418
    %v2420 = vrcp.pop 32.0
    %v2421 = vmul.f32 %v2416, %v2420
    %v2422 = vmul.f32 %v2419, %v2420
    %v2423 = vsub.f32 %v2412, %v2421
    %v2424 = vsub.f32 %v2413, %v2422
    %v2425 = vmul.f32 %v2423, %v2423
    %v2426 = vmul.f32 %v2424, %v2424
    %v2427 = vsel %vm105, %v2425, 0.0
    %2428 = vadd.xlane.f32.xlu0 %v2427
    %v2429 = vpop.xlane.xlu0 %2428
    %v2430 = vsel %vm105, %v2426, 0.0
    %2431 = vadd.xlane.f32.xlu0 %v2430
    %v2432 = vpop.xlane.xlu0 %2431
    %v2433 = vmul.f32 %v2429, %v2420
    %v2434 = vmul.f32 %v2432, %v2420
    %v2435 = vadd.f32 %v2433, 1e-05
    %v2436 = vadd.f32 %v2434, 1e-05
    %v2437 = vrsqrt.pop %v2435
    %v2438 = vrsqrt.pop %v2436
    %v2439 = vmul.f32 %v2423, %v2437
    %v2440 = vmul.f32 %v2424, %v2438
    %v2441 = vld [vmem:[%s7] sm:$0x1]
    %v2443 = vlaneseq
    %v2444 = vshrl.u32 %v2443, 7
    %v2445 = vsub.s32 0, %v2444
    %v2446 = vrot.slane %v2441, %v2445
    %v2448 = vmul.f32 %v2439, %v2446
    %v2449 = vmul.f32 %v2440, %v2446
    %v2450 = vld [vmem:[%s8] sm:$0x1]
    %v2452 = vlaneseq
    %v2453 = vshrl.u32 %v2452, 7
    %v2454 = vsub.s32 0, %v2453
    %v2455 = vrot.slane %v2450, %v2454
    %v2457 = vadd.f32 %v2448, %v2455
    %v2458 = vadd.f32 %v2449, %v2455
    %v2459 = vpack.c.bf16 %v2457, %v2457
    %v2460 = vpack.c.bf16 %v2458, %v2458
    %v2461 = vld [vmem:[%s9] sm:$0xf]
    %v2462 = vld [vmem:[%s9 + $0x4] sm:$0xf]
    %v2463 = vld [vmem:[%s9 + $0x8] sm:$0xf]
    %v2464 = vld [vmem:[%s9 + $0xc] sm:$0xf]
    %v2465 = vld [vmem:[%s9 + $0x10] sm:$0xf]
    %v2466 = vld [vmem:[%s9 + $0x14] sm:$0xf]
    %v2467 = vld [vmem:[%s9 + $0x18] sm:$0xf]
    %v2468 = vld [vmem:[%s9 + $0x1c] sm:$0xf]
    %v2469 = vld [vmem:[%s9 + $0x20] sm:$0xf]
    %v2470 = vld [vmem:[%s9 + $0x24] sm:$0xf]
    %v2471 = vld [vmem:[%s9 + $0x28] sm:$0xf]
    %v2472 = vld [vmem:[%s9 + $0x2c] sm:$0xf]
    %v2473 = vld [vmem:[%s9 + $0x30] sm:$0xf]
    %v2474 = vld [vmem:[%s9 + $0x34] sm:$0xf]
    %v2475 = vld [vmem:[%s9 + $0x38] sm:$0xf]
    %v2476 = vld [vmem:[%s9 + $0x3c] sm:$0xf]
    %v2481 = vunpack.c.l.b16 %v2461
    %v2482 = vunpack.c.l.b16 %v2462
    %v2483 = vunpack.c.l.b16 %v2463
    %v2484 = vunpack.c.l.b16 %v2464
    %v2485 = vpack.c.b16 %v2482, %v2481
    %v2486 = vpack.c.b16 %v2484, %v2483
    %v2490 = vsel %vm105, %v2459, 0
    %2492 = vmatprep.subr.bf16.mxu0 0
    %2493 = vmatpush1.bf16.msra.mxu0 %v2485
    %2494 = vmatprep.subr.bf16.mxu0 0
    %2495 = vmatpush1.bf16.msra.mxu0 %v2486
    %2496 = vmatprep.subr.bf16.mxu0 0
    %2497 = vmatpush1.bf16.msra.mxu0 0
    %2498 = vmatprep.subr.bf16.mxu0 0
    %2499 = vmatpush1.bf16.msra.mxu0 0
    %2500 = vmatprep.subr.bf16.mxu0 0
    %2501 = vmatpush1.bf16.msra.mxu0 0
    %2502 = vmatprep.subr.bf16.mxu0 0
    %2503 = vmatpush1.bf16.msra.mxu0 0
    %2504 = vmatprep.subr.bf16.mxu0 0
    %2505 = vmatpush1.bf16.msra.mxu0 0
    %2506 = vmatprep.subr.bf16.mxu0 0
    %2507 = vmatpush1.bf16.msra.mxu0 0
    %2508 = vmatprep.subr.bf16.mxu0 0
    %2509 = vmatpush1.bf16.msra.mxu0 0
    %2510 = vmatprep.subr.bf16.mxu0 0
    %2511 = vmatpush1.bf16.msra.mxu0 0
    %2512 = vmatprep.subr.bf16.mxu0 0
    %2513 = vmatpush1.bf16.msra.mxu0 0
    %2514 = vmatprep.subr.bf16.mxu0 0
    %2515 = vmatpush1.bf16.msra.mxu0 0
    %2516 = vmatprep.subr.bf16.mxu0 0
    %2517 = vmatpush1.bf16.msra.mxu0 0
    %2518 = vmatprep.subr.bf16.mxu0 0
    %2519 = vmatpush1.bf16.msra.mxu0 0
    %2520 = vmatprep.subr.bf16.mxu0 0
    %2521 = vmatpush1.bf16.msra.mxu0 0
    %2522 = vmatprep.subr.bf16.mxu0 0
    %2523 = vmatpush1.bf16.msra.mxu0 0
    %2524 = vmatprep.mubr.bf16.mxu0 0
    %2525 = vmatmul.mubr.bf16.gmra.mrb[0].mxu0 %v2490
    %v2526 = vpop.f32.mrb[0].mxu0
    %v2527 = vadd.f32 0.0, %v2526
    %v2528 = vpop.f32.mrb[0].mxu0
    %v2529 = vpop.f32.mrb[0].mxu0
    %v2530 = vpop.f32.mrb[0].mxu0
    %2531 = vdwg.mxu0
    %v2536 = vunpack.c.l.b16 %v2465
    %v2537 = vunpack.c.l.b16 %v2466
    %v2538 = vunpack.c.l.b16 %v2467
    %v2539 = vunpack.c.l.b16 %v2468
    %v2540 = vpack.c.b16 %v2537, %v2536
    %v2541 = vpack.c.b16 %v2539, %v2538
    %2544 = vmatprep.subr.bf16.mxu0 0
    %2545 = vmatpush1.bf16.msra.mxu0 %v2540
    %2546 = vmatprep.subr.bf16.mxu0 0
    %2547 = vmatpush1.bf16.msra.mxu0 %v2541
    %2548 = vmatprep.subr.bf16.mxu0 0
    %2549 = vmatpush1.bf16.msra.mxu0 0
    %2550 = vmatprep.subr.bf16.mxu0 0
    %2551 = vmatpush1.bf16.msra.mxu0 0
    %2552 = vmatprep.subr.bf16.mxu0 0
    %2553 = vmatpush1.bf16.msra.mxu0 0
    %2554 = vmatprep.subr.bf16.mxu0 0
    %2555 = vmatpush1.bf16.msra.mxu0 0
    %2556 = vmatprep.subr.bf16.mxu0 0
    %2557 = vmatpush1.bf16.msra.mxu0 0
    %2558 = vmatprep.subr.bf16.mxu0 0
    %2559 = vmatpush1.bf16.msra.mxu0 0
    %2560 = vmatprep.subr.bf16.mxu0 0
    %2561 = vmatpush1.bf16.msra.mxu0 0
    %2562 = vmatprep.subr.bf16.mxu0 0
    %2563 = vmatpush1.bf16.msra.mxu0 0
    %2564 = vmatprep.subr.bf16.mxu0 0
    %2565 = vmatpush1.bf16.msra.mxu0 0
    %2566 = vmatprep.subr.bf16.mxu0 0
    %2567 = vmatpush1.bf16.msra.mxu0 0
    %2568 = vmatprep.subr.bf16.mxu0 0
    %2569 = vmatpush1.bf16.msra.mxu0 0
    %2570 = vmatprep.subr.bf16.mxu0 0
    %2571 = vmatpush1.bf16.msra.mxu0 0
    %2572 = vmatprep.subr.bf16.mxu0 0
    %2573 = vmatpush1.bf16.msra.mxu0 0
    %2574 = vmatprep.subr.bf16.mxu0 0
    %2575 = vmatpush1.bf16.msra.mxu0 0
    %2576 = vmatprep.mubr.bf16.mxu0 0
    %2577 = vmatmul.mubr.bf16.gmra.mrb[0].mxu0 %v2490
    %v2578 = vpop.f32.mrb[0].mxu0
    %v2579 = vadd.f32 0.0, %v2578
    %v2580 = vpop.f32.mrb[0].mxu0
    %v2581 = vpop.f32.mrb[0].mxu0
    %v2582 = vpop.f32.mrb[0].mxu0
    %2583 = vdwg.mxu0
    %v2588 = vunpack.c.l.b16 %v2469
    %v2589 = vunpack.c.l.b16 %v2470
    %v2590 = vunpack.c.l.b16 %v2471
    %v2591 = vunpack.c.l.b16 %v2472
    %v2592 = vpack.c.b16 %v2589, %v2588
    %v2593 = vpack.c.b16 %v2591, %v2590
    %2596 = vmatprep.subr.bf16.mxu0 0
    %2597 = vmatpush1.bf16.msra.mxu0 %v2592
    %2598 = vmatprep.subr.bf16.mxu0 0
    %2599 = vmatpush1.bf16.msra.mxu0 %v2593
    %2600 = vmatprep.subr.bf16.mxu0 0
    %2601 = vmatpush1.bf16.msra.mxu0 0
    %2602 = vmatprep.subr.bf16.mxu0 0
    %2603 = vmatpush1.bf16.msra.mxu0 0
    %2604 = vmatprep.subr.bf16.mxu0 0
    %2605 = vmatpush1.bf16.msra.mxu0 0
    %2606 = vmatprep.subr.bf16.mxu0 0
    %2607 = vmatpush1.bf16.msra.mxu0 0
    %2608 = vmatprep.subr.bf16.mxu0 0
    %2609 = vmatpush1.bf16.msra.mxu0 0
    %2610 = vmatprep.subr.bf16.mxu0 0
    %2611 = vmatpush1.bf16.msra.mxu0 0
    %2612 = vmatprep.subr.bf16.mxu0 0
    %2613 = vmatpush1.bf16.msra.mxu0 0
    %2614 = vmatprep.subr.bf16.mxu0 0
    %2615 = vmatpush1.bf16.msra.mxu0 0
    %2616 = vmatprep.subr.bf16.mxu0 0
    %2617 = vmatpush1.bf16.msra.mxu0 0
    %2618 = vmatprep.subr.bf16.mxu0 0
    %2619 = vmatpush1.bf16.msra.mxu0 0
    %2620 = vmatprep.subr.bf16.mxu0 0
    %2621 = vmatpush1.bf16.msra.mxu0 0
    %2622 = vmatprep.subr.bf16.mxu0 0
    %2623 = vmatpush1.bf16.msra.mxu0 0
    %2624 = vmatprep.subr.bf16.mxu0 0
    %2625 = vmatpush1.bf16.msra.mxu0 0
    %2626 = vmatprep.subr.bf16.mxu0 0
    %2627 = vmatpush1.bf16.msra.mxu0 0
    %2628 = vmatprep.mubr.bf16.mxu0 0
    %2629 = vmatmul.mubr.bf16.gmra.mrb[0].mxu0 %v2490
    %v2630 = vpop.f32.mrb[0].mxu0
    %v2631 = vadd.f32 0.0, %v2630
    %v2632 = vpop.f32.mrb[0].mxu0
    %v2633 = vpop.f32.mrb[0].mxu0
    %v2634 = vpop.f32.mrb[0].mxu0
    %2635 = vdwg.mxu0
    %v2640 = vunpack.c.l.b16 %v2473
    %v2641 = vunpack.c.l.b16 %v2474
    %v2642 = vunpack.c.l.b16 %v2475
    %v2643 = vunpack.c.l.b16 %v2476
    %v2644 = vpack.c.b16 %v2641, %v2640
    %v2645 = vpack.c.b16 %v2643, %v2642
    %2648 = vmatprep.subr.bf16.mxu0 0
    %2649 = vmatpush1.bf16.msra.mxu0 %v2644
    %2650 = vmatprep.subr.bf16.mxu0 0
    %2651 = vmatpush1.bf16.msra.mxu0 %v2645
    %2652 = vmatprep.subr.bf16.mxu0 0
    %2653 = vmatpush1.bf16.msra.mxu0 0
    %2654 = vmatprep.subr.bf16.mxu0 0
    %2655 = vmatpush1.bf16.msra.mxu0 0
    %2656 = vmatprep.subr.bf16.mxu0 0
    %2657 = vmatpush1.bf16.msra.mxu0 0
    %2658 = vmatprep.subr.bf16.mxu0 0
    %2659 = vmatpush1.bf16.msra.mxu0 0
    %2660 = vmatprep.subr.bf16.mxu0 0
    %2661 = vmatpush1.bf16.msra.mxu0 0
    %2662 = vmatprep.subr.bf16.mxu0 0
    %2663 = vmatpush1.bf16.msra.mxu0 0
    %2664 = vmatprep.subr.bf16.mxu0 0
    %2665 = vmatpush1.bf16.msra.mxu0 0
    %2666 = vmatprep.subr.bf16.mxu0 0
    %2667 = vmatpush1.bf16.msra.mxu0 0
    %2668 = vmatprep.subr.bf16.mxu0 0
    %2669 = vmatpush1.bf16.msra.mxu0 0
    %2670 = vmatprep.subr.bf16.mxu0 0
    %2671 = vmatpush1.bf16.msra.mxu0 0
    %2672 = vmatprep.subr.bf16.mxu0 0
    %2673 = vmatpush1.bf16.msra.mxu0 0
    %2674 = vmatprep.subr.bf16.mxu0 0
    %2675 = vmatpush1.bf16.msra.mxu0 0
    %2676 = vmatprep.subr.bf16.mxu0 0
    %2677 = vmatpush1.bf16.msra.mxu0 0
    %2678 = vmatprep.subr.bf16.mxu0 0
    %2679 = vmatpush1.bf16.msra.mxu0 0
    %2680 = vmatprep.mubr.bf16.mxu0 0
    %2681 = vmatmul.mubr.bf16.gmra.mrb[0].mxu0 %v2490
    %v2682 = vpop.f32.mrb[0].mxu0
    %v2683 = vadd.f32 0.0, %v2682
    %v2684 = vpop.f32.mrb[0].mxu0
    %v2685 = vpop.f32.mrb[0].mxu0
    %v2686 = vpop.f32.mrb[0].mxu0
    %2687 = vdwg.mxu0
    %v2689 = vsel %vm105, %v2460, 0
    %2691 = vmatprep.subr.bf16.mxu0 0
    %2692 = vmatpush1.bf16.msra.mxu0 %v2485
    %2693 = vmatprep.subr.bf16.mxu0 0
    %2694 = vmatpush1.bf16.msra.mxu0 %v2486
    %2695 = vmatprep.subr.bf16.mxu0 0
    %2696 = vmatpush1.bf16.msra.mxu0 0
    %2697 = vmatprep.subr.bf16.mxu0 0
    %2698 = vmatpush1.bf16.msra.mxu0 0
    %2699 = vmatprep.subr.bf16.mxu0 0
    %2700 = vmatpush1.bf16.msra.mxu0 0
    %2701 = vmatprep.subr.bf16.mxu0 0
    %2702 = vmatpush1.bf16.msra.mxu0 0
    %2703 = vmatprep.subr.bf16.mxu0 0
    %2704 = vmatpush1.bf16.msra.mxu0 0
    %2705 = vmatprep.subr.bf16.mxu0 0
    %2706 = vmatpush1.bf16.msra.mxu0 0
    %2707 = vmatprep.subr.bf16.mxu0 0
    %2708 = vmatpush1.bf16.msra.mxu0 0
    %2709 = vmatprep.subr.bf16.mxu0 0
    %2710 = vmatpush1.bf16.msra.mxu0 0
    %2711 = vmatprep.subr.bf16.mxu0 0
    %2712 = vmatpush1.bf16.msra.mxu0 0
    %2713 = vmatprep.subr.bf16.mxu0 0
    %2714 = vmatpush1.bf16.msra.mxu0 0
    %2715 = vmatprep.subr.bf16.mxu0 0
    %2716 = vmatpush1.bf16.msra.mxu0 0
    %2717 = vmatprep.subr.bf16.mxu0 0
    %2718 = vmatpush1.bf16.msra.mxu0 0
    %2719 = vmatprep.subr.bf16.mxu0 0
    %2720 = vmatpush1.bf16.msra.mxu0 0
    %2721 = vmatprep.subr.bf16.mxu0 0
    %2722 = vmatpush1.bf16.msra.mxu0 0
    %2723 = vmatprep.mubr.bf16.mxu0 0
    %2724 = vmatmul.mubr.bf16.gmra.mrb[0].mxu0 %v2689
    %v2725 = vpop.f32.mrb[0].mxu0
    %v2726 = vadd.f32 0.0, %v2725
    %v2727 = vpop.f32.mrb[0].mxu0
    %v2728 = vpop.f32.mrb[0].mxu0
    %v2729 = vpop.f32.mrb[0].mxu0
    %2730 = vdwg.mxu0
    %2731 = vmatprep.subr.bf16.mxu0 0
    %2732 = vmatpush1.bf16.msra.mxu0 %v2540
    %2733 = vmatprep.subr.bf16.mxu0 0
    %2734 = vmatpush1.bf16.msra.mxu0 %v2541
    %2735 = vmatprep.subr.bf16.mxu0 0
    %2736 = vmatpush1.bf16.msra.mxu0 0
    %2737 = vmatprep.subr.bf16.mxu0 0
    %2738 = vmatpush1.bf16.msra.mxu0 0
    %2739 = vmatprep.subr.bf16.mxu0 0
    %2740 = vmatpush1.bf16.msra.mxu0 0
    %2741 = vmatprep.subr.bf16.mxu0 0
    %2742 = vmatpush1.bf16.msra.mxu0 0
    %2743 = vmatprep.subr.bf16.mxu0 0
    %2744 = vmatpush1.bf16.msra.mxu0 0
    %2745 = vmatprep.subr.bf16.mxu0 0
    %2746 = vmatpush1.bf16.msra.mxu0 0
    %2747 = vmatprep.subr.bf16.mxu0 0
    %2748 = vmatpush1.bf16.msra.mxu0 0
    %2749 = vmatprep.subr.bf16.mxu0 0
    %2750 = vmatpush1.bf16.msra.mxu0 0
    %2751 = vmatprep.subr.bf16.mxu0 0
    %2752 = vmatpush1.bf16.msra.mxu0 0
    %2753 = vmatprep.subr.bf16.mxu0 0
    %2754 = vmatpush1.bf16.msra.mxu0 0
    %2755 = vmatprep.subr.bf16.mxu0 0
    %2756 = vmatpush1.bf16.msra.mxu0 0
    %2757 = vmatprep.subr.bf16.mxu0 0
    %2758 = vmatpush1.bf16.msra.mxu0 0
    %2759 = vmatprep.subr.bf16.mxu0 0
    %2760 = vmatpush1.bf16.msra.mxu0 0
    %2761 = vmatprep.subr.bf16.mxu0 0
    %2762 = vmatpush1.bf16.msra.mxu0 0
    %2763 = vmatprep.mubr.bf16.mxu0 0
    %2764 = vmatmul.mubr.bf16.gmra.mrb[0].mxu0 %v2689
    %v2765 = vpop.f32.mrb[0].mxu0
    %v2766 = vadd.f32 0.0, %v2765
    %v2767 = vpop.f32.mrb[0].mxu0
    %v2768 = vpop.f32.mrb[0].mxu0
    %v2769 = vpop.f32.mrb[0].mxu0
    %2770 = vdwg.mxu0
    %2771 = vmatprep.subr.bf16.mxu0 0
    %2772 = vmatpush1.bf16.msra.mxu0 %v2592
    %2773 = vmatprep.subr.bf16.mxu0 0
    %2774 = vmatpush1.bf16.msra.mxu0 %v2593
    %2775 = vmatprep.subr.bf16.mxu0 0
    %2776 = vmatpush1.bf16.msra.mxu0 0
    %2777 = vmatprep.subr.bf16.mxu0 0
    %2778 = vmatpush1.bf16.msra.mxu0 0
    %2779 = vmatprep.subr.bf16.mxu0 0
    %2780 = vmatpush1.bf16.msra.mxu0 0
    %2781 = vmatprep.subr.bf16.mxu0 0
    %2782 = vmatpush1.bf16.msra.mxu0 0
    %2783 = vmatprep.subr.bf16.mxu0 0
    %2784 = vmatpush1.bf16.msra.mxu0 0
    %2785 = vmatprep.subr.bf16.mxu0 0
    %2786 = vmatpush1.bf16.msra.mxu0 0
    %2787 = vmatprep.subr.bf16.mxu0 0
    %2788 = vmatpush1.bf16.msra.mxu0 0
    %2789 = vmatprep.subr.bf16.mxu0 0
    %2790 = vmatpush1.bf16.msra.mxu0 0
    %2791 = vmatprep.subr.bf16.mxu0 0
    %2792 = vmatpush1.bf16.msra.mxu0 0
    %2793 = vmatprep.subr.bf16.mxu0 0
    %2794 = vmatpush1.bf16.msra.mxu0 0
    %2795 = vmatprep.subr.bf16.mxu0 0
    %2796 = vmatpush1.bf16.msra.mxu0 0
    %2797 = vmatprep.subr.bf16.mxu0 0
    %2798 = vmatpush1.bf16.msra.mxu0 0
    %2799 = vmatprep.subr.bf16.mxu0 0
    %2800 = vmatpush1.bf16.msra.mxu0 0
    %2801 = vmatprep.subr.bf16.mxu0 0
    %2802 = vmatpush1.bf16.msra.mxu0 0
    %2803 = vmatprep.mubr.bf16.mxu0 0
    %2804 = vmatmul.mubr.bf16.gmra.mrb[0].mxu0 %v2689
    %v2805 = vpop.f32.mrb[0].mxu0
    %v2806 = vadd.f32 0.0, %v2805
    %v2807 = vpop.f32.mrb[0].mxu0
    %v2808 = vpop.f32.mrb[0].mxu0
    %v2809 = vpop.f32.mrb[0].mxu0
    %2810 = vdwg.mxu0
    %2811 = vmatprep.subr.bf16.mxu0 0
    %2812 = vmatpush1.bf16.msra.mxu0 %v2644
    %2813 = vmatprep.subr.bf16.mxu0 0
    %2814 = vmatpush1.bf16.msra.mxu0 %v2645
    %2815 = vmatprep.subr.bf16.mxu0 0
    %2816 = vmatpush1.bf16.msra.mxu0 0
    %2817 = vmatprep.subr.bf16.mxu0 0
    %2818 = vmatpush1.bf16.msra.mxu0 0
    %2819 = vmatprep.subr.bf16.mxu0 0
    %2820 = vmatpush1.bf16.msra.mxu0 0
    %2821 = vmatprep.subr.bf16.mxu0 0
    %2822 = vmatpush1.bf16.msra.mxu0 0
    %2823 = vmatprep.subr.bf16.mxu0 0
    %2824 = vmatpush1.bf16.msra.mxu0 0
    %2825 = vmatprep.subr.bf16.mxu0 0
    %2826 = vmatpush1.bf16.msra.mxu0 0
    %2827 = vmatprep.subr.bf16.mxu0 0
    %2828 = vmatpush1.bf16.msra.mxu0 0
    %2829 = vmatprep.subr.bf16.mxu0 0
    %2830 = vmatpush1.bf16.msra.mxu0 0
    %2831 = vmatprep.subr.bf16.mxu0 0
    %2832 = vmatpush1.bf16.msra.mxu0 0
    %2833 = vmatprep.subr.bf16.mxu0 0
    %2834 = vmatpush1.bf16.msra.mxu0 0
    %2835 = vmatprep.subr.bf16.mxu0 0
    %2836 = vmatpush1.bf16.msra.mxu0 0
    %2837 = vmatprep.subr.bf16.mxu0 0
    %2838 = vmatpush1.bf16.msra.mxu0 0
    %2839 = vmatprep.subr.bf16.mxu0 0
    %2840 = vmatpush1.bf16.msra.mxu0 0
    %2841 = vmatprep.subr.bf16.mxu0 0
    %2842 = vmatpush1.bf16.msra.mxu0 0
    %2843 = vmatprep.mubr.bf16.mxu0 0
    %2844 = vmatmul.mubr.bf16.gmra.mrb[0].mxu0 %v2689
    %v2845 = vpop.f32.mrb[0].mxu0
    %v2846 = vadd.f32 0.0, %v2845
    %v2847 = vpop.f32.mrb[0].mxu0
    %v2848 = vpop.f32.mrb[0].mxu0
    %v2849 = vpop.f32.mrb[0].mxu0
    %2850 = vdwg.mxu0
    %v2851 = vld [vmem:[%s10] sm:$0xf]
    %v2852 = vld [vmem:[%s10 + $0x4] sm:$0xf]
    %v2853 = vld [vmem:[%s10 + $0x8] sm:$0xf]
    %v2854 = vld [vmem:[%s10 + $0xc] sm:$0xf]
    %v2855 = vld [vmem:[%s10 + $0x10] sm:$0xf]
    %v2856 = vld [vmem:[%s10 + $0x14] sm:$0xf]
    %v2857 = vld [vmem:[%s10 + $0x18] sm:$0xf]
    %v2858 = vld [vmem:[%s10 + $0x1c] sm:$0xf]
    %v2859 = vld [vmem:[%s10 + $0x20] sm:$0xf]
    %v2860 = vld [vmem:[%s10 + $0x24] sm:$0xf]
    %v2861 = vld [vmem:[%s10 + $0x28] sm:$0xf]
    %v2862 = vld [vmem:[%s10 + $0x2c] sm:$0xf]
    %v2863 = vld [vmem:[%s10 + $0x30] sm:$0xf]
    %v2864 = vld [vmem:[%s10 + $0x34] sm:$0xf]
    %v2865 = vld [vmem:[%s10 + $0x38] sm:$0xf]
    %v2866 = vld [vmem:[%s10 + $0x3c] sm:$0xf]
    %v2871 = vunpack.c.l.b16 %v2851
    %v2872 = vunpack.c.l.b16 %v2852
    %v2873 = vunpack.c.l.b16 %v2853
    %v2874 = vunpack.c.l.b16 %v2854
    %v2875 = vpack.c.b16 %v2872, %v2871
    %v2876 = vpack.c.b16 %v2874, %v2873
    %2879 = vmatprep.subr.bf16.mxu0 0
    %2880 = vmatpush1.bf16.msra.mxu0 %v2875
    %2881 = vmatprep.subr.bf16.mxu0 0
    %2882 = vmatpush1.bf16.msra.mxu0 %v2876
    %2883 = vmatprep.subr.bf16.mxu0 0
    %2884 = vmatpush1.bf16.msra.mxu0 0
    %2885 = vmatprep.subr.bf16.mxu0 0
    %2886 = vmatpush1.bf16.msra.mxu0 0
    %2887 = vmatprep.subr.bf16.mxu0 0
    %2888 = vmatpush1.bf16.msra.mxu0 0
    %2889 = vmatprep.subr.bf16.mxu0 0
    %2890 = vmatpush1.bf16.msra.mxu0 0
    %2891 = vmatprep.subr.bf16.mxu0 0
    %2892 = vmatpush1.bf16.msra.mxu0 0
    %2893 = vmatprep.subr.bf16.mxu0 0
    %2894 = vmatpush1.bf16.msra.mxu0 0
    %2895 = vmatprep.subr.bf16.mxu0 0
    %2896 = vmatpush1.bf16.msra.mxu0 0
    %2897 = vmatprep.subr.bf16.mxu0 0
    %2898 = vmatpush1.bf16.msra.mxu0 0
    %2899 = vmatprep.subr.bf16.mxu0 0
    %2900 = vmatpush1.bf16.msra.mxu0 0
    %2901 = vmatprep.subr.bf16.mxu0 0
    %2902 = vmatpush1.bf16.msra.mxu0 0
    %2903 = vmatprep.subr.bf16.mxu0 0
    %2904 = vmatpush1.bf16.msra.mxu0 0
    %2905 = vmatprep.subr.bf16.mxu0 0
    %2906 = vmatpush1.bf16.msra.mxu0 0
    %2907 = vmatprep.subr.bf16.mxu0 0
    %2908 = vmatpush1.bf16.msra.mxu0 0
    %2909 = vmatprep.subr.bf16.mxu0 0
    %2910 = vmatpush1.bf16.msra.mxu0 0
    %2911 = vmatprep.mubr.bf16.mxu0 0
    %2912 = vmatmul.mubr.bf16.gmra.mrb[0].mxu0 %v2490
    %v2913 = vpop.f32.mrb[0].mxu0
    %v2914 = vadd.f32 0.0, %v2913
    %v2915 = vpop.f32.mrb[0].mxu0
    %v2916 = vpop.f32.mrb[0].mxu0
    %v2917 = vpop.f32.mrb[0].mxu0
    %2918 = vdwg.mxu0
    %v2923 = vunpack.c.l.b16 %v2855
    %v2924 = vunpack.c.l.b16 %v2856
    %v2925 = vunpack.c.l.b16 %v2857
    %v2926 = vunpack.c.l.b16 %v2858
    %v2927 = vpack.c.b16 %v2924, %v2923
    %v2928 = vpack.c.b16 %v2926, %v2925
    %2931 = vmatprep.subr.bf16.mxu0 0
    %2932 = vmatpush1.bf16.msra.mxu0 %v2927
    %2933 = vmatprep.subr.bf16.mxu0 0
    %2934 = vmatpush1.bf16.msra.mxu0 %v2928
    %2935 = vmatprep.subr.bf16.mxu0 0
    %2936 = vmatpush1.bf16.msra.mxu0 0
    %2937 = vmatprep.subr.bf16.mxu0 0
    %2938 = vmatpush1.bf16.msra.mxu0 0
    %2939 = vmatprep.subr.bf16.mxu0 0
    %2940 = vmatpush1.bf16.msra.mxu0 0
    %2941 = vmatprep.subr.bf16.mxu0 0
    %2942 = vmatpush1.bf16.msra.mxu0 0
    %2943 = vmatprep.subr.bf16.mxu0 0
    %2944 = vmatpush1.bf16.msra.mxu0 0
    %2945 = vmatprep.subr.bf16.mxu0 0
    %2946 = vmatpush1.bf16.msra.mxu0 0
    %2947 = vmatprep.subr.bf16.mxu0 0
    %2948 = vmatpush1.bf16.msra.mxu0 0
    %2949 = vmatprep.subr.bf16.mxu0 0
    %2950 = vmatpush1.bf16.msra.mxu0 0
    %2951 = vmatprep.subr.bf16.mxu0 0
    %2952 = vmatpush1.bf16.msra.mxu0 0
    %2953 = vmatprep.subr.bf16.mxu0 0
    %2954 = vmatpush1.bf16.msra.mxu0 0
    %2955 = vmatprep.subr.bf16.mxu0 0
    %2956 = vmatpush1.bf16.msra.mxu0 0
    %2957 = vmatprep.subr.bf16.mxu0 0
    %2958 = vmatpush1.bf16.msra.mxu0 0
    %2959 = vmatprep.subr.bf16.mxu0 0
    %2960 = vmatpush1.bf16.msra.mxu0 0
    %2961 = vmatprep.subr.bf16.mxu0 0
    %2962 = vmatpush1.bf16.msra.mxu0 0
    %2963 = vmatprep.mubr.bf16.mxu0 0
    %2964 = vmatmul.mubr.bf16.gmra.mrb[0].mxu0 %v2490
    %v2965 = vpop.f32.mrb[0].mxu0
    %v2966 = vadd.f32 0.0, %v2965
    %v2967 = vpop.f32.mrb[0].mxu0
    %v2968 = vpop.f32.mrb[0].mxu0
    %v2969 = vpop.f32.mrb[0].mxu0
    %2970 = vdwg.mxu0
    %v2975 = vunpack.c.l.b16 %v2859
    %v2976 = vunpack.c.l.b16 %v2860
    %v2977 = vunpack.c.l.b16 %v2861
    %v2978 = vunpack.c.l.b16 %v2862
    %v2979 = vpack.c.b16 %v2976, %v2975
    %v2980 = vpack.c.b16 %v2978, %v2977
    %2983 = vmatprep.subr.bf16.mxu0 0
    %2984 = vmatpush1.bf16.msra.mxu0 %v2979
    %2985 = vmatprep.subr.bf16.mxu0 0
    %2986 = vmatpush1.bf16.msra.mxu0 %v2980
    %2987 = vmatprep.subr.bf16.mxu0 0
    %2988 = vmatpush1.bf16.msra.mxu0 0
    %2989 = vmatprep.subr.bf16.mxu0 0
    %2990 = vmatpush1.bf16.msra.mxu0 0
    %2991 = vmatprep.subr.bf16.mxu0 0
    %2992 = vmatpush1.bf16.msra.mxu0 0
    %2993 = vmatprep.subr.bf16.mxu0 0
    %2994 = vmatpush1.bf16.msra.mxu0 0
    %2995 = vmatprep.subr.bf16.mxu0 0
    %2996 = vmatpush1.bf16.msra.mxu0 0
    %2997 = vmatprep.subr.bf16.mxu0 0
    %2998 = vmatpush1.bf16.msra.mxu0 0
    %2999 = vmatprep.subr.bf16.mxu0 0
    %3000 = vmatpush1.bf16.msra.mxu0 0
    %3001 = vmatprep.subr.bf16.mxu0 0
    %3002 = vmatpush1.bf16.msra.mxu0 0
    %3003 = vmatprep.subr.bf16.mxu0 0
    %3004 = vmatpush1.bf16.msra.mxu0 0
    %3005 = vmatprep.subr.bf16.mxu0 0
    %3006 = vmatpush1.bf16.msra.mxu0 0
    %3007 = vmatprep.subr.bf16.mxu0 0
    %3008 = vmatpush1.bf16.msra.mxu0 0
    %3009 = vmatprep.subr.bf16.mxu0 0
    %3010 = vmatpush1.bf16.msra.mxu0 0
    %3011 = vmatprep.subr.bf16.mxu0 0
    %3012 = vmatpush1.bf16.msra.mxu0 0
    %3013 = vmatprep.subr.bf16.mxu0 0
    %3014 = vmatpush1.bf16.msra.mxu0 0
    %3015 = vmatprep.mubr.bf16.mxu0 0
    %3016 = vmatmul.mubr.bf16.gmra.mrb[0].mxu0 %v2490
    %v3017 = vpop.f32.mrb[0].mxu0
    %v3018 = vadd.f32 0.0, %v3017
    %v3019 = vpop.f32.mrb[0].mxu0
    %v3020 = vpop.f32.mrb[0].mxu0
    %v3021 = vpop.f32.mrb[0].mxu0
    %3022 = vdwg.mxu0
    %v3027 = vunpack.c.l.b16 %v2863
    %v3028 = vunpack.c.l.b16 %v2864
    %v3029 = vunpack.c.l.b16 %v2865
    %v3030 = vunpack.c.l.b16 %v2866
    %v3031 = vpack.c.b16 %v3028, %v3027
    %v3032 = vpack.c.b16 %v3030, %v3029
    %3035 = vmatprep.subr.bf16.mxu0 0
    %3036 = vmatpush1.bf16.msra.mxu0 %v3031
    %3037 = vmatprep.subr.bf16.mxu0 0
    %3038 = vmatpush1.bf16.msra.mxu0 %v3032
    %3039 = vmatprep.subr.bf16.mxu0 0
    %3040 = vmatpush1.bf16.msra.mxu0 0
    %3041 = vmatprep.subr.bf16.mxu0 0
    %3042 = vmatpush1.bf16.msra.mxu0 0
    %3043 = vmatprep.subr.bf16.mxu0 0
    %3044 = vmatpush1.bf16.msra.mxu0 0
    %3045 = vmatprep.subr.bf16.mxu0 0
    %3046 = vmatpush1.bf16.msra.mxu0 0
    %3047 = vmatprep.subr.bf16.mxu0 0
    %3048 = vmatpush1.bf16.msra.mxu0 0
    %3049 = vmatprep.subr.bf16.mxu0 0
    %3050 = vmatpush1.bf16.msra.mxu0 0
    %3051 = vmatprep.subr.bf16.mxu0 0
    %3052 = vmatpush1.bf16.msra.mxu0 0
    %3053 = vmatprep.subr.bf16.mxu0 0
    %3054 = vmatpush1.bf16.msra.mxu0 0
    %3055 = vmatprep.subr.bf16.mxu0 0
    %3056 = vmatpush1.bf16.msra.mxu0 0
    %3057 = vmatprep.subr.bf16.mxu0 0
    %3058 = vmatpush1.bf16.msra.mxu0 0
    %3059 = vmatprep.subr.bf16.mxu0 0
    %3060 = vmatpush1.bf16.msra.mxu0 0
    %3061 = vmatprep.subr.bf16.mxu0 0
    %3062 = vmatpush1.bf16.msra.mxu0 0
    %3063 = vmatprep.subr.bf16.mxu0 0
    %3064 = vmatpush1.bf16.msra.mxu0 0
    %3065 = vmatprep.subr.bf16.mxu0 0
    %3066 = vmatpush1.bf16.msra.mxu0 0
    %3067 = vmatprep.mubr.bf16.mxu0 0
    %3068 = vmatmul.mubr.bf16.gmra.mrb[0].mxu0 %v2490
    %v3069 = vpop.f32.mrb[0].mxu0
    %v3070 = vadd.f32 0.0, %v3069
    %v3071 = vpop.f32.mrb[0].mxu0
    %v3072 = vpop.f32.mrb[0].mxu0
    %v3073 = vpop.f32.mrb[0].mxu0
    %3074 = vdwg.mxu0
    %3075 = vmatprep.subr.bf16.mxu0 0
    %3076 = vmatpush1.bf16.msra.mxu0 %v2875
    %3077 = vmatprep.subr.bf16.mxu0 0
    %3078 = vmatpush1.bf16.msra.mxu0 %v2876
    %3079 = vmatprep.subr.bf16.mxu0 0
    %3080 = vmatpush1.bf16.msra.mxu0 0
    %3081 = vmatprep.subr.bf16.mxu0 0
    %3082 = vmatpush1.bf16.msra.mxu0 0
    %3083 = vmatprep.subr.bf16.mxu0 0
    %3084 = vmatpush1.bf16.msra.mxu0 0
    %3085 = vmatprep.subr.bf16.mxu0 0
    %3086 = vmatpush1.bf16.msra.mxu0 0
    %3087 = vmatprep.subr.bf16.mxu0 0
    %3088 = vmatpush1.bf16.msra.mxu0 0
    %3089 = vmatprep.subr.bf16.mxu0 0
    %3090 = vmatpush1.bf16.msra.mxu0 0
    %3091 = vmatprep.subr.bf16.mxu0 0
    %3092 = vmatpush1.bf16.msra.mxu0 0
    %3093 = vmatprep.subr.bf16.mxu0 0
    %3094 = vmatpush1.bf16.msra.mxu0 0
    %3095 = vmatprep.subr.bf16.mxu0 0
    %3096 = vmatpush1.bf16.msra.mxu0 0
    %3097 = vmatprep.subr.bf16.mxu0 0
    %3098 = vmatpush1.bf16.msra.mxu0 0
    %3099 = vmatprep.subr.bf16.mxu0 0
    %3100 = vmatpush1.bf16.msra.mxu0 0
    %3101 = vmatprep.subr.bf16.mxu0 0
    %3102 = vmatpush1.bf16.msra.mxu0 0
    %3103 = vmatprep.subr.bf16.mxu0 0
    %3104 = vmatpush1.bf16.msra.mxu0 0
    %3105 = vmatprep.subr.bf16.mxu0 0
    %3106 = vmatpush1.bf16.msra.mxu0 0
    %3107 = vmatprep.mubr.bf16.mxu0 0
    %3108 = vmatmul.mubr.bf16.gmra.mrb[0].mxu0 %v2689
    %v3109 = vpop.f32.mrb[0].mxu0
    %v3110 = vadd.f32 0.0, %v3109
    %v3111 = vpop.f32.mrb[0].mxu0
    %v3112 = vpop.f32.mrb[0].mxu0
    %v3113 = vpop.f32.mrb[0].mxu0
    %3114 = vdwg.mxu0
    %3115 = vmatprep.subr.bf16.mxu0 0
    %3116 = vmatpush1.bf16.msra.mxu0 %v2927
    %3117 = vmatprep.subr.bf16.mxu0 0
    %3118 = vmatpush1.bf16.msra.mxu0 %v2928
    %3119 = vmatprep.subr.bf16.mxu0 0
    %3120 = vmatpush1.bf16.msra.mxu0 0
    %3121 = vmatprep.subr.bf16.mxu0 0
    %3122 = vmatpush1.bf16.msra.mxu0 0
    %3123 = vmatprep.subr.bf16.mxu0 0
    %3124 = vmatpush1.bf16.msra.mxu0 0
    %3125 = vmatprep.subr.bf16.mxu0 0
    %3126 = vmatpush1.bf16.msra.mxu0 0
    %3127 = vmatprep.subr.bf16.mxu0 0
    %3128 = vmatpush1.bf16.msra.mxu0 0
    %3129 = vmatprep.subr.bf16.mxu0 0
    %3130 = vmatpush1.bf16.msra.mxu0 0
    %3131 = vmatprep.subr.bf16.mxu0 0
    %3132 = vmatpush1.bf16.msra.mxu0 0
    %3133 = vmatprep.subr.bf16.mxu0 0
    %3134 = vmatpush1.bf16.msra.mxu0 0
    %3135 = vmatprep.subr.bf16.mxu0 0
    %3136 = vmatpush1.bf16.msra.mxu0 0
    %3137 = vmatprep.subr.bf16.mxu0 0
    %3138 = vmatpush1.bf16.msra.mxu0 0
    %3139 = vmatprep.subr.bf16.mxu0 0
    %3140 = vmatpush1.bf16.msra.mxu0 0
    %3141 = vmatprep.subr.bf16.mxu0 0
    %3142 = vmatpush1.bf16.msra.mxu0 0
    %3143 = vmatprep.subr.bf16.mxu0 0
    %3144 = vmatpush1.bf16.msra.mxu0 0
    %3145 = vmatprep.subr.bf16.mxu0 0
    %3146 = vmatpush1.bf16.msra.mxu0 0
    %3147 = vmatprep.mubr.bf16.mxu0 0
    %3148 = vmatmul.mubr.bf16.gmra.mrb[0].mxu0 %v2689
    %v3149 = vpop.f32.mrb[0].mxu0
    %v3150 = vadd.f32 0.0, %v3149
    %v3151 = vpop.f32.mrb[0].mxu0
    %v3152 = vpop.f32.mrb[0].mxu0
    %v3153 = vpop.f32.mrb[0].mxu0
    %3154 = vdwg.mxu0
    %3155 = vmatprep.subr.bf16.mxu0 0
    %3156 = vmatpush1.bf16.msra.mxu0 %v2979
    %3157 = vmatprep.subr.bf16.mxu0 0
    %3158 = vmatpush1.bf16.msra.mxu0 %v2980
    %3159 = vmatprep.subr.bf16.mxu0 0
    %3160 = vmatpush1.bf16.msra.mxu0 0
    %3161 = vmatprep.subr.bf16.mxu0 0
    %3162 = vmatpush1.bf16.msra.mxu0 0
    %3163 = vmatprep.subr.bf16.mxu0 0
    %3164 = vmatpush1.bf16.msra.mxu0 0
    %3165 = vmatprep.subr.bf16.mxu0 0
    %3166 = vmatpush1.bf16.msra.mxu0 0
    %3167 = vmatprep.subr.bf16.mxu0 0
    %3168 = vmatpush1.bf16.msra.mxu0 0
    %3169 = vmatprep.subr.bf16.mxu0 0
    %3170 = vmatpush1.bf16.msra.mxu0 0
    %3171 = vmatprep.subr.bf16.mxu0 0
    %3172 = vmatpush1.bf16.msra.mxu0 0
    %3173 = vmatprep.subr.bf16.mxu0 0
    %3174 = vmatpush1.bf16.msra.mxu0 0
    %3175 = vmatprep.subr.bf16.mxu0 0
    %3176 = vmatpush1.bf16.msra.mxu0 0
    %3177 = vmatprep.subr.bf16.mxu0 0
    %3178 = vmatpush1.bf16.msra.mxu0 0
    %3179 = vmatprep.subr.bf16.mxu0 0
    %3180 = vmatpush1.bf16.msra.mxu0 0
    %3181 = vmatprep.subr.bf16.mxu0 0
    %3182 = vmatpush1.bf16.msra.mxu0 0
    %3183 = vmatprep.subr.bf16.mxu0 0
    %3184 = vmatpush1.bf16.msra.mxu0 0
    %3185 = vmatprep.subr.bf16.mxu0 0
    %3186 = vmatpush1.bf16.msra.mxu0 0
    %3187 = vmatprep.mubr.bf16.mxu0 0
    %3188 = vmatmul.mubr.bf16.gmra.mrb[0].mxu0 %v2689
    %v3189 = vpop.f32.mrb[0].mxu0
    %v3190 = vadd.f32 0.0, %v3189
    %v3191 = vpop.f32.mrb[0].mxu0
    %v3192 = vpop.f32.mrb[0].mxu0
    %v3193 = vpop.f32.mrb[0].mxu0
    %3194 = vdwg.mxu0
    %3195 = vmatprep.subr.bf16.mxu0 0
    %3196 = vmatpush1.bf16.msra.mxu0 %v3031
    %3197 = vmatprep.subr.bf16.mxu0 0
    %3198 = vmatpush1.bf16.msra.mxu0 %v3032
    %3199 = vmatprep.subr.bf16.mxu0 0
    %3200 = vmatpush1.bf16.msra.mxu0 0
    %3201 = vmatprep.subr.bf16.mxu0 0
    %3202 = vmatpush1.bf16.msra.mxu0 0
    %3203 = vmatprep.subr.bf16.mxu0 0
    %3204 = vmatpush1.bf16.msra.mxu0 0
    %3205 = vmatprep.subr.bf16.mxu0 0
    %3206 = vmatpush1.bf16.msra.mxu0 0
    %3207 = vmatprep.subr.bf16.mxu0 0
    %3208 = vmatpush1.bf16.msra.mxu0 0
    %3209 = vmatprep.subr.bf16.mxu0 0
    %3210 = vmatpush1.bf16.msra.mxu0 0
    %3211 = vmatprep.subr.bf16.mxu0 0
    %3212 = vmatpush1.bf16.msra.mxu0 0
    %3213 = vmatprep.subr.bf16.mxu0 0
    %3214 = vmatpush1.bf16.msra.mxu0 0
    %3215 = vmatprep.subr.bf16.mxu0 0
    %3216 = vmatpush1.bf16.msra.mxu0 0
    %3217 = vmatprep.subr.bf16.mxu0 0
    %3218 = vmatpush1.bf16.msra.mxu0 0
    %3219 = vmatprep.subr.bf16.mxu0 0
    %3220 = vmatpush1.bf16.msra.mxu0 0
    %3221 = vmatprep.subr.bf16.mxu0 0
    %3222 = vmatpush1.bf16.msra.mxu0 0
    %3223 = vmatprep.subr.bf16.mxu0 0
    %3224 = vmatpush1.bf16.msra.mxu0 0
    %3225 = vmatprep.subr.bf16.mxu0 0
    %3226 = vmatpush1.bf16.msra.mxu0 0
    %3227 = vmatprep.mubr.bf16.mxu0 0
    %3228 = vmatmul.mubr.bf16.gmra.mrb[0].mxu0 %v2689
    %v3229 = vpop.f32.mrb[0].mxu0
    %v3230 = vadd.f32 0.0, %v3229
    %v3231 = vpop.f32.mrb[0].mxu0
    %v3232 = vpop.f32.mrb[0].mxu0
    %v3233 = vpop.f32.mrb[0].mxu0
    %3234 = vdwg.mxu0
    %v3235 = vld [vmem:[%s11] sm:$0xf]
    %v3236 = vld [vmem:[%s11 + $0x4] sm:$0xf]
    %v3237 = vld [vmem:[%s11 + $0x8] sm:$0xf]
    %v3238 = vld [vmem:[%s11 + $0xc] sm:$0xf]
    %v3239 = vld [vmem:[%s11 + $0x10] sm:$0xf]
    %v3240 = vld [vmem:[%s11 + $0x14] sm:$0xf]
    %v3241 = vld [vmem:[%s11 + $0x18] sm:$0xf]
    %v3242 = vld [vmem:[%s11 + $0x1c] sm:$0xf]
    %v3243 = vld [vmem:[%s11 + $0x20] sm:$0xf]
    %v3244 = vld [vmem:[%s11 + $0x24] sm:$0xf]
    %v3245 = vld [vmem:[%s11 + $0x28] sm:$0xf]
    %v3246 = vld [vmem:[%s11 + $0x2c] sm:$0xf]
    %v3247 = vld [vmem:[%s11 + $0x30] sm:$0xf]
    %v3248 = vld [vmem:[%s11 + $0x34] sm:$0xf]
    %v3249 = vld [vmem:[%s11 + $0x38] sm:$0xf]
    %v3250 = vld [vmem:[%s11 + $0x3c] sm:$0xf]
    %v3255 = vunpack.c.l.b16 %v3235
    %v3256 = vunpack.c.l.b16 %v3236
    %v3257 = vunpack.c.l.b16 %v3237
    %v3258 = vunpack.c.l.b16 %v3238
    %v3259 = vpack.c.b16 %v3256, %v3255
    %v3260 = vpack.c.b16 %v3258, %v3257
    %3263 = vmatprep.subr.bf16.mxu0 0
    %3264 = vmatpush1.bf16.msra.mxu0 %v3259
    %3265 = vmatprep.subr.bf16.mxu0 0
    %3266 = vmatpush1.bf16.msra.mxu0 %v3260
    %3267 = vmatprep.subr.bf16.mxu0 0
    %3268 = vmatpush1.bf16.msra.mxu0 0
    %3269 = vmatprep.subr.bf16.mxu0 0
    %3270 = vmatpush1.bf16.msra.mxu0 0
    %3271 = vmatprep.subr.bf16.mxu0 0
    %3272 = vmatpush1.bf16.msra.mxu0 0
    %3273 = vmatprep.subr.bf16.mxu0 0
    %3274 = vmatpush1.bf16.msra.mxu0 0
    %3275 = vmatprep.subr.bf16.mxu0 0
    %3276 = vmatpush1.bf16.msra.mxu0 0
    %3277 = vmatprep.subr.bf16.mxu0 0
    %3278 = vmatpush1.bf16.msra.mxu0 0
    %3279 = vmatprep.subr.bf16.mxu0 0
    %3280 = vmatpush1.bf16.msra.mxu0 0
    %3281 = vmatprep.subr.bf16.mxu0 0
    %3282 = vmatpush1.bf16.msra.mxu0 0
    %3283 = vmatprep.subr.bf16.mxu0 0
    %3284 = vmatpush1.bf16.msra.mxu0 0
    %3285 = vmatprep.subr.bf16.mxu0 0
    %3286 = vmatpush1.bf16.msra.mxu0 0
    %3287 = vmatprep.subr.bf16.mxu0 0
    %3288 = vmatpush1.bf16.msra.mxu0 0
    %3289 = vmatprep.subr.bf16.mxu0 0
    %3290 = vmatpush1.bf16.msra.mxu0 0
    %3291 = vmatprep.subr.bf16.mxu0 0
    %3292 = vmatpush1.bf16.msra.mxu0 0
    %3293 = vmatprep.subr.bf16.mxu0 0
    %3294 = vmatpush1.bf16.msra.mxu0 0
    %3295 = vmatprep.mubr.bf16.mxu0 0
    %3296 = vmatmul.mubr.bf16.gmra.mrb[0].mxu0 %v2490
    %v3297 = vpop.f32.mrb[0].mxu0
    %v3298 = vadd.f32 0.0, %v3297
    %v3299 = vpop.f32.mrb[0].mxu0
    %v3300 = vpop.f32.mrb[0].mxu0
    %v3301 = vpop.f32.mrb[0].mxu0
    %3302 = vdwg.mxu0
    %v3307 = vunpack.c.l.b16 %v3239
    %v3308 = vunpack.c.l.b16 %v3240
    %v3309 = vunpack.c.l.b16 %v3241
    %v3310 = vunpack.c.l.b16 %v3242
    %v3311 = vpack.c.b16 %v3308, %v3307
    %v3312 = vpack.c.b16 %v3310, %v3309
    %3315 = vmatprep.subr.bf16.mxu0 0
    %3316 = vmatpush1.bf16.msra.mxu0 %v3311
    %3317 = vmatprep.subr.bf16.mxu0 0
    %3318 = vmatpush1.bf16.msra.mxu0 %v3312
    %3319 = vmatprep.subr.bf16.mxu0 0
    %3320 = vmatpush1.bf16.msra.mxu0 0
    %3321 = vmatprep.subr.bf16.mxu0 0
    %3322 = vmatpush1.bf16.msra.mxu0 0
    %3323 = vmatprep.subr.bf16.mxu0 0
    %3324 = vmatpush1.bf16.msra.mxu0 0
    %3325 = vmatprep.subr.bf16.mxu0 0
    %3326 = vmatpush1.bf16.msra.mxu0 0
    %3327 = vmatprep.subr.bf16.mxu0 0
    %3328 = vmatpush1.bf16.msra.mxu0 0
    %3329 = vmatprep.subr.bf16.mxu0 0
    %3330 = vmatpush1.bf16.msra.mxu0 0
    %3331 = vmatprep.subr.bf16.mxu0 0
    %3332 = vmatpush1.bf16.msra.mxu0 0
    %3333 = vmatprep.subr.bf16.mxu0 0
    %3334 = vmatpush1.bf16.msra.mxu0 0
    %3335 = vmatprep.subr.bf16.mxu0 0
    %3336 = vmatpush1.bf16.msra.mxu0 0
    %3337 = vmatprep.subr.bf16.mxu0 0
    %3338 = vmatpush1.bf16.msra.mxu0 0
    %3339 = vmatprep.subr.bf16.mxu0 0
    %3340 = vmatpush1.bf16.msra.mxu0 0
    %3341 = vmatprep.subr.bf16.mxu0 0
    %3342 = vmatpush1.bf16.msra.mxu0 0
    %3343 = vmatprep.subr.bf16.mxu0 0
    %3344 = vmatpush1.bf16.msra.mxu0 0
    %3345 = vmatprep.subr.bf16.mxu0 0
    %3346 = vmatpush1.bf16.msra.mxu0 0
    %3347 = vmatprep.mubr.bf16.mxu0 0
    %3348 = vmatmul.mubr.bf16.gmra.mrb[0].mxu0 %v2490
    %v3349 = vpop.f32.mrb[0].mxu0
    %v3350 = vadd.f32 0.0, %v3349
    %v3351 = vpop.f32.mrb[0].mxu0
    %v3352 = vpop.f32.mrb[0].mxu0
    %v3353 = vpop.f32.mrb[0].mxu0
    %3354 = vdwg.mxu0
    %v3359 = vunpack.c.l.b16 %v3243
    %v3360 = vunpack.c.l.b16 %v3244
    %v3361 = vunpack.c.l.b16 %v3245
    %v3362 = vunpack.c.l.b16 %v3246
    %v3363 = vpack.c.b16 %v3360, %v3359
    %v3364 = vpack.c.b16 %v3362, %v3361
    %3367 = vmatprep.subr.bf16.mxu0 0
    %3368 = vmatpush1.bf16.msra.mxu0 %v3363
    %3369 = vmatprep.subr.bf16.mxu0 0
    %3370 = vmatpush1.bf16.msra.mxu0 %v3364
    %3371 = vmatprep.subr.bf16.mxu0 0
    %3372 = vmatpush1.bf16.msra.mxu0 0
    %3373 = vmatprep.subr.bf16.mxu0 0
    %3374 = vmatpush1.bf16.msra.mxu0 0
    %3375 = vmatprep.subr.bf16.mxu0 0
    %3376 = vmatpush1.bf16.msra.mxu0 0
    %3377 = vmatprep.subr.bf16.mxu0 0
    %3378 = vmatpush1.bf16.msra.mxu0 0
    %3379 = vmatprep.subr.bf16.mxu0 0
    %3380 = vmatpush1.bf16.msra.mxu0 0
    %3381 = vmatprep.subr.bf16.mxu0 0
    %3382 = vmatpush1.bf16.msra.mxu0 0
    %3383 = vmatprep.subr.bf16.mxu0 0
    %3384 = vmatpush1.bf16.msra.mxu0 0
    %3385 = vmatprep.subr.bf16.mxu0 0
    %3386 = vmatpush1.bf16.msra.mxu0 0
    %3387 = vmatprep.subr.bf16.mxu0 0
    %3388 = vmatpush1.bf16.msra.mxu0 0
    %3389 = vmatprep.subr.bf16.mxu0 0
    %3390 = vmatpush1.bf16.msra.mxu0 0
    %3391 = vmatprep.subr.bf16.mxu0 0
    %3392 = vmatpush1.bf16.msra.mxu0 0
    %3393 = vmatprep.subr.bf16.mxu0 0
    %3394 = vmatpush1.bf16.msra.mxu0 0
    %3395 = vmatprep.subr.bf16.mxu0 0
    %3396 = vmatpush1.bf16.msra.mxu0 0
    %3397 = vmatprep.subr.bf16.mxu0 0
    %3398 = vmatpush1.bf16.msra.mxu0 0
    %3399 = vmatprep.mubr.bf16.mxu0 0
    %3400 = vmatmul.mubr.bf16.gmra.mrb[0].mxu0 %v2490
    %v3401 = vpop.f32.mrb[0].mxu0
    %v3402 = vadd.f32 0.0, %v3401
    %v3403 = vpop.f32.mrb[0].mxu0
    %v3404 = vpop.f32.mrb[0].mxu0
    %v3405 = vpop.f32.mrb[0].mxu0
    %3406 = vdwg.mxu0
    %v3411 = vunpack.c.l.b16 %v3247
    %v3412 = vunpack.c.l.b16 %v3248
    %v3413 = vunpack.c.l.b16 %v3249
    %v3414 = vunpack.c.l.b16 %v3250
    %v3415 = vpack.c.b16 %v3412, %v3411
    %v3416 = vpack.c.b16 %v3414, %v3413
    %3419 = vmatprep.subr.bf16.mxu0 0
    %3420 = vmatpush1.bf16.msra.mxu0 %v3415
    %3421 = vmatprep.subr.bf16.mxu0 0
    %3422 = vmatpush1.bf16.msra.mxu0 %v3416
    %3423 = vmatprep.subr.bf16.mxu0 0
    %3424 = vmatpush1.bf16.msra.mxu0 0
    %3425 = vmatprep.subr.bf16.mxu0 0
    %3426 = vmatpush1.bf16.msra.mxu0 0
    %3427 = vmatprep.subr.bf16.mxu0 0
    %3428 = vmatpush1.bf16.msra.mxu0 0
    %3429 = vmatprep.subr.bf16.mxu0 0
    %3430 = vmatpush1.bf16.msra.mxu0 0
    %3431 = vmatprep.subr.bf16.mxu0 0
    %3432 = vmatpush1.bf16.msra.mxu0 0
    %3433 = vmatprep.subr.bf16.mxu0 0
    %3434 = vmatpush1.bf16.msra.mxu0 0
    %3435 = vmatprep.subr.bf16.mxu0 0
    %3436 = vmatpush1.bf16.msra.mxu0 0
    %3437 = vmatprep.subr.bf16.mxu0 0
    %3438 = vmatpush1.bf16.msra.mxu0 0
    %3439 = vmatprep.subr.bf16.mxu0 0
    %3440 = vmatpush1.bf16.msra.mxu0 0
    %3441 = vmatprep.subr.bf16.mxu0 0
    %3442 = vmatpush1.bf16.msra.mxu0 0
    %3443 = vmatprep.subr.bf16.mxu0 0
    %3444 = vmatpush1.bf16.msra.mxu0 0
    %3445 = vmatprep.subr.bf16.mxu0 0
    %3446 = vmatpush1.bf16.msra.mxu0 0
    %3447 = vmatprep.subr.bf16.mxu0 0
    %3448 = vmatpush1.bf16.msra.mxu0 0
    %3449 = vmatprep.subr.bf16.mxu0 0
    %3450 = vmatpush1.bf16.msra.mxu0 0
    %3451 = vmatprep.mubr.bf16.mxu0 0
    %3452 = vmatmul.mubr.bf16.gmra.mrb[0].mxu0 %v2490
    %v3453 = vpop.f32.mrb[0].mxu0
    %v3454 = vadd.f32 0.0, %v3453
    %v3455 = vpop.f32.mrb[0].mxu0
    %v3456 = vpop.f32.mrb[0].mxu0
    %v3457 = vpop.f32.mrb[0].mxu0
    %3458 = vdwg.mxu0
    %3459 = vmatprep.subr.bf16.mxu0 0
    %3460 = vmatpush1.bf16.msra.mxu0 %v3259
    %3461 = vmatprep.subr.bf16.mxu0 0
    %3462 = vmatpush1.bf16.msra.mxu0 %v3260
    %3463 = vmatprep.subr.bf16.mxu0 0
    %3464 = vmatpush1.bf16.msra.mxu0 0
    %3465 = vmatprep.subr.bf16.mxu0 0
    %3466 = vmatpush1.bf16.msra.mxu0 0
    %3467 = vmatprep.subr.bf16.mxu0 0
    %3468 = vmatpush1.bf16.msra.mxu0 0
    %3469 = vmatprep.subr.bf16.mxu0 0
    %3470 = vmatpush1.bf16.msra.mxu0 0
    %3471 = vmatprep.subr.bf16.mxu0 0
    %3472 = vmatpush1.bf16.msra.mxu0 0
    %3473 = vmatprep.subr.bf16.mxu0 0
    %3474 = vmatpush1.bf16.msra.mxu0 0
    %3475 = vmatprep.subr.bf16.mxu0 0
    %3476 = vmatpush1.bf16.msra.mxu0 0
    %3477 = vmatprep.subr.bf16.mxu0 0
    %3478 = vmatpush1.bf16.msra.mxu0 0
    %3479 = vmatprep.subr.bf16.mxu0 0
    %3480 = vmatpush1.bf16.msra.mxu0 0
    %3481 = vmatprep.subr.bf16.mxu0 0
    %3482 = vmatpush1.bf16.msra.mxu0 0
    %3483 = vmatprep.subr.bf16.mxu0 0
    %3484 = vmatpush1.bf16.msra.mxu0 0
    %3485 = vmatprep.subr.bf16.mxu0 0
    %3486 = vmatpush1.bf16.msra.mxu0 0
    %3487 = vmatprep.subr.bf16.mxu0 0
    %3488 = vmatpush1.bf16.msra.mxu0 0
    %3489 = vmatprep.subr.bf16.mxu0 0
    %3490 = vmatpush1.bf16.msra.mxu0 0
    %3491 = vmatprep.mubr.bf16.mxu0 0
    %3492 = vmatmul.mubr.bf16.gmra.mrb[0].mxu0 %v2689
    %v3493 = vpop.f32.mrb[0].mxu0
    %v3494 = vadd.f32 0.0, %v3493
    %v3495 = vpop.f32.mrb[0].mxu0
    %v3496 = vpop.f32.mrb[0].mxu0
    %v3497 = vpop.f32.mrb[0].mxu0
    %3498 = vdwg.mxu0
    %3499 = vmatprep.subr.bf16.mxu0 0
    %3500 = vmatpush1.bf16.msra.mxu0 %v3311
    %3501 = vmatprep.subr.bf16.mxu0 0
    %3502 = vmatpush1.bf16.msra.mxu0 %v3312
    %3503 = vmatprep.subr.bf16.mxu0 0
    %3504 = vmatpush1.bf16.msra.mxu0 0
    %3505 = vmatprep.subr.bf16.mxu0 0
    %3506 = vmatpush1.bf16.msra.mxu0 0
    %3507 = vmatprep.subr.bf16.mxu0 0
    %3508 = vmatpush1.bf16.msra.mxu0 0
    %3509 = vmatprep.subr.bf16.mxu0 0
    %3510 = vmatpush1.bf16.msra.mxu0 0
    %3511 = vmatprep.subr.bf16.mxu0 0
    %3512 = vmatpush1.bf16.msra.mxu0 0
    %3513 = vmatprep.subr.bf16.mxu0 0
    %3514 = vmatpush1.bf16.msra.mxu0 0
    %3515 = vmatprep.subr.bf16.mxu0 0
    %3516 = vmatpush1.bf16.msra.mxu0 0
    %3517 = vmatprep.subr.bf16.mxu0 0
    %3518 = vmatpush1.bf16.msra.mxu0 0
    %3519 = vmatprep.subr.bf16.mxu0 0
    %3520 = vmatpush1.bf16.msra.mxu0 0
    %3521 = vmatprep.subr.bf16.mxu0 0
    %3522 = vmatpush1.bf16.msra.mxu0 0
    %3523 = vmatprep.subr.bf16.mxu0 0
    %3524 = vmatpush1.bf16.msra.mxu0 0
    %3525 = vmatprep.subr.bf16.mxu0 0
    %3526 = vmatpush1.bf16.msra.mxu0 0
    %3527 = vmatprep.subr.bf16.mxu0 0
    %3528 = vmatpush1.bf16.msra.mxu0 0
    %3529 = vmatprep.subr.bf16.mxu0 0
    %3530 = vmatpush1.bf16.msra.mxu0 0
    %3531 = vmatprep.mubr.bf16.mxu0 0
    %3532 = vmatmul.mubr.bf16.gmra.mrb[0].mxu0 %v2689
    %v3533 = vpop.f32.mrb[0].mxu0
    %v3534 = vadd.f32 0.0, %v3533
    %v3535 = vpop.f32.mrb[0].mxu0
    %v3536 = vpop.f32.mrb[0].mxu0
    %v3537 = vpop.f32.mrb[0].mxu0
    %3538 = vdwg.mxu0
    %3539 = vmatprep.subr.bf16.mxu0 0
    %3540 = vmatpush1.bf16.msra.mxu0 %v3363
    %3541 = vmatprep.subr.bf16.mxu0 0
    %3542 = vmatpush1.bf16.msra.mxu0 %v3364
    %3543 = vmatprep.subr.bf16.mxu0 0
    %3544 = vmatpush1.bf16.msra.mxu0 0
    %3545 = vmatprep.subr.bf16.mxu0 0
    %3546 = vmatpush1.bf16.msra.mxu0 0
    %3547 = vmatprep.subr.bf16.mxu0 0
    %3548 = vmatpush1.bf16.msra.mxu0 0
    %3549 = vmatprep.subr.bf16.mxu0 0
    %3550 = vmatpush1.bf16.msra.mxu0 0
    %3551 = vmatprep.subr.bf16.mxu0 0
    %3552 = vmatpush1.bf16.msra.mxu0 0
    %3553 = vmatprep.subr.bf16.mxu0 0
    %3554 = vmatpush1.bf16.msra.mxu0 0
    %3555 = vmatprep.subr.bf16.mxu0 0
    %3556 = vmatpush1.bf16.msra.mxu0 0
    %3557 = vmatprep.subr.bf16.mxu0 0
    %3558 = vmatpush1.bf16.msra.mxu0 0
    %3559 = vmatprep.subr.bf16.mxu0 0
    %3560 = vmatpush1.bf16.msra.mxu0 0
    %3561 = vmatprep.subr.bf16.mxu0 0
    %3562 = vmatpush1.bf16.msra.mxu0 0
    %3563 = vmatprep.subr.bf16.mxu0 0
    %3564 = vmatpush1.bf16.msra.mxu0 0
    %3565 = vmatprep.subr.bf16.mxu0 0
    %3566 = vmatpush1.bf16.msra.mxu0 0
    %3567 = vmatprep.subr.bf16.mxu0 0
    %3568 = vmatpush1.bf16.msra.mxu0 0
    %3569 = vmatprep.subr.bf16.mxu0 0
    %3570 = vmatpush1.bf16.msra.mxu0 0
    %3571 = vmatprep.mubr.bf16.mxu0 0
    %3572 = vmatmul.mubr.bf16.gmra.mrb[0].mxu0 %v2689
    %v3573 = vpop.f32.mrb[0].mxu0
    %v3574 = vadd.f32 0.0, %v3573
    %v3575 = vpop.f32.mrb[0].mxu0
    %v3576 = vpop.f32.mrb[0].mxu0
    %v3577 = vpop.f32.mrb[0].mxu0
    %3578 = vdwg.mxu0
    %3579 = vmatprep.subr.bf16.mxu0 0
    %3580 = vmatpush1.bf16.msra.mxu0 %v3415
    %3581 = vmatprep.subr.bf16.mxu0 0
    %3582 = vmatpush1.bf16.msra.mxu0 %v3416
    %3583 = vmatprep.subr.bf16.mxu0 0
    %3584 = vmatpush1.bf16.msra.mxu0 0
    %3585 = vmatprep.subr.bf16.mxu0 0
    %3586 = vmatpush1.bf16.msra.mxu0 0
    %3587 = vmatprep.subr.bf16.mxu0 0
    %3588 = vmatpush1.bf16.msra.mxu0 0
    %3589 = vmatprep.subr.bf16.mxu0 0
    %3590 = vmatpush1.bf16.msra.mxu0 0
    %3591 = vmatprep.subr.bf16.mxu0 0
    %3592 = vmatpush1.bf16.msra.mxu0 0
    %3593 = vmatprep.subr.bf16.mxu0 0
    %3594 = vmatpush1.bf16.msra.mxu0 0
    %3595 = vmatprep.subr.bf16.mxu0 0
    %3596 = vmatpush1.bf16.msra.mxu0 0
    %3597 = vmatprep.subr.bf16.mxu0 0
    %3598 = vmatpush1.bf16.msra.mxu0 0
    %3599 = vmatprep.subr.bf16.mxu0 0
    %3600 = vmatpush1.bf16.msra.mxu0 0
    %3601 = vmatprep.subr.bf16.mxu0 0
    %3602 = vmatpush1.bf16.msra.mxu0 0
    %3603 = vmatprep.subr.bf16.mxu0 0
    %3604 = vmatpush1.bf16.msra.mxu0 0
    %3605 = vmatprep.subr.bf16.mxu0 0
    %3606 = vmatpush1.bf16.msra.mxu0 0
    %3607 = vmatprep.subr.bf16.mxu0 0
    %3608 = vmatpush1.bf16.msra.mxu0 0
    %3609 = vmatprep.subr.bf16.mxu0 0
    %3610 = vmatpush1.bf16.msra.mxu0 0
    %3611 = vmatprep.mubr.bf16.mxu0 0
    %3612 = vmatmul.mubr.bf16.gmra.mrb[0].mxu0 %v2689
    %v3613 = vpop.f32.mrb[0].mxu0
    %v3614 = vadd.f32 0.0, %v3613
    %v3615 = vpop.f32.mrb[0].mxu0
    %v3616 = vpop.f32.mrb[0].mxu0
    %v3617 = vpop.f32.mrb[0].mxu0
    %3618 = vdwg.mxu0
    %v3619 = vpack.c.bf16 %v2527, %v2527
    %v3620 = vpack.c.bf16 %v2579, %v2579
    %v3621 = vpack.c.bf16 %v2631, %v2631
    %v3622 = vpack.c.bf16 %v2683, %v2683
    %v3623 = vpack.c.bf16 %v2726, %v2726
    %v3624 = vpack.c.bf16 %v2766, %v2766
    %v3625 = vpack.c.bf16 %v2806, %v2806
    %v3626 = vpack.c.bf16 %v2846, %v2846
    %v3627 = vpack.c.bf16 %v2914, %v2914
    %v3628 = vpack.c.bf16 %v2966, %v2966
    %v3629 = vpack.c.bf16 %v3018, %v3018
    %v3630 = vpack.c.bf16 %v3070, %v3070
    %v3631 = vpack.c.bf16 %v3110, %v3110
    %v3632 = vpack.c.bf16 %v3150, %v3150
    %v3633 = vpack.c.bf16 %v3190, %v3190
    %v3634 = vpack.c.bf16 %v3230, %v3230
    %v3636 = vsel %vm1211, %v3619, 0
    %v3639 = vsel %vm1211, %v3627, 0
    %3641 = vmatprep.subr.bf16.mxu0 0
    %3642 = vmatpush1.bf16.xpose.msra.mxu0 %v3639
    %3643 = vmatprep.subr.bf16.mxu0 0
    %3644 = vmatpush1.bf16.xpose.msra.mxu0 0
    %3645 = vmatprep.subr.bf16.mxu0 0
    %3646 = vmatpush1.bf16.xpose.msra.mxu0 0
    %3647 = vmatprep.subr.bf16.mxu0 0
    %3648 = vmatpush1.bf16.xpose.msra.mxu0 0
    %3649 = vmatprep.subr.bf16.mxu0 0
    %3650 = vmatpush1.bf16.xpose.msra.mxu0 0
    %3651 = vmatprep.subr.bf16.mxu0 0
    %3652 = vmatpush1.bf16.xpose.msra.mxu0 0
    %3653 = vmatprep.subr.bf16.mxu0 0
    %3654 = vmatpush1.bf16.xpose.msra.mxu0 0
    %3655 = vmatprep.subr.bf16.mxu0 0
    %3656 = vmatpush1.bf16.xpose.msra.mxu0 0
    %3657 = vmatprep.subr.bf16.mxu0 0
    %3658 = vmatpush1.bf16.xpose.msra.mxu0 0
    %3659 = vmatprep.subr.bf16.mxu0 0
    %3660 = vmatpush1.bf16.xpose.msra.mxu0 0
    %3661 = vmatprep.subr.bf16.mxu0 0
    %3662 = vmatpush1.bf16.xpose.msra.mxu0 0
    %3663 = vmatprep.subr.bf16.mxu0 0
    %3664 = vmatpush1.bf16.xpose.msra.mxu0 0
    %3665 = vmatprep.subr.bf16.mxu0 0
    %3666 = vmatpush1.bf16.xpose.msra.mxu0 0
    %3667 = vmatprep.subr.bf16.mxu0 0
    %3668 = vmatpush1.bf16.xpose.msra.mxu0 0
    %3669 = vmatprep.subr.bf16.mxu0 0
    %3670 = vmatpush1.bf16.xpose.msra.mxu0 0
    %3671 = vmatprep.subr.bf16.mxu0 0
    %3672 = vmatpush1.bf16.xpose.msra.mxu0 0
    %3673 = vmatprep.mubr.bf16.mxu0 0
    %3674 = vmatmul.mubr.bf16.gmra.mrb[0].mxu0 %v3636
    %v3675 = vpop.f32.mrb[0].mxu0
    %v3676 = vadd.f32 0.0, %v3675
    %v3677 = vpop.f32.mrb[0].mxu0
    %v3678 = vpop.f32.mrb[0].mxu0
    %v3679 = vpop.f32.mrb[0].mxu0
    %3680 = vdwg.mxu0
    %v3682 = vsel %vm1211, %v3620, 0
    %v3685 = vsel %vm1211, %v3628, 0
    %3687 = vmatprep.subr.bf16.mxu0 0
    %3688 = vmatpush1.bf16.xpose.msra.mxu0 %v3685
    %3689 = vmatprep.subr.bf16.mxu0 0
    %3690 = vmatpush1.bf16.xpose.msra.mxu0 0
    %3691 = vmatprep.subr.bf16.mxu0 0
    %3692 = vmatpush1.bf16.xpose.msra.mxu0 0
    %3693 = vmatprep.subr.bf16.mxu0 0
    %3694 = vmatpush1.bf16.xpose.msra.mxu0 0
    %3695 = vmatprep.subr.bf16.mxu0 0
    %3696 = vmatpush1.bf16.xpose.msra.mxu0 0
    %3697 = vmatprep.subr.bf16.mxu0 0
    %3698 = vmatpush1.bf16.xpose.msra.mxu0 0
    %3699 = vmatprep.subr.bf16.mxu0 0
    %3700 = vmatpush1.bf16.xpose.msra.mxu0 0
    %3701 = vmatprep.subr.bf16.mxu0 0
    %3702 = vmatpush1.bf16.xpose.msra.mxu0 0
    %3703 = vmatprep.subr.bf16.mxu0 0
    %3704 = vmatpush1.bf16.xpose.msra.mxu0 0
    %3705 = vmatprep.subr.bf16.mxu0 0
    %3706 = vmatpush1.bf16.xpose.msra.mxu0 0
    %3707 = vmatprep.subr.bf16.mxu0 0
    %3708 = vmatpush1.bf16.xpose.msra.mxu0 0
    %3709 = vmatprep.subr.bf16.mxu0 0
    %3710 = vmatpush1.bf16.xpose.msra.mxu0 0
    %3711 = vmatprep.subr.bf16.mxu0 0
    %3712 = vmatpush1.bf16.xpose.msra.mxu0 0
    %3713 = vmatprep.subr.bf16.mxu0 0
    %3714 = vmatpush1.bf16.xpose.msra.mxu0 0
    %3715 = vmatprep.subr.bf16.mxu0 0
    %3716 = vmatpush1.bf16.xpose.msra.mxu0 0
    %3717 = vmatprep.subr.bf16.mxu0 0
    %3718 = vmatpush1.bf16.xpose.msra.mxu0 0
    %3719 = vmatprep.mubr.bf16.mxu0 0
    %3720 = vmatmul.mubr.bf16.gmra.mrb[0].mxu0 %v3682
    %v3721 = vpop.f32.mrb[0].mxu0
    %v3722 = vadd.f32 0.0, %v3721
    %v3723 = vpop.f32.mrb[0].mxu0
    %v3724 = vpop.f32.mrb[0].mxu0
    %v3725 = vpop.f32.mrb[0].mxu0
    %3726 = vdwg.mxu0
    %v3728 = vsel %vm1211, %v3621, 0
    %v3731 = vsel %vm1211, %v3629, 0
    %3733 = vmatprep.subr.bf16.mxu0 0
    %3734 = vmatpush1.bf16.xpose.msra.mxu0 %v3731
    %3735 = vmatprep.subr.bf16.mxu0 0
    %3736 = vmatpush1.bf16.xpose.msra.mxu0 0
    %3737 = vmatprep.subr.bf16.mxu0 0
    %3738 = vmatpush1.bf16.xpose.msra.mxu0 0
    %3739 = vmatprep.subr.bf16.mxu0 0
    %3740 = vmatpush1.bf16.xpose.msra.mxu0 0
    %3741 = vmatprep.subr.bf16.mxu0 0
    %3742 = vmatpush1.bf16.xpose.msra.mxu0 0
    %3743 = vmatprep.subr.bf16.mxu0 0
    %3744 = vmatpush1.bf16.xpose.msra.mxu0 0
    %3745 = vmatprep.subr.bf16.mxu0 0
    %3746 = vmatpush1.bf16.xpose.msra.mxu0 0
    %3747 = vmatprep.subr.bf16.mxu0 0
    %3748 = vmatpush1.bf16.xpose.msra.mxu0 0
    %3749 = vmatprep.subr.bf16.mxu0 0
    %3750 = vmatpush1.bf16.xpose.msra.mxu0 0
    %3751 = vmatprep.subr.bf16.mxu0 0
    %3752 = vmatpush1.bf16.xpose.msra.mxu0 0
    %3753 = vmatprep.subr.bf16.mxu0 0
    %3754 = vmatpush1.bf16.xpose.msra.mxu0 0
    %3755 = vmatprep.subr.bf16.mxu0 0
    %3756 = vmatpush1.bf16.xpose.msra.mxu0 0
    %3757 = vmatprep.subr.bf16.mxu0 0
    %3758 = vmatpush1.bf16.xpose.msra.mxu0 0
    %3759 = vmatprep.subr.bf16.mxu0 0
    %3760 = vmatpush1.bf16.xpose.msra.mxu0 0
    %3761 = vmatprep.subr.bf16.mxu0 0
    %3762 = vmatpush1.bf16.xpose.msra.mxu0 0
    %3763 = vmatprep.subr.bf16.mxu0 0
    %3764 = vmatpush1.bf16.xpose.msra.mxu0 0
    %3765 = vmatprep.mubr.bf16.mxu0 0
    %3766 = vmatmul.mubr.bf16.gmra.mrb[0].mxu0 %v3728
    %v3767 = vpop.f32.mrb[0].mxu0
    %v3768 = vadd.f32 0.0, %v3767
    %v3769 = vpop.f32.mrb[0].mxu0
    %v3770 = vpop.f32.mrb[0].mxu0
    %v3771 = vpop.f32.mrb[0].mxu0
    %3772 = vdwg.mxu0
    %v3774 = vsel %vm1211, %v3622, 0
    %v3777 = vsel %vm1211, %v3630, 0
    %3779 = vmatprep.subr.bf16.mxu0 0
    %3780 = vmatpush1.bf16.xpose.msra.mxu0 %v3777
    %3781 = vmatprep.subr.bf16.mxu0 0
    %3782 = vmatpush1.bf16.xpose.msra.mxu0 0
    %3783 = vmatprep.subr.bf16.mxu0 0
    %3784 = vmatpush1.bf16.xpose.msra.mxu0 0
    %3785 = vmatprep.subr.bf16.mxu0 0
    %3786 = vmatpush1.bf16.xpose.msra.mxu0 0
    %3787 = vmatprep.subr.bf16.mxu0 0
    %3788 = vmatpush1.bf16.xpose.msra.mxu0 0
    %3789 = vmatprep.subr.bf16.mxu0 0
    %3790 = vmatpush1.bf16.xpose.msra.mxu0 0
    %3791 = vmatprep.subr.bf16.mxu0 0
    %3792 = vmatpush1.bf16.xpose.msra.mxu0 0
    %3793 = vmatprep.subr.bf16.mxu0 0
    %3794 = vmatpush1.bf16.xpose.msra.mxu0 0
    %3795 = vmatprep.subr.bf16.mxu0 0
    %3796 = vmatpush1.bf16.xpose.msra.mxu0 0
    %3797 = vmatprep.subr.bf16.mxu0 0
    %3798 = vmatpush1.bf16.xpose.msra.mxu0 0
    %3799 = vmatprep.subr.bf16.mxu0 0
    %3800 = vmatpush1.bf16.xpose.msra.mxu0 0
    %3801 = vmatprep.subr.bf16.mxu0 0
    %3802 = vmatpush1.bf16.xpose.msra.mxu0 0
    %3803 = vmatprep.subr.bf16.mxu0 0
    %3804 = vmatpush1.bf16.xpose.msra.mxu0 0
    %3805 = vmatprep.subr.bf16.mxu0 0
    %3806 = vmatpush1.bf16.xpose.msra.mxu0 0
    %3807 = vmatprep.subr.bf16.mxu0 0
    %3808 = vmatpush1.bf16.xpose.msra.mxu0 0
    %3809 = vmatprep.subr.bf16.mxu0 0
    %3810 = vmatpush1.bf16.xpose.msra.mxu0 0
    %3811 = vmatprep.mubr.bf16.mxu0 0
    %3812 = vmatmul.mubr.bf16.gmra.mrb[0].mxu0 %v3774
    %v3813 = vpop.f32.mrb[0].mxu0
    %v3814 = vadd.f32 0.0, %v3813
    %v3815 = vpop.f32.mrb[0].mxu0
    %v3816 = vpop.f32.mrb[0].mxu0
    %v3817 = vpop.f32.mrb[0].mxu0
    %3818 = vdwg.mxu0
    %v3820 = vsel %vm1211, %v3623, 0
    %v3823 = vsel %vm1211, %v3631, 0
    %3825 = vmatprep.subr.bf16.mxu0 0
    %3826 = vmatpush1.bf16.xpose.msra.mxu0 %v3823
    %3827 = vmatprep.subr.bf16.mxu0 0
    %3828 = vmatpush1.bf16.xpose.msra.mxu0 0
    %3829 = vmatprep.subr.bf16.mxu0 0
    %3830 = vmatpush1.bf16.xpose.msra.mxu0 0
    %3831 = vmatprep.subr.bf16.mxu0 0
    %3832 = vmatpush1.bf16.xpose.msra.mxu0 0
    %3833 = vmatprep.subr.bf16.mxu0 0
    %3834 = vmatpush1.bf16.xpose.msra.mxu0 0
    %3835 = vmatprep.subr.bf16.mxu0 0
    %3836 = vmatpush1.bf16.xpose.msra.mxu0 0
    %3837 = vmatprep.subr.bf16.mxu0 0
    %3838 = vmatpush1.bf16.xpose.msra.mxu0 0
    %3839 = vmatprep.subr.bf16.mxu0 0
    %3840 = vmatpush1.bf16.xpose.msra.mxu0 0
    %3841 = vmatprep.subr.bf16.mxu0 0
    %3842 = vmatpush1.bf16.xpose.msra.mxu0 0
    %3843 = vmatprep.subr.bf16.mxu0 0
    %3844 = vmatpush1.bf16.xpose.msra.mxu0 0
    %3845 = vmatprep.subr.bf16.mxu0 0
    %3846 = vmatpush1.bf16.xpose.msra.mxu0 0
    %3847 = vmatprep.subr.bf16.mxu0 0
    %3848 = vmatpush1.bf16.xpose.msra.mxu0 0
    %3849 = vmatprep.subr.bf16.mxu0 0
    %3850 = vmatpush1.bf16.xpose.msra.mxu0 0
    %3851 = vmatprep.subr.bf16.mxu0 0
    %3852 = vmatpush1.bf16.xpose.msra.mxu0 0
    %3853 = vmatprep.subr.bf16.mxu0 0
    %3854 = vmatpush1.bf16.xpose.msra.mxu0 0
    %3855 = vmatprep.subr.bf16.mxu0 0
    %3856 = vmatpush1.bf16.xpose.msra.mxu0 0
    %3857 = vmatprep.mubr.bf16.mxu0 0
    %3858 = vmatmul.mubr.bf16.gmra.mrb[0].mxu0 %v3820
    %v3859 = vpop.f32.mrb[0].mxu0
    %v3860 = vadd.f32 0.0, %v3859
    %v3861 = vpop.f32.mrb[0].mxu0
    %v3862 = vpop.f32.mrb[0].mxu0
    %v3863 = vpop.f32.mrb[0].mxu0
    %3864 = vdwg.mxu0
    %v3866 = vsel %vm1211, %v3624, 0
    %v3869 = vsel %vm1211, %v3632, 0
    %3871 = vmatprep.subr.bf16.mxu0 0
    %3872 = vmatpush1.bf16.xpose.msra.mxu0 %v3869
    %3873 = vmatprep.subr.bf16.mxu0 0
    %3874 = vmatpush1.bf16.xpose.msra.mxu0 0
    %3875 = vmatprep.subr.bf16.mxu0 0
    %3876 = vmatpush1.bf16.xpose.msra.mxu0 0
    %3877 = vmatprep.subr.bf16.mxu0 0
    %3878 = vmatpush1.bf16.xpose.msra.mxu0 0
    %3879 = vmatprep.subr.bf16.mxu0 0
    %3880 = vmatpush1.bf16.xpose.msra.mxu0 0
    %3881 = vmatprep.subr.bf16.mxu0 0
    %3882 = vmatpush1.bf16.xpose.msra.mxu0 0
    %3883 = vmatprep.subr.bf16.mxu0 0
    %3884 = vmatpush1.bf16.xpose.msra.mxu0 0
    %3885 = vmatprep.subr.bf16.mxu0 0
    %3886 = vmatpush1.bf16.xpose.msra.mxu0 0
    %3887 = vmatprep.subr.bf16.mxu0 0
    %3888 = vmatpush1.bf16.xpose.msra.mxu0 0
    %3889 = vmatprep.subr.bf16.mxu0 0
    %3890 = vmatpush1.bf16.xpose.msra.mxu0 0
    %3891 = vmatprep.subr.bf16.mxu0 0
    %3892 = vmatpush1.bf16.xpose.msra.mxu0 0
    %3893 = vmatprep.subr.bf16.mxu0 0
    %3894 = vmatpush1.bf16.xpose.msra.mxu0 0
    %3895 = vmatprep.subr.bf16.mxu0 0
    %3896 = vmatpush1.bf16.xpose.msra.mxu0 0
    %3897 = vmatprep.subr.bf16.mxu0 0
    %3898 = vmatpush1.bf16.xpose.msra.mxu0 0
    %3899 = vmatprep.subr.bf16.mxu0 0
    %3900 = vmatpush1.bf16.xpose.msra.mxu0 0
    %3901 = vmatprep.subr.bf16.mxu0 0
    %3902 = vmatpush1.bf16.xpose.msra.mxu0 0
    %3903 = vmatprep.mubr.bf16.mxu0 0
    %3904 = vmatmul.mubr.bf16.gmra.mrb[0].mxu0 %v3866
    %v3905 = vpop.f32.mrb[0].mxu0
    %v3906 = vadd.f32 0.0, %v3905
    %v3907 = vpop.f32.mrb[0].mxu0
    %v3908 = vpop.f32.mrb[0].mxu0
    %v3909 = vpop.f32.mrb[0].mxu0
    %3910 = vdwg.mxu0
    %v3912 = vsel %vm1211, %v3625, 0
    %v3915 = vsel %vm1211, %v3633, 0
    %3917 = vmatprep.subr.bf16.mxu0 0
    %3918 = vmatpush1.bf16.xpose.msra.mxu0 %v3915
    %3919 = vmatprep.subr.bf16.mxu0 0
    %3920 = vmatpush1.bf16.xpose.msra.mxu0 0
    %3921 = vmatprep.subr.bf16.mxu0 0
    %3922 = vmatpush1.bf16.xpose.msra.mxu0 0
    %3923 = vmatprep.subr.bf16.mxu0 0
    %3924 = vmatpush1.bf16.xpose.msra.mxu0 0
    %3925 = vmatprep.subr.bf16.mxu0 0
    %3926 = vmatpush1.bf16.xpose.msra.mxu0 0
    %3927 = vmatprep.subr.bf16.mxu0 0
    %3928 = vmatpush1.bf16.xpose.msra.mxu0 0
    %3929 = vmatprep.subr.bf16.mxu0 0
    %3930 = vmatpush1.bf16.xpose.msra.mxu0 0
    %3931 = vmatprep.subr.bf16.mxu0 0
    %3932 = vmatpush1.bf16.xpose.msra.mxu0 0
    %3933 = vmatprep.subr.bf16.mxu0 0
    %3934 = vmatpush1.bf16.xpose.msra.mxu0 0
    %3935 = vmatprep.subr.bf16.mxu0 0
    %3936 = vmatpush1.bf16.xpose.msra.mxu0 0
    %3937 = vmatprep.subr.bf16.mxu0 0
    %3938 = vmatpush1.bf16.xpose.msra.mxu0 0
    %3939 = vmatprep.subr.bf16.mxu0 0
    %3940 = vmatpush1.bf16.xpose.msra.mxu0 0
    %3941 = vmatprep.subr.bf16.mxu0 0
    %3942 = vmatpush1.bf16.xpose.msra.mxu0 0
    %3943 = vmatprep.subr.bf16.mxu0 0
    %3944 = vmatpush1.bf16.xpose.msra.mxu0 0
    %3945 = vmatprep.subr.bf16.mxu0 0
    %3946 = vmatpush1.bf16.xpose.msra.mxu0 0
    %3947 = vmatprep.subr.bf16.mxu0 0
    %3948 = vmatpush1.bf16.xpose.msra.mxu0 0
    %3949 = vmatprep.mubr.bf16.mxu0 0
    %3950 = vmatmul.mubr.bf16.gmra.mrb[0].mxu0 %v3912
    %v3951 = vpop.f32.mrb[0].mxu0
    %v3952 = vadd.f32 0.0, %v3951
    %v3953 = vpop.f32.mrb[0].mxu0
    %v3954 = vpop.f32.mrb[0].mxu0
    %v3955 = vpop.f32.mrb[0].mxu0
    %3956 = vdwg.mxu0
    %v3958 = vsel %vm1211, %v3626, 0
    %v3961 = vsel %vm1211, %v3634, 0
    %3963 = vmatprep.subr.bf16.mxu0 0
    %3964 = vmatpush1.bf16.xpose.msra.mxu0 %v3961
    %3965 = vmatprep.subr.bf16.mxu0 0
    %3966 = vmatpush1.bf16.xpose.msra.mxu0 0
    %3967 = vmatprep.subr.bf16.mxu0 0
    %3968 = vmatpush1.bf16.xpose.msra.mxu0 0
    %3969 = vmatprep.subr.bf16.mxu0 0
    %3970 = vmatpush1.bf16.xpose.msra.mxu0 0
    %3971 = vmatprep.subr.bf16.mxu0 0
    %3972 = vmatpush1.bf16.xpose.msra.mxu0 0
    %3973 = vmatprep.subr.bf16.mxu0 0
    %3974 = vmatpush1.bf16.xpose.msra.mxu0 0
    %3975 = vmatprep.subr.bf16.mxu0 0
    %3976 = vmatpush1.bf16.xpose.msra.mxu0 0
    %3977 = vmatprep.subr.bf16.mxu0 0
    %3978 = vmatpush1.bf16.xpose.msra.mxu0 0
    %3979 = vmatprep.subr.bf16.mxu0 0
    %3980 = vmatpush1.bf16.xpose.msra.mxu0 0
    %3981 = vmatprep.subr.bf16.mxu0 0
    %3982 = vmatpush1.bf16.xpose.msra.mxu0 0
    %3983 = vmatprep.subr.bf16.mxu0 0
    %3984 = vmatpush1.bf16.xpose.msra.mxu0 0
    %3985 = vmatprep.subr.bf16.mxu0 0
    %3986 = vmatpush1.bf16.xpose.msra.mxu0 0
    %3987 = vmatprep.subr.bf16.mxu0 0
    %3988 = vmatpush1.bf16.xpose.msra.mxu0 0
    %3989 = vmatprep.subr.bf16.mxu0 0
    %3990 = vmatpush1.bf16.xpose.msra.mxu0 0
    %3991 = vmatprep.subr.bf16.mxu0 0
    %3992 = vmatpush1.bf16.xpose.msra.mxu0 0
    %3993 = vmatprep.subr.bf16.mxu0 0
    %3994 = vmatpush1.bf16.xpose.msra.mxu0 0
    %3995 = vmatprep.mubr.bf16.mxu0 0
    %3996 = vmatmul.mubr.bf16.gmra.mrb[0].mxu0 %v3958
    %v3997 = vpop.f32.mrb[0].mxu0
    %v3998 = vadd.f32 0.0, %v3997
    %v3999 = vpop.f32.mrb[0].mxu0
    %v4000 = vpop.f32.mrb[0].mxu0
    %v4001 = vpop.f32.mrb[0].mxu0
    %4002 = vdwg.mxu0
    %v4003 = vsel %vm1211, %v3676, -inf
    %4004 = vmax.xlane.f32.xlu0 %v4003
    %v4005 = vpop.xlane.xlu0 %4004
    %v4006 = vsel %vm1211, %v3722, -inf
    %4007 = vmax.xlane.f32.xlu0 %v4006
    %v4008 = vpop.xlane.xlu0 %4007
    %v4009 = vsel %vm1211, %v3768, -inf
    %4010 = vmax.xlane.f32.xlu0 %v4009
    %v4011 = vpop.xlane.xlu0 %4010
    %v4012 = vsel %vm1211, %v3814, -inf
    %4013 = vmax.xlane.f32.xlu0 %v4012
    %v4014 = vpop.xlane.xlu0 %4013
    %v4015 = vsel %vm1211, %v3860, -inf
    %4016 = vmax.xlane.f32.xlu0 %v4015
    %v4017 = vpop.xlane.xlu0 %4016
    %v4018 = vsel %vm1211, %v3906, -inf
    %4019 = vmax.xlane.f32.xlu0 %v4018
    %v4020 = vpop.xlane.xlu0 %4019
    %v4021 = vsel %vm1211, %v3952, -inf
    %4022 = vmax.xlane.f32.xlu0 %v4021
    %v4023 = vpop.xlane.xlu0 %4022
    %v4024 = vsel %vm1211, %v3998, -inf
    %4025 = vmax.xlane.f32.xlu0 %v4024
    %v4026 = vpop.xlane.xlu0 %4025
    %v4027 = vsub.f32 %v3676, %v4005
    %v4028 = vsub.f32 %v3722, %v4008
    %v4029 = vsub.f32 %v3768, %v4011
    %v4030 = vsub.f32 %v3814, %v4014
    %v4031 = vsub.f32 %v3860, %v4017
    %v4032 = vsub.f32 %v3906, %v4020
    %v4033 = vsub.f32 %v3952, %v4023
    %v4034 = vsub.f32 %v3998, %v4026
    %v4035 = vmul.f32 %v4027, 1.442695
    %v4036 = vpow.pop %v4035
    %v4037 = vmul.f32 %v4028, 1.442695
    %v4038 = vpow.pop %v4037
    %v4039 = vmul.f32 %v4029, 1.442695
    %v4040 = vpow.pop %v4039
    %v4041 = vmul.f32 %v4030, 1.442695
    %v4042 = vpow.pop %v4041
    %v4043 = vmul.f32 %v4031, 1.442695
    %v4044 = vpow.pop %v4043
    %v4045 = vmul.f32 %v4032, 1.442695
    %v4046 = vpow.pop %v4045
    %v4047 = vmul.f32 %v4033, 1.442695
    %v4048 = vpow.pop %v4047
    %v4049 = vmul.f32 %v4034, 1.442695
    %v4050 = vpow.pop %v4049
    %v4051 = vsel %vm1211, %v4036, 0.0
    %4052 = vadd.xlane.f32.xlu0 %v4051
    %v4053 = vpop.xlane.xlu0 %4052
    %v4054 = vsel %vm1211, %v4038, 0.0
    %4055 = vadd.xlane.f32.xlu0 %v4054
    %v4056 = vpop.xlane.xlu0 %4055
    %v4057 = vsel %vm1211, %v4040, 0.0
    %4058 = vadd.xlane.f32.xlu0 %v4057
    %v4059 = vpop.xlane.xlu0 %4058
    %v4060 = vsel %vm1211, %v4042, 0.0
    %4061 = vadd.xlane.f32.xlu0 %v4060
    %v4062 = vpop.xlane.xlu0 %4061
    %v4063 = vsel %vm1211, %v4044, 0.0
    %4064 = vadd.xlane.f32.xlu0 %v4063
    %v4065 = vpop.xlane.xlu0 %4064
    %v4066 = vsel %vm1211, %v4046, 0.0
    %4067 = vadd.xlane.f32.xlu0 %v4066
    %v4068 = vpop.xlane.xlu0 %4067
    %v4069 = vsel %vm1211, %v4048, 0.0
    %4070 = vadd.xlane.f32.xlu0 %v4069
    %v4071 = vpop.xlane.xlu0 %4070
    %v4072 = vsel %vm1211, %v4050, 0.0
    %4073 = vadd.xlane.f32.xlu0 %v4072
    %v4074 = vpop.xlane.xlu0 %4073
    %v4075 = vrcp.pop %v4053
    %v4076 = vrcp.pop %v4056
    %v4077 = vrcp.pop %v4059
    %v4078 = vrcp.pop %v4062
    %v4079 = vrcp.pop %v4065
    %v4080 = vrcp.pop %v4068
    %v4081 = vrcp.pop %v4071
    %v4082 = vrcp.pop %v4074
    %v4083 = vmul.f32 %v4036, %v4075
    %v4084 = vmul.f32 %v4038, %v4076
    %v4085 = vmul.f32 %v4040, %v4077
    %v4086 = vmul.f32 %v4042, %v4078
    %v4087 = vmul.f32 %v4044, %v4079
    %v4088 = vmul.f32 %v4046, %v4080
    %v4089 = vmul.f32 %v4048, %v4081
    %v4090 = vmul.f32 %v4050, %v4082
    %v4091 = vpack.c.bf16 %v4083, %v4083
    %v4092 = vpack.c.bf16 %v4084, %v4084
    %v4093 = vpack.c.bf16 %v4085, %v4085
    %v4094 = vpack.c.bf16 %v4086, %v4086
    %v4095 = vpack.c.bf16 %v4087, %v4087
    %v4096 = vpack.c.bf16 %v4088, %v4088
    %v4097 = vpack.c.bf16 %v4089, %v4089
    %v4098 = vpack.c.bf16 %v4090, %v4090
    %v4099 = vpack.c.bf16 %v3298, %v3298
    %v4100 = vpack.c.bf16 %v3350, %v3350
    %v4101 = vpack.c.bf16 %v3402, %v3402
    %v4102 = vpack.c.bf16 %v3454, %v3454
    %v4103 = vpack.c.bf16 %v3494, %v3494
    %v4104 = vpack.c.bf16 %v3534, %v3534
    %v4105 = vpack.c.bf16 %v3574, %v3574
    %v4106 = vpack.c.bf16 %v3614, %v3614
    %v4108 = vsel %vm1211, %v4091, 0
    %v4111 = vsel %vm2043, %v4099, 0
    %4113 = vmatprep.subr.bf16.mxu0 0
    %4114 = vmatpush1.bf16.msra.mxu0 %v4111
    %4115 = vmatprep.subr.bf16.mxu0 0
    %4116 = vmatpush1.bf16.msra.mxu0 0
    %4117 = vmatprep.subr.bf16.mxu0 0
    %4118 = vmatpush1.bf16.msra.mxu0 0
    %4119 = vmatprep.subr.bf16.mxu0 0
    %4120 = vmatpush1.bf16.msra.mxu0 0
    %4121 = vmatprep.subr.bf16.mxu0 0
    %4122 = vmatpush1.bf16.msra.mxu0 0
    %4123 = vmatprep.subr.bf16.mxu0 0
    %4124 = vmatpush1.bf16.msra.mxu0 0
    %4125 = vmatprep.subr.bf16.mxu0 0
    %4126 = vmatpush1.bf16.msra.mxu0 0
    %4127 = vmatprep.subr.bf16.mxu0 0
    %4128 = vmatpush1.bf16.msra.mxu0 0
    %4129 = vmatprep.subr.bf16.mxu0 0
    %4130 = vmatpush1.bf16.msra.mxu0 0
    %4131 = vmatprep.subr.bf16.mxu0 0
    %4132 = vmatpush1.bf16.msra.mxu0 0
    %4133 = vmatprep.subr.bf16.mxu0 0
    %4134 = vmatpush1.bf16.msra.mxu0 0
    %4135 = vmatprep.subr.bf16.mxu0 0
    %4136 = vmatpush1.bf16.msra.mxu0 0
    %4137 = vmatprep.subr.bf16.mxu0 0
    %4138 = vmatpush1.bf16.msra.mxu0 0
    %4139 = vmatprep.subr.bf16.mxu0 0
    %4140 = vmatpush1.bf16.msra.mxu0 0
    %4141 = vmatprep.subr.bf16.mxu0 0
    %4142 = vmatpush1.bf16.msra.mxu0 0
    %4143 = vmatprep.subr.bf16.mxu0 0
    %4144 = vmatpush1.bf16.msra.mxu0 0
    %4145 = vmatprep.mubr.bf16.mxu0 0
    %4146 = vmatmul.mubr.bf16.gmra.mrb[0].mxu0 %v4108
    %v4147 = vpop.f32.mrb[0].mxu0
    %v4148 = vadd.f32 0.0, %v4147
    %v4149 = vpop.f32.mrb[0].mxu0
    %v4150 = vpop.f32.mrb[0].mxu0
    %v4151 = vpop.f32.mrb[0].mxu0
    %4152 = vdwg.mxu0
    %v4154 = vsel %vm1211, %v4092, 0
    %v4157 = vsel %vm2043, %v4100, 0
    %4159 = vmatprep.subr.bf16.mxu0 0
    %4160 = vmatpush1.bf16.msra.mxu0 %v4157
    %4161 = vmatprep.subr.bf16.mxu0 0
    %4162 = vmatpush1.bf16.msra.mxu0 0
    %4163 = vmatprep.subr.bf16.mxu0 0
    %4164 = vmatpush1.bf16.msra.mxu0 0
    %4165 = vmatprep.subr.bf16.mxu0 0
    %4166 = vmatpush1.bf16.msra.mxu0 0
    %4167 = vmatprep.subr.bf16.mxu0 0
    %4168 = vmatpush1.bf16.msra.mxu0 0
    %4169 = vmatprep.subr.bf16.mxu0 0
    %4170 = vmatpush1.bf16.msra.mxu0 0
    %4171 = vmatprep.subr.bf16.mxu0 0
    %4172 = vmatpush1.bf16.msra.mxu0 0
    %4173 = vmatprep.subr.bf16.mxu0 0
    %4174 = vmatpush1.bf16.msra.mxu0 0
    %4175 = vmatprep.subr.bf16.mxu0 0
    %4176 = vmatpush1.bf16.msra.mxu0 0
    %4177 = vmatprep.subr.bf16.mxu0 0
    %4178 = vmatpush1.bf16.msra.mxu0 0
    %4179 = vmatprep.subr.bf16.mxu0 0
    %4180 = vmatpush1.bf16.msra.mxu0 0
    %4181 = vmatprep.subr.bf16.mxu0 0
    %4182 = vmatpush1.bf16.msra.mxu0 0
    %4183 = vmatprep.subr.bf16.mxu0 0
    %4184 = vmatpush1.bf16.msra.mxu0 0
    %4185 = vmatprep.subr.bf16.mxu0 0
    %4186 = vmatpush1.bf16.msra.mxu0 0
    %4187 = vmatprep.subr.bf16.mxu0 0
    %4188 = vmatpush1.bf16.msra.mxu0 0
    %4189 = vmatprep.subr.bf16.mxu0 0
    %4190 = vmatpush1.bf16.msra.mxu0 0
    %4191 = vmatprep.mubr.bf16.mxu0 0
    %4192 = vmatmul.mubr.bf16.gmra.mrb[0].mxu0 %v4154
    %v4193 = vpop.f32.mrb[0].mxu0
    %v4194 = vadd.f32 0.0, %v4193
    %v4195 = vpop.f32.mrb[0].mxu0
    %v4196 = vpop.f32.mrb[0].mxu0
    %v4197 = vpop.f32.mrb[0].mxu0
    %4198 = vdwg.mxu0
    %v4200 = vsel %vm1211, %v4093, 0
    %v4203 = vsel %vm2043, %v4101, 0
    %4205 = vmatprep.subr.bf16.mxu0 0
    %4206 = vmatpush1.bf16.msra.mxu0 %v4203
    %4207 = vmatprep.subr.bf16.mxu0 0
    %4208 = vmatpush1.bf16.msra.mxu0 0
    %4209 = vmatprep.subr.bf16.mxu0 0
    %4210 = vmatpush1.bf16.msra.mxu0 0
    %4211 = vmatprep.subr.bf16.mxu0 0
    %4212 = vmatpush1.bf16.msra.mxu0 0
    %4213 = vmatprep.subr.bf16.mxu0 0
    %4214 = vmatpush1.bf16.msra.mxu0 0
    %4215 = vmatprep.subr.bf16.mxu0 0
    %4216 = vmatpush1.bf16.msra.mxu0 0
    %4217 = vmatprep.subr.bf16.mxu0 0
    %4218 = vmatpush1.bf16.msra.mxu0 0
    %4219 = vmatprep.subr.bf16.mxu0 0
    %4220 = vmatpush1.bf16.msra.mxu0 0
    %4221 = vmatprep.subr.bf16.mxu0 0
    %4222 = vmatpush1.bf16.msra.mxu0 0
    %4223 = vmatprep.subr.bf16.mxu0 0
    %4224 = vmatpush1.bf16.msra.mxu0 0
    %4225 = vmatprep.subr.bf16.mxu0 0
    %4226 = vmatpush1.bf16.msra.mxu0 0
    %4227 = vmatprep.subr.bf16.mxu0 0
    %4228 = vmatpush1.bf16.msra.mxu0 0
    %4229 = vmatprep.subr.bf16.mxu0 0
    %4230 = vmatpush1.bf16.msra.mxu0 0
    %4231 = vmatprep.subr.bf16.mxu0 0
    %4232 = vmatpush1.bf16.msra.mxu0 0
    %4233 = vmatprep.subr.bf16.mxu0 0
    %4234 = vmatpush1.bf16.msra.mxu0 0
    %4235 = vmatprep.subr.bf16.mxu0 0
    %4236 = vmatpush1.bf16.msra.mxu0 0
    %4237 = vmatprep.mubr.bf16.mxu0 0
    %4238 = vmatmul.mubr.bf16.gmra.mrb[0].mxu0 %v4200
    %v4239 = vpop.f32.mrb[0].mxu0
    %v4240 = vadd.f32 0.0, %v4239
    %v4241 = vpop.f32.mrb[0].mxu0
    %v4242 = vpop.f32.mrb[0].mxu0
    %v4243 = vpop.f32.mrb[0].mxu0
    %4244 = vdwg.mxu0
    %v4246 = vsel %vm1211, %v4094, 0
    %v4249 = vsel %vm2043, %v4102, 0
    %4251 = vmatprep.subr.bf16.mxu0 0
    %4252 = vmatpush1.bf16.msra.mxu0 %v4249
    %4253 = vmatprep.subr.bf16.mxu0 0
    %4254 = vmatpush1.bf16.msra.mxu0 0
    %4255 = vmatprep.subr.bf16.mxu0 0
    %4256 = vmatpush1.bf16.msra.mxu0 0
    %4257 = vmatprep.subr.bf16.mxu0 0
    %4258 = vmatpush1.bf16.msra.mxu0 0
    %4259 = vmatprep.subr.bf16.mxu0 0
    %4260 = vmatpush1.bf16.msra.mxu0 0
    %4261 = vmatprep.subr.bf16.mxu0 0
    %4262 = vmatpush1.bf16.msra.mxu0 0
    %4263 = vmatprep.subr.bf16.mxu0 0
    %4264 = vmatpush1.bf16.msra.mxu0 0
    %4265 = vmatprep.subr.bf16.mxu0 0
    %4266 = vmatpush1.bf16.msra.mxu0 0
    %4267 = vmatprep.subr.bf16.mxu0 0
    %4268 = vmatpush1.bf16.msra.mxu0 0
    %4269 = vmatprep.subr.bf16.mxu0 0
    %4270 = vmatpush1.bf16.msra.mxu0 0
    %4271 = vmatprep.subr.bf16.mxu0 0
    %4272 = vmatpush1.bf16.msra.mxu0 0
    %4273 = vmatprep.subr.bf16.mxu0 0
    %4274 = vmatpush1.bf16.msra.mxu0 0
    %4275 = vmatprep.subr.bf16.mxu0 0
    %4276 = vmatpush1.bf16.msra.mxu0 0
    %4277 = vmatprep.subr.bf16.mxu0 0
    %4278 = vmatpush1.bf16.msra.mxu0 0
    %4279 = vmatprep.subr.bf16.mxu0 0
    %4280 = vmatpush1.bf16.msra.mxu0 0
    %4281 = vmatprep.subr.bf16.mxu0 0
    %4282 = vmatpush1.bf16.msra.mxu0 0
    %4283 = vmatprep.mubr.bf16.mxu0 0
    %4284 = vmatmul.mubr.bf16.gmra.mrb[0].mxu0 %v4246
    %v4285 = vpop.f32.mrb[0].mxu0
    %v4286 = vadd.f32 0.0, %v4285
    %v4287 = vpop.f32.mrb[0].mxu0
    %v4288 = vpop.f32.mrb[0].mxu0
    %v4289 = vpop.f32.mrb[0].mxu0
    %4290 = vdwg.mxu0
    %v4292 = vsel %vm1211, %v4095, 0
    %v4295 = vsel %vm2043, %v4103, 0
    %4297 = vmatprep.subr.bf16.mxu0 0
    %4298 = vmatpush1.bf16.msra.mxu0 %v4295
    %4299 = vmatprep.subr.bf16.mxu0 0
    %4300 = vmatpush1.bf16.msra.mxu0 0
    %4301 = vmatprep.subr.bf16.mxu0 0
    %4302 = vmatpush1.bf16.msra.mxu0 0
    %4303 = vmatprep.subr.bf16.mxu0 0
    %4304 = vmatpush1.bf16.msra.mxu0 0
    %4305 = vmatprep.subr.bf16.mxu0 0
    %4306 = vmatpush1.bf16.msra.mxu0 0
    %4307 = vmatprep.subr.bf16.mxu0 0
    %4308 = vmatpush1.bf16.msra.mxu0 0
    %4309 = vmatprep.subr.bf16.mxu0 0
    %4310 = vmatpush1.bf16.msra.mxu0 0
    %4311 = vmatprep.subr.bf16.mxu0 0
    %4312 = vmatpush1.bf16.msra.mxu0 0
    %4313 = vmatprep.subr.bf16.mxu0 0
    %4314 = vmatpush1.bf16.msra.mxu0 0
    %4315 = vmatprep.subr.bf16.mxu0 0
    %4316 = vmatpush1.bf16.msra.mxu0 0
    %4317 = vmatprep.subr.bf16.mxu0 0
    %4318 = vmatpush1.bf16.msra.mxu0 0
    %4319 = vmatprep.subr.bf16.mxu0 0
    %4320 = vmatpush1.bf16.msra.mxu0 0
    %4321 = vmatprep.subr.bf16.mxu0 0
    %4322 = vmatpush1.bf16.msra.mxu0 0
    %4323 = vmatprep.subr.bf16.mxu0 0
    %4324 = vmatpush1.bf16.msra.mxu0 0
    %4325 = vmatprep.subr.bf16.mxu0 0
    %4326 = vmatpush1.bf16.msra.mxu0 0
    %4327 = vmatprep.subr.bf16.mxu0 0
    %4328 = vmatpush1.bf16.msra.mxu0 0
    %4329 = vmatprep.mubr.bf16.mxu0 0
    %4330 = vmatmul.mubr.bf16.gmra.mrb[0].mxu0 %v4292
    %v4331 = vpop.f32.mrb[0].mxu0
    %v4332 = vadd.f32 0.0, %v4331
    %v4333 = vpop.f32.mrb[0].mxu0
    %v4334 = vpop.f32.mrb[0].mxu0
    %v4335 = vpop.f32.mrb[0].mxu0
    %4336 = vdwg.mxu0
    %v4338 = vsel %vm1211, %v4096, 0
    %v4341 = vsel %vm2043, %v4104, 0
    %4343 = vmatprep.subr.bf16.mxu0 0
    %4344 = vmatpush1.bf16.msra.mxu0 %v4341
    %4345 = vmatprep.subr.bf16.mxu0 0
    %4346 = vmatpush1.bf16.msra.mxu0 0
    %4347 = vmatprep.subr.bf16.mxu0 0
    %4348 = vmatpush1.bf16.msra.mxu0 0
    %4349 = vmatprep.subr.bf16.mxu0 0
    %4350 = vmatpush1.bf16.msra.mxu0 0
    %4351 = vmatprep.subr.bf16.mxu0 0
    %4352 = vmatpush1.bf16.msra.mxu0 0
    %4353 = vmatprep.subr.bf16.mxu0 0
    %4354 = vmatpush1.bf16.msra.mxu0 0
    %4355 = vmatprep.subr.bf16.mxu0 0
    %4356 = vmatpush1.bf16.msra.mxu0 0
    %4357 = vmatprep.subr.bf16.mxu0 0
    %4358 = vmatpush1.bf16.msra.mxu0 0
    %4359 = vmatprep.subr.bf16.mxu0 0
    %4360 = vmatpush1.bf16.msra.mxu0 0
    %4361 = vmatprep.subr.bf16.mxu0 0
    %4362 = vmatpush1.bf16.msra.mxu0 0
    %4363 = vmatprep.subr.bf16.mxu0 0
    %4364 = vmatpush1.bf16.msra.mxu0 0
    %4365 = vmatprep.subr.bf16.mxu0 0
    %4366 = vmatpush1.bf16.msra.mxu0 0
    %4367 = vmatprep.subr.bf16.mxu0 0
    %4368 = vmatpush1.bf16.msra.mxu0 0
    %4369 = vmatprep.subr.bf16.mxu0 0
    %4370 = vmatpush1.bf16.msra.mxu0 0
    %4371 = vmatprep.subr.bf16.mxu0 0
    %4372 = vmatpush1.bf16.msra.mxu0 0
    %4373 = vmatprep.subr.bf16.mxu0 0
    %4374 = vmatpush1.bf16.msra.mxu0 0
    %4375 = vmatprep.mubr.bf16.mxu0 0
    %4376 = vmatmul.mubr.bf16.gmra.mrb[0].mxu0 %v4338
    %v4377 = vpop.f32.mrb[0].mxu0
    %v4378 = vadd.f32 0.0, %v4377
    %v4379 = vpop.f32.mrb[0].mxu0
    %v4380 = vpop.f32.mrb[0].mxu0
    %v4381 = vpop.f32.mrb[0].mxu0
    %4382 = vdwg.mxu0
    %v4384 = vsel %vm1211, %v4097, 0
    %v4387 = vsel %vm2043, %v4105, 0
    %4389 = vmatprep.subr.bf16.mxu0 0
    %4390 = vmatpush1.bf16.msra.mxu0 %v4387
    %4391 = vmatprep.subr.bf16.mxu0 0
    %4392 = vmatpush1.bf16.msra.mxu0 0
    %4393 = vmatprep.subr.bf16.mxu0 0
    %4394 = vmatpush1.bf16.msra.mxu0 0
    %4395 = vmatprep.subr.bf16.mxu0 0
    %4396 = vmatpush1.bf16.msra.mxu0 0
    %4397 = vmatprep.subr.bf16.mxu0 0
    %4398 = vmatpush1.bf16.msra.mxu0 0
    %4399 = vmatprep.subr.bf16.mxu0 0
    %4400 = vmatpush1.bf16.msra.mxu0 0
    %4401 = vmatprep.subr.bf16.mxu0 0
    %4402 = vmatpush1.bf16.msra.mxu0 0
    %4403 = vmatprep.subr.bf16.mxu0 0
    %4404 = vmatpush1.bf16.msra.mxu0 0
    %4405 = vmatprep.subr.bf16.mxu0 0
    %4406 = vmatpush1.bf16.msra.mxu0 0
    %4407 = vmatprep.subr.bf16.mxu0 0
    %4408 = vmatpush1.bf16.msra.mxu0 0
    %4409 = vmatprep.subr.bf16.mxu0 0
    %4410 = vmatpush1.bf16.msra.mxu0 0
    %4411 = vmatprep.subr.bf16.mxu0 0
    %4412 = vmatpush1.bf16.msra.mxu0 0
    %4413 = vmatprep.subr.bf16.mxu0 0
    %4414 = vmatpush1.bf16.msra.mxu0 0
    %4415 = vmatprep.subr.bf16.mxu0 0
    %4416 = vmatpush1.bf16.msra.mxu0 0
    %4417 = vmatprep.subr.bf16.mxu0 0
    %4418 = vmatpush1.bf16.msra.mxu0 0
    %4419 = vmatprep.subr.bf16.mxu0 0
    %4420 = vmatpush1.bf16.msra.mxu0 0
    %4421 = vmatprep.mubr.bf16.mxu0 0
    %4422 = vmatmul.mubr.bf16.gmra.mrb[0].mxu0 %v4384
    %v4423 = vpop.f32.mrb[0].mxu0
    %v4424 = vadd.f32 0.0, %v4423
    %v4425 = vpop.f32.mrb[0].mxu0
    %v4426 = vpop.f32.mrb[0].mxu0
    %v4427 = vpop.f32.mrb[0].mxu0
    %4428 = vdwg.mxu0
    %v4430 = vsel %vm1211, %v4098, 0
    %v4433 = vsel %vm2043, %v4106, 0
    %4435 = vmatprep.subr.bf16.mxu0 0
    %4436 = vmatpush1.bf16.msra.mxu0 %v4433
    %4437 = vmatprep.subr.bf16.mxu0 0
    %4438 = vmatpush1.bf16.msra.mxu0 0
    %4439 = vmatprep.subr.bf16.mxu0 0
    %4440 = vmatpush1.bf16.msra.mxu0 0
    %4441 = vmatprep.subr.bf16.mxu0 0
    %4442 = vmatpush1.bf16.msra.mxu0 0
    %4443 = vmatprep.subr.bf16.mxu0 0
    %4444 = vmatpush1.bf16.msra.mxu0 0
    %4445 = vmatprep.subr.bf16.mxu0 0
    %4446 = vmatpush1.bf16.msra.mxu0 0
    %4447 = vmatprep.subr.bf16.mxu0 0
    %4448 = vmatpush1.bf16.msra.mxu0 0
    %4449 = vmatprep.subr.bf16.mxu0 0
    %4450 = vmatpush1.bf16.msra.mxu0 0
    %4451 = vmatprep.subr.bf16.mxu0 0
    %4452 = vmatpush1.bf16.msra.mxu0 0
    %4453 = vmatprep.subr.bf16.mxu0 0
    %4454 = vmatpush1.bf16.msra.mxu0 0
    %4455 = vmatprep.subr.bf16.mxu0 0
    %4456 = vmatpush1.bf16.msra.mxu0 0
    %4457 = vmatprep.subr.bf16.mxu0 0
    %4458 = vmatpush1.bf16.msra.mxu0 0
    %4459 = vmatprep.subr.bf16.mxu0 0
    %4460 = vmatpush1.bf16.msra.mxu0 0
    %4461 = vmatprep.subr.bf16.mxu0 0
    %4462 = vmatpush1.bf16.msra.mxu0 0
    %4463 = vmatprep.subr.bf16.mxu0 0
    %4464 = vmatpush1.bf16.msra.mxu0 0
    %4465 = vmatprep.subr.bf16.mxu0 0
    %4466 = vmatpush1.bf16.msra.mxu0 0
    %4467 = vmatprep.mubr.bf16.mxu0 0
    %4468 = vmatmul.mubr.bf16.gmra.mrb[0].mxu0 %v4430
    %v4469 = vpop.f32.mrb[0].mxu0
    %v4470 = vadd.f32 0.0, %v4469
    %v4471 = vpop.f32.mrb[0].mxu0
    %v4472 = vpop.f32.mrb[0].mxu0
    %v4473 = vpop.f32.mrb[0].mxu0
    %4474 = vdwg.mxu0
    %v4475 = vpack.c.bf16 %v4148, %v4148
    %v4476 = vpack.c.bf16 %v4194, %v4194
    %v4477 = vpack.c.bf16 %v4240, %v4240
    %v4478 = vpack.c.bf16 %v4286, %v4286
    %v4479 = vpack.c.bf16 %v4332, %v4332
    %v4480 = vpack.c.bf16 %v4378, %v4378
    %v4481 = vpack.c.bf16 %v4424, %v4424
    %v4482 = vpack.c.bf16 %v4470, %v4470
    %v4483 = vld [vmem:[%s12] sm:$0xf]
    %v4484 = vld [vmem:[%s12 + $0x4] sm:$0xf]
    %v4485 = vld [vmem:[%s12 + $0x8] sm:$0xf]
    %v4486 = vld [vmem:[%s12 + $0xc] sm:$0xf]
    %v4488 = vsel %vm1211, %v4475, 0
    %v4491 = vsel %vm2043, %v4483, 0
    %4493 = vmatprep.subr.bf16.mxu0 0
    %4494 = vmatpush1.bf16.msra.mxu0 %v4491
    %4495 = vmatprep.subr.bf16.mxu0 0
    %4496 = vmatpush1.bf16.msra.mxu0 0
    %4497 = vmatprep.subr.bf16.mxu0 0
    %4498 = vmatpush1.bf16.msra.mxu0 0
    %4499 = vmatprep.subr.bf16.mxu0 0
    %4500 = vmatpush1.bf16.msra.mxu0 0
    %4501 = vmatprep.subr.bf16.mxu0 0
    %4502 = vmatpush1.bf16.msra.mxu0 0
    %4503 = vmatprep.subr.bf16.mxu0 0
    %4504 = vmatpush1.bf16.msra.mxu0 0
    %4505 = vmatprep.subr.bf16.mxu0 0
    %4506 = vmatpush1.bf16.msra.mxu0 0
    %4507 = vmatprep.subr.bf16.mxu0 0
    %4508 = vmatpush1.bf16.msra.mxu0 0
    %4509 = vmatprep.subr.bf16.mxu0 0
    %4510 = vmatpush1.bf16.msra.mxu0 0
    %4511 = vmatprep.subr.bf16.mxu0 0
    %4512 = vmatpush1.bf16.msra.mxu0 0
    %4513 = vmatprep.subr.bf16.mxu0 0
    %4514 = vmatpush1.bf16.msra.mxu0 0
    %4515 = vmatprep.subr.bf16.mxu0 0
    %4516 = vmatpush1.bf16.msra.mxu0 0
    %4517 = vmatprep.subr.bf16.mxu0 0
    %4518 = vmatpush1.bf16.msra.mxu0 0
    %4519 = vmatprep.subr.bf16.mxu0 0
    %4520 = vmatpush1.bf16.msra.mxu0 0
    %4521 = vmatprep.subr.bf16.mxu0 0
    %4522 = vmatpush1.bf16.msra.mxu0 0
    %4523 = vmatprep.subr.bf16.mxu0 0
    %4524 = vmatpush1.bf16.msra.mxu0 0
    %4525 = vmatprep.mubr.bf16.mxu0 0
    %4526 = vmatmul.mubr.bf16.gmra.mrb[0].mxu0 %v4488
    %v4527 = vpop.f32.mrb[0].mxu0
    %v4528 = vadd.f32 0.0, %v4527
    %v4529 = vpop.f32.mrb[0].mxu0
    %v4530 = vpop.f32.mrb[0].mxu0
    %v4531 = vpop.f32.mrb[0].mxu0
    %4532 = vdwg.mxu0
    %v4534 = vsel %vm1211, %v4476, 0
    %v4537 = vsel %vm2043, %v4484, 0
    %4539 = vmatprep.subr.bf16.mxu0 0
    %4540 = vmatpush1.bf16.msra.mxu0 %v4537
    %4541 = vmatprep.subr.bf16.mxu0 0
    %4542 = vmatpush1.bf16.msra.mxu0 0
    %4543 = vmatprep.subr.bf16.mxu0 0
    %4544 = vmatpush1.bf16.msra.mxu0 0
    %4545 = vmatprep.subr.bf16.mxu0 0
    %4546 = vmatpush1.bf16.msra.mxu0 0
    %4547 = vmatprep.subr.bf16.mxu0 0
    %4548 = vmatpush1.bf16.msra.mxu0 0
    %4549 = vmatprep.subr.bf16.mxu0 0
    %4550 = vmatpush1.bf16.msra.mxu0 0
    %4551 = vmatprep.subr.bf16.mxu0 0
    %4552 = vmatpush1.bf16.msra.mxu0 0
    %4553 = vmatprep.subr.bf16.mxu0 0
    %4554 = vmatpush1.bf16.msra.mxu0 0
    %4555 = vmatprep.subr.bf16.mxu0 0
    %4556 = vmatpush1.bf16.msra.mxu0 0
    %4557 = vmatprep.subr.bf16.mxu0 0
    %4558 = vmatpush1.bf16.msra.mxu0 0
    %4559 = vmatprep.subr.bf16.mxu0 0
    %4560 = vmatpush1.bf16.msra.mxu0 0
    %4561 = vmatprep.subr.bf16.mxu0 0
    %4562 = vmatpush1.bf16.msra.mxu0 0
    %4563 = vmatprep.subr.bf16.mxu0 0
    %4564 = vmatpush1.bf16.msra.mxu0 0
    %4565 = vmatprep.subr.bf16.mxu0 0
    %4566 = vmatpush1.bf16.msra.mxu0 0
    %4567 = vmatprep.subr.bf16.mxu0 0
    %4568 = vmatpush1.bf16.msra.mxu0 0
    %4569 = vmatprep.subr.bf16.mxu0 0
    %4570 = vmatpush1.bf16.msra.mxu0 0
    %4571 = vmatprep.mubr.bf16.mxu0 0
    %4572 = vmatmul.mubr.bf16.gmra.mrb[0].mxu0 %v4534
    %v4573 = vpop.f32.mrb[0].mxu0
    %v4574 = vadd.f32 0.0, %v4573
    %v4575 = vpop.f32.mrb[0].mxu0
    %v4576 = vpop.f32.mrb[0].mxu0
    %v4577 = vpop.f32.mrb[0].mxu0
    %4578 = vdwg.mxu0
    %v4580 = vsel %vm1211, %v4477, 0
    %v4583 = vsel %vm2043, %v4485, 0
    %4585 = vmatprep.subr.bf16.mxu0 0
    %4586 = vmatpush1.bf16.msra.mxu0 %v4583
    %4587 = vmatprep.subr.bf16.mxu0 0
    %4588 = vmatpush1.bf16.msra.mxu0 0
    %4589 = vmatprep.subr.bf16.mxu0 0
    %4590 = vmatpush1.bf16.msra.mxu0 0
    %4591 = vmatprep.subr.bf16.mxu0 0
    %4592 = vmatpush1.bf16.msra.mxu0 0
    %4593 = vmatprep.subr.bf16.mxu0 0
    %4594 = vmatpush1.bf16.msra.mxu0 0
    %4595 = vmatprep.subr.bf16.mxu0 0
    %4596 = vmatpush1.bf16.msra.mxu0 0
    %4597 = vmatprep.subr.bf16.mxu0 0
    %4598 = vmatpush1.bf16.msra.mxu0 0
    %4599 = vmatprep.subr.bf16.mxu0 0
    %4600 = vmatpush1.bf16.msra.mxu0 0
    %4601 = vmatprep.subr.bf16.mxu0 0
    %4602 = vmatpush1.bf16.msra.mxu0 0
    %4603 = vmatprep.subr.bf16.mxu0 0
    %4604 = vmatpush1.bf16.msra.mxu0 0
    %4605 = vmatprep.subr.bf16.mxu0 0
    %4606 = vmatpush1.bf16.msra.mxu0 0
    %4607 = vmatprep.subr.bf16.mxu0 0
    %4608 = vmatpush1.bf16.msra.mxu0 0
    %4609 = vmatprep.subr.bf16.mxu0 0
    %4610 = vmatpush1.bf16.msra.mxu0 0
    %4611 = vmatprep.subr.bf16.mxu0 0
    %4612 = vmatpush1.bf16.msra.mxu0 0
    %4613 = vmatprep.subr.bf16.mxu0 0
    %4614 = vmatpush1.bf16.msra.mxu0 0
    %4615 = vmatprep.subr.bf16.mxu0 0
    %4616 = vmatpush1.bf16.msra.mxu0 0
    %4617 = vmatprep.mubr.bf16.mxu0 0
    %4618 = vmatmul.mubr.bf16.gmra.mrb[0].mxu0 %v4580
    %v4619 = vpop.f32.mrb[0].mxu0
    %v4620 = vadd.f32 0.0, %v4619
    %v4621 = vpop.f32.mrb[0].mxu0
    %v4622 = vpop.f32.mrb[0].mxu0
    %v4623 = vpop.f32.mrb[0].mxu0
    %4624 = vdwg.mxu0
    %v4626 = vsel %vm1211, %v4478, 0
    %v4629 = vsel %vm2043, %v4486, 0
    %4631 = vmatprep.subr.bf16.mxu0 0
    %4632 = vmatpush1.bf16.msra.mxu0 %v4629
    %4633 = vmatprep.subr.bf16.mxu0 0
    %4634 = vmatpush1.bf16.msra.mxu0 0
    %4635 = vmatprep.subr.bf16.mxu0 0
    %4636 = vmatpush1.bf16.msra.mxu0 0
    %4637 = vmatprep.subr.bf16.mxu0 0
    %4638 = vmatpush1.bf16.msra.mxu0 0
    %4639 = vmatprep.subr.bf16.mxu0 0
    %4640 = vmatpush1.bf16.msra.mxu0 0
    %4641 = vmatprep.subr.bf16.mxu0 0
    %4642 = vmatpush1.bf16.msra.mxu0 0
    %4643 = vmatprep.subr.bf16.mxu0 0
    %4644 = vmatpush1.bf16.msra.mxu0 0
    %4645 = vmatprep.subr.bf16.mxu0 0
    %4646 = vmatpush1.bf16.msra.mxu0 0
    %4647 = vmatprep.subr.bf16.mxu0 0
    %4648 = vmatpush1.bf16.msra.mxu0 0
    %4649 = vmatprep.subr.bf16.mxu0 0
    %4650 = vmatpush1.bf16.msra.mxu0 0
    %4651 = vmatprep.subr.bf16.mxu0 0
    %4652 = vmatpush1.bf16.msra.mxu0 0
    %4653 = vmatprep.subr.bf16.mxu0 0
    %4654 = vmatpush1.bf16.msra.mxu0 0
    %4655 = vmatprep.subr.bf16.mxu0 0
    %4656 = vmatpush1.bf16.msra.mxu0 0
    %4657 = vmatprep.subr.bf16.mxu0 0
    %4658 = vmatpush1.bf16.msra.mxu0 0
    %4659 = vmatprep.subr.bf16.mxu0 0
    %4660 = vmatpush1.bf16.msra.mxu0 0
    %4661 = vmatprep.subr.bf16.mxu0 0
    %4662 = vmatpush1.bf16.msra.mxu0 0
    %4663 = vmatprep.mubr.bf16.mxu0 0
    %4664 = vmatmul.mubr.bf16.gmra.mrb[0].mxu0 %v4626
    %v4665 = vpop.f32.mrb[0].mxu0
    %v4666 = vadd.f32 0.0, %v4665
    %v4667 = vpop.f32.mrb[0].mxu0
    %v4668 = vpop.f32.mrb[0].mxu0
    %v4669 = vpop.f32.mrb[0].mxu0
    %4670 = vdwg.mxu0
    %v4672 = vsel %vm1211, %v4479, 0
    %4674 = vmatprep.subr.bf16.mxu0 0
    %4675 = vmatpush1.bf16.msra.mxu0 %v4491
    %4676 = vmatprep.subr.bf16.mxu0 0
    %4677 = vmatpush1.bf16.msra.mxu0 0
    %4678 = vmatprep.subr.bf16.mxu0 0
    %4679 = vmatpush1.bf16.msra.mxu0 0
    %4680 = vmatprep.subr.bf16.mxu0 0
    %4681 = vmatpush1.bf16.msra.mxu0 0
    %4682 = vmatprep.subr.bf16.mxu0 0
    %4683 = vmatpush1.bf16.msra.mxu0 0
    %4684 = vmatprep.subr.bf16.mxu0 0
    %4685 = vmatpush1.bf16.msra.mxu0 0
    %4686 = vmatprep.subr.bf16.mxu0 0
    %4687 = vmatpush1.bf16.msra.mxu0 0
    %4688 = vmatprep.subr.bf16.mxu0 0
    %4689 = vmatpush1.bf16.msra.mxu0 0
    %4690 = vmatprep.subr.bf16.mxu0 0
    %4691 = vmatpush1.bf16.msra.mxu0 0
    %4692 = vmatprep.subr.bf16.mxu0 0
    %4693 = vmatpush1.bf16.msra.mxu0 0
    %4694 = vmatprep.subr.bf16.mxu0 0
    %4695 = vmatpush1.bf16.msra.mxu0 0
    %4696 = vmatprep.subr.bf16.mxu0 0
    %4697 = vmatpush1.bf16.msra.mxu0 0
    %4698 = vmatprep.subr.bf16.mxu0 0
    %4699 = vmatpush1.bf16.msra.mxu0 0
    %4700 = vmatprep.subr.bf16.mxu0 0
    %4701 = vmatpush1.bf16.msra.mxu0 0
    %4702 = vmatprep.subr.bf16.mxu0 0
    %4703 = vmatpush1.bf16.msra.mxu0 0
    %4704 = vmatprep.subr.bf16.mxu0 0
    %4705 = vmatpush1.bf16.msra.mxu0 0
    %4706 = vmatprep.mubr.bf16.mxu0 0
    %4707 = vmatmul.mubr.bf16.gmra.mrb[0].mxu0 %v4672
    %v4708 = vpop.f32.mrb[0].mxu0
    %v4709 = vadd.f32 0.0, %v4708
    %v4710 = vpop.f32.mrb[0].mxu0
    %v4711 = vpop.f32.mrb[0].mxu0
    %v4712 = vpop.f32.mrb[0].mxu0
    %4713 = vdwg.mxu0
    %v4715 = vsel %vm1211, %v4480, 0
    %4717 = vmatprep.subr.bf16.mxu0 0
    %4718 = vmatpush1.bf16.msra.mxu0 %v4537
    %4719 = vmatprep.subr.bf16.mxu0 0
    %4720 = vmatpush1.bf16.msra.mxu0 0
    %4721 = vmatprep.subr.bf16.mxu0 0
    %4722 = vmatpush1.bf16.msra.mxu0 0
    %4723 = vmatprep.subr.bf16.mxu0 0
    %4724 = vmatpush1.bf16.msra.mxu0 0
    %4725 = vmatprep.subr.bf16.mxu0 0
    %4726 = vmatpush1.bf16.msra.mxu0 0
    %4727 = vmatprep.subr.bf16.mxu0 0
    %4728 = vmatpush1.bf16.msra.mxu0 0
    %4729 = vmatprep.subr.bf16.mxu0 0
    %4730 = vmatpush1.bf16.msra.mxu0 0
    %4731 = vmatprep.subr.bf16.mxu0 0
    %4732 = vmatpush1.bf16.msra.mxu0 0
    %4733 = vmatprep.subr.bf16.mxu0 0
    %4734 = vmatpush1.bf16.msra.mxu0 0
    %4735 = vmatprep.subr.bf16.mxu0 0
    %4736 = vmatpush1.bf16.msra.mxu0 0
    %4737 = vmatprep.subr.bf16.mxu0 0
    %4738 = vmatpush1.bf16.msra.mxu0 0
    %4739 = vmatprep.subr.bf16.mxu0 0
    %4740 = vmatpush1.bf16.msra.mxu0 0
    %4741 = vmatprep.subr.bf16.mxu0 0
    %4742 = vmatpush1.bf16.msra.mxu0 0
    %4743 = vmatprep.subr.bf16.mxu0 0
    %4744 = vmatpush1.bf16.msra.mxu0 0
    %4745 = vmatprep.subr.bf16.mxu0 0
    %4746 = vmatpush1.bf16.msra.mxu0 0
    %4747 = vmatprep.subr.bf16.mxu0 0
    %4748 = vmatpush1.bf16.msra.mxu0 0
    %4749 = vmatprep.mubr.bf16.mxu0 0
    %4750 = vmatmul.mubr.bf16.gmra.mrb[0].mxu0 %v4715
    %v4751 = vpop.f32.mrb[0].mxu0
    %v4752 = vadd.f32 0.0, %v4751
    %v4753 = vpop.f32.mrb[0].mxu0
    %v4754 = vpop.f32.mrb[0].mxu0
    %v4755 = vpop.f32.mrb[0].mxu0
    %4756 = vdwg.mxu0
    %v4758 = vsel %vm1211, %v4481, 0
    %4760 = vmatprep.subr.bf16.mxu0 0
    %4761 = vmatpush1.bf16.msra.mxu0 %v4583
    %4762 = vmatprep.subr.bf16.mxu0 0
    %4763 = vmatpush1.bf16.msra.mxu0 0
    %4764 = vmatprep.subr.bf16.mxu0 0
    %4765 = vmatpush1.bf16.msra.mxu0 0
    %4766 = vmatprep.subr.bf16.mxu0 0
    %4767 = vmatpush1.bf16.msra.mxu0 0
    %4768 = vmatprep.subr.bf16.mxu0 0
    %4769 = vmatpush1.bf16.msra.mxu0 0
    %4770 = vmatprep.subr.bf16.mxu0 0
    %4771 = vmatpush1.bf16.msra.mxu0 0
    %4772 = vmatprep.subr.bf16.mxu0 0
    %4773 = vmatpush1.bf16.msra.mxu0 0
    %4774 = vmatprep.subr.bf16.mxu0 0
    %4775 = vmatpush1.bf16.msra.mxu0 0
    %4776 = vmatprep.subr.bf16.mxu0 0
    %4777 = vmatpush1.bf16.msra.mxu0 0
    %4778 = vmatprep.subr.bf16.mxu0 0
    %4779 = vmatpush1.bf16.msra.mxu0 0
    %4780 = vmatprep.subr.bf16.mxu0 0
    %4781 = vmatpush1.bf16.msra.mxu0 0
    %4782 = vmatprep.subr.bf16.mxu0 0
    %4783 = vmatpush1.bf16.msra.mxu0 0
    %4784 = vmatprep.subr.bf16.mxu0 0
    %4785 = vmatpush1.bf16.msra.mxu0 0
    %4786 = vmatprep.subr.bf16.mxu0 0
    %4787 = vmatpush1.bf16.msra.mxu0 0
    %4788 = vmatprep.subr.bf16.mxu0 0
    %4789 = vmatpush1.bf16.msra.mxu0 0
    %4790 = vmatprep.subr.bf16.mxu0 0
    %4791 = vmatpush1.bf16.msra.mxu0 0
    %4792 = vmatprep.mubr.bf16.mxu0 0
    %4793 = vmatmul.mubr.bf16.gmra.mrb[0].mxu0 %v4758
    %v4794 = vpop.f32.mrb[0].mxu0
    %v4795 = vadd.f32 0.0, %v4794
    %v4796 = vpop.f32.mrb[0].mxu0
    %v4797 = vpop.f32.mrb[0].mxu0
    %v4798 = vpop.f32.mrb[0].mxu0
    %4799 = vdwg.mxu0
    %v4801 = vsel %vm1211, %v4482, 0
    %4803 = vmatprep.subr.bf16.mxu0 0
    %4804 = vmatpush1.bf16.msra.mxu0 %v4629
    %4805 = vmatprep.subr.bf16.mxu0 0
    %4806 = vmatpush1.bf16.msra.mxu0 0
    %4807 = vmatprep.subr.bf16.mxu0 0
    %4808 = vmatpush1.bf16.msra.mxu0 0
    %4809 = vmatprep.subr.bf16.mxu0 0
    %4810 = vmatpush1.bf16.msra.mxu0 0
    %4811 = vmatprep.subr.bf16.mxu0 0
    %4812 = vmatpush1.bf16.msra.mxu0 0
    %4813 = vmatprep.subr.bf16.mxu0 0
    %4814 = vmatpush1.bf16.msra.mxu0 0
    %4815 = vmatprep.subr.bf16.mxu0 0
    %4816 = vmatpush1.bf16.msra.mxu0 0
    %4817 = vmatprep.subr.bf16.mxu0 0
    %4818 = vmatpush1.bf16.msra.mxu0 0
    %4819 = vmatprep.subr.bf16.mxu0 0
    %4820 = vmatpush1.bf16.msra.mxu0 0
    %4821 = vmatprep.subr.bf16.mxu0 0
    %4822 = vmatpush1.bf16.msra.mxu0 0
    %4823 = vmatprep.subr.bf16.mxu0 0
    %4824 = vmatpush1.bf16.msra.mxu0 0
    %4825 = vmatprep.subr.bf16.mxu0 0
    %4826 = vmatpush1.bf16.msra.mxu0 0
    %4827 = vmatprep.subr.bf16.mxu0 0
    %4828 = vmatpush1.bf16.msra.mxu0 0
    %4829 = vmatprep.subr.bf16.mxu0 0
    %4830 = vmatpush1.bf16.msra.mxu0 0
    %4831 = vmatprep.subr.bf16.mxu0 0
    %4832 = vmatpush1.bf16.msra.mxu0 0
    %4833 = vmatprep.subr.bf16.mxu0 0
    %4834 = vmatpush1.bf16.msra.mxu0 0
    %4835 = vmatprep.mubr.bf16.mxu0 0
    %4836 = vmatmul.mubr.bf16.gmra.mrb[0].mxu0 %v4801
    %v4837 = vpop.f32.mrb[0].mxu0
    %v4838 = vadd.f32 0.0, %v4837
    %v4839 = vpop.f32.mrb[0].mxu0
    %v4840 = vpop.f32.mrb[0].mxu0
    %v4841 = vpop.f32.mrb[0].mxu0
    %4842 = vdwg.mxu0
    %v4843 = vadd.f32 %v4528, %v4574
    %v4844 = vadd.f32 %v4709, %v4752
    %v4845 = vadd.f32 %v4843, %v4620
    %v4846 = vadd.f32 %v4844, %v4795
    %v4847 = vadd.f32 %v4845, %v4666
    %v4848 = vadd.f32 %v4846, %v4838
    %v4849 = vld [vmem:[%s13] sm:$0x1]
    %v4851 = vlaneseq
    %v4852 = vshrl.u32 %v4851, 7
    %v4853 = vsub.s32 0, %v4852
    %v4854 = vrot.slane %v4849, %v4853
    %v4856 = vadd.f32 %v4847, %v4854
    %v4857 = vadd.f32 %v4848, %v4854
    %v4858 = vadd.f32 %v4856, %v2457
    %v4859 = vadd.f32 %v4857, %v2458
    %v4860 = vsel %vm105, %v4858, 0.0
    %4861 = vadd.xlane.f32.xlu0 %v4860
    %v4862 = vpop.xlane.xlu0 %4861
    %v4863 = vsel %vm105, %v4859, 0.0
    %4864 = vadd.xlane.f32.xlu0 %v4863
    %v4865 = vpop.xlane.xlu0 %4864
    %v4866 = vmul.f32 %v4862, %v2420
    %v4867 = vmul.f32 %v4865, %v2420
    %v4868 = vsub.f32 %v4858, %v4866
    %v4869 = vsub.f32 %v4859, %v4867
    %v4870 = vmul.f32 %v4868, %v4868
    %v4871 = vmul.f32 %v4869, %v4869
    %v4872 = vsel %vm105, %v4870, 0.0
    %4873 = vadd.xlane.f32.xlu0 %v4872
    %v4874 = vpop.xlane.xlu0 %4873
    %v4875 = vsel %vm105, %v4871, 0.0
    %4876 = vadd.xlane.f32.xlu0 %v4875
    %v4877 = vpop.xlane.xlu0 %4876
    %v4878 = vmul.f32 %v4874, %v2420
    %v4879 = vmul.f32 %v4877, %v2420
    %v4880 = vadd.f32 %v4878, 1e-05
    %v4881 = vadd.f32 %v4879, 1e-05
    %v4882 = vrsqrt.pop %v4880
    %v4883 = vrsqrt.pop %v4881
    %v4884 = vmul.f32 %v4868, %v4882
    %v4885 = vmul.f32 %v4869, %v4883
    %v4886 = vld [vmem:[%s14] sm:$0x1]
    %v4888 = vlaneseq
    %v4889 = vshrl.u32 %v4888, 7
    %v4890 = vsub.s32 0, %v4889
    %v4891 = vrot.slane %v4886, %v4890
    %v4893 = vmul.f32 %v4884, %v4891
    %v4894 = vmul.f32 %v4885, %v4891
    %v4895 = vld [vmem:[%s15] sm:$0x1]
    %v4897 = vlaneseq
    %v4898 = vshrl.u32 %v4897, 7
    %v4899 = vsub.s32 0, %v4898
    %v4900 = vrot.slane %v4895, %v4899
    %v4902 = vadd.f32 %v4893, %v4900
    %v4903 = vadd.f32 %v4894, %v4900
    %v4904 = vpack.c.bf16 %v4903, %v4902
    %v4905 = vld [vmem:[%s16] sm:$0xf]
    %v4906 = vld [vmem:[%s16 + $0x4] sm:$0xf]
    %v4907 = vld [vmem:[%s16 + $0x8] sm:$0xf]
    %v4908 = vld [vmem:[%s16 + $0xc] sm:$0xf]
    %v4909 = vld [vmem:[%s17] sm:$0x1]
    %v4911 = vlaneseq
    %v4912 = vshrl.u32 %v4911, 7
    %v4913 = vsub.s32 0, %v4912
    %v4914 = vrot.slane %v4909, %v4913
    %v4920 = vunpack.c.l.b16 %v4905
    %v4921 = vunpack.c.l.b16 %v4906
    %v4922 = vunpack.c.l.b16 %v4907
    %v4923 = vunpack.c.l.b16 %v4908
    %v4924 = vpack.c.b16 %v4921, %v4920
    %v4925 = vpack.c.b16 %v4923, %v4922
    %v4929 = vsel %vm105, %v4904, 0
    %4931 = vmatprep.subr.bf16.mxu0 0
    %4932 = vmatpush1.bf16.msra.mxu0 %v4924
    %4933 = vmatprep.subr.bf16.mxu0 0
    %4934 = vmatpush1.bf16.msra.mxu0 %v4925
    %4935 = vmatprep.subr.bf16.mxu0 0
    %4936 = vmatpush1.bf16.msra.mxu0 0
    %4937 = vmatprep.subr.bf16.mxu0 0
    %4938 = vmatpush1.bf16.msra.mxu0 0
    %4939 = vmatprep.subr.bf16.mxu0 0
    %4940 = vmatpush1.bf16.msra.mxu0 0
    %4941 = vmatprep.subr.bf16.mxu0 0
    %4942 = vmatpush1.bf16.msra.mxu0 0
    %4943 = vmatprep.subr.bf16.mxu0 0
    %4944 = vmatpush1.bf16.msra.mxu0 0
    %4945 = vmatprep.subr.bf16.mxu0 0
    %4946 = vmatpush1.bf16.msra.mxu0 0
    %4947 = vmatprep.subr.bf16.mxu0 0
    %4948 = vmatpush1.bf16.msra.mxu0 0
    %4949 = vmatprep.subr.bf16.mxu0 0
    %4950 = vmatpush1.bf16.msra.mxu0 0
    %4951 = vmatprep.subr.bf16.mxu0 0
    %4952 = vmatpush1.bf16.msra.mxu0 0
    %4953 = vmatprep.subr.bf16.mxu0 0
    %4954 = vmatpush1.bf16.msra.mxu0 0
    %4955 = vmatprep.subr.bf16.mxu0 0
    %4956 = vmatpush1.bf16.msra.mxu0 0
    %4957 = vmatprep.subr.bf16.mxu0 0
    %4958 = vmatpush1.bf16.msra.mxu0 0
    %4959 = vmatprep.subr.bf16.mxu0 0
    %4960 = vmatpush1.bf16.msra.mxu0 0
    %4961 = vmatprep.subr.bf16.mxu0 0
    %4962 = vmatpush1.bf16.msra.mxu0 0
    %4963 = vmatprep.mubr.bf16.mxu0 0
    %4964 = vmatmul.mubr.bf16.gmra.mrb[0].mxu0 %v4929
    %v4965 = vpop.f32.mrb[0].mxu0
    %v4966 = vadd.f32 %v4914, %v4965
    %v4967 = vpop.f32.mrb[0].mxu0
    %v4968 = vpop.f32.mrb[0].mxu0
    %v4969 = vadd.f32 %v4914, %v4968
    %v4970 = vpop.f32.mrb[0].mxu0
    %4971 = vdwg.mxu0
    %v4972 = vmax.f32 %v4966, 0.0
    %v4973 = vmax.f32 %v4969, 0.0
    %v4974 = vpack.c.bf16 %v4973, %v4972
    %v4975 = vld [vmem:[%s18] sm:$0xf]
    %v4976 = vld [vmem:[%s18 + $0x4] sm:$0xf]
    %v4977 = vld [vmem:[%s18 + $0x8] sm:$0xf]
    %v4978 = vld [vmem:[%s18 + $0xc] sm:$0xf]
    %v4979 = vld [vmem:[%s18 + $0x10] sm:$0xf]
    %v4980 = vld [vmem:[%s18 + $0x14] sm:$0xf]
    %v4981 = vld [vmem:[%s18 + $0x18] sm:$0xf]
    %v4982 = vld [vmem:[%s18 + $0x1c] sm:$0xf]
    %v4983 = vld [vmem:[%s19] sm:$0x1]
    %v4985 = vlaneseq
    %v4986 = vshrl.u32 %v4985, 7
    %v4987 = vsub.s32 0, %v4986
    %v4988 = vrot.slane %v4983, %v4987
    %v4998 = vunpack.c.l.b16 %v4975
    %v4999 = vunpack.c.l.b16 %v4976
    %v5000 = vunpack.c.l.b16 %v4977
    %v5001 = vunpack.c.l.b16 %v4978
    %v5002 = vunpack.c.l.b16 %v4979
    %v5003 = vunpack.c.l.b16 %v4980
    %v5004 = vunpack.c.l.b16 %v4981
    %v5005 = vunpack.c.l.b16 %v4982
    %v5006 = vpack.c.b16 %v4999, %v4998
    %v5007 = vpack.c.b16 %v5001, %v5000
    %v5008 = vpack.c.b16 %v5003, %v5002
    %v5009 = vpack.c.b16 %v5005, %v5004
    %vm5014 = vcmask 523264
    %v5016 = vsel %vm5014, %v4974, 0
    %5018 = vmatprep.subr.bf16.mxu0 0
    %5019 = vmatpush1.bf16.msra.mxu0 %v5006
    %5020 = vmatprep.subr.bf16.mxu0 0
    %5021 = vmatpush1.bf16.msra.mxu0 %v5007
    %5022 = vmatprep.subr.bf16.mxu0 0
    %5023 = vmatpush1.bf16.msra.mxu0 %v5008
    %5024 = vmatprep.subr.bf16.mxu0 0
    %5025 = vmatpush1.bf16.msra.mxu0 %v5009
    %5026 = vmatprep.subr.bf16.mxu0 0
    %5027 = vmatpush1.bf16.msra.mxu0 0
    %5028 = vmatprep.subr.bf16.mxu0 0
    %5029 = vmatpush1.bf16.msra.mxu0 0
    %5030 = vmatprep.subr.bf16.mxu0 0
    %5031 = vmatpush1.bf16.msra.mxu0 0
    %5032 = vmatprep.subr.bf16.mxu0 0
    %5033 = vmatpush1.bf16.msra.mxu0 0
    %5034 = vmatprep.subr.bf16.mxu0 0
    %5035 = vmatpush1.bf16.msra.mxu0 0
    %5036 = vmatprep.subr.bf16.mxu0 0
    %5037 = vmatpush1.bf16.msra.mxu0 0
    %5038 = vmatprep.subr.bf16.mxu0 0
    %5039 = vmatpush1.bf16.msra.mxu0 0
    %5040 = vmatprep.subr.bf16.mxu0 0
    %5041 = vmatpush1.bf16.msra.mxu0 0
    %5042 = vmatprep.subr.bf16.mxu0 0
    %5043 = vmatpush1.bf16.msra.mxu0 0
    %5044 = vmatprep.subr.bf16.mxu0 0
    %5045 = vmatpush1.bf16.msra.mxu0 0
    %5046 = vmatprep.subr.bf16.mxu0 0
    %5047 = vmatpush1.bf16.msra.mxu0 0
    %5048 = vmatprep.subr.bf16.mxu0 0
    %5049 = vmatpush1.bf16.msra.mxu0 0
    %5050 = vmatprep.mubr.bf16.mxu0 0
    %5051 = vmatmul.mubr.bf16.gmra.mrb[0].mxu0 %v5016
    %v5052 = vpop.f32.mrb[0].mxu0
    %v5053 = vadd.f32 %v4988, %v5052
    %v5054 = vpop.f32.mrb[0].mxu0
    %v5055 = vpop.f32.mrb[0].mxu0
    %v5056 = vadd.f32 %v4988, %v5055
    %v5057 = vpop.f32.mrb[0].mxu0
    %5058 = vdwg.mxu0
    %v5059 = vadd.f32 %v4902, %v5053
    %v5060 = vadd.f32 %v4903, %v5056
    %5061 = vst.msk [vmem:[#allocation2] sm:$0xff] %vm105, %v5059
    %5062 = vst.msk [vmem:[#allocation2 + $0x8] sm:$0xff] %vm105, %v5060
    // Predicated region
    $region82: #{tpu_custom_call.1} parent=1 // pred_check
      _
    $region83: #{tpu_custom_call.1} parent=1 // pred_check_branch
      %5064 = sbr.rel (0) target = $region85
    $region84: #{tpu_custom_call.1} parent=1 // pred_region
      %s5066 = ssub.s32 256, 256
      %5067 = vsyncadd [#allocation3], %s5066
      %s5068 = sshll.u32 [#allocation2], 4
      %s5069 = int_to_ptr.vmem [resolvable:$true] %s5068
      %5074 = dma.vmem_to_hbm [thread:$0]  %s5069, 256, %s20, [#allocation3], 128, 128, 8
    $region85: #{tpu_custom_call.1} parent=1 // pred_fallthru
      _
    // Predicated region
    $region86: #{tpu_custom_call.1} parent=1 // pred_check
      _
    $region87: #{tpu_custom_call.1} parent=1 // pred_check_branch
      %5076 = sbr.rel (0) target = $region89
    $region88: #{tpu_custom_call.1} parent=1 // pred_region
      %5077 = dma.done [#allocation3], 256
    $region89: #{tpu_custom_call.1} parent=1 // pred_fallthru
      _
    %5078 = vsyncpa [#allocation3], 1

</llo_original>
